<compile_context>
chip_gen: v7x
topology: tpu7x:2x2x1
jax: 0.10.0
libtpu: 0.0.40
codegen_flags: <defaults>
</compile_context>

<pallas_src>
import functools

import jax
import jax.numpy as jnp
from jax import lax
from jax.experimental import pallas as pl
from jax.experimental.pallas import tpu as pltpu

EPS = 1e-5
LANE = 128
VMEM_LIMIT = 48 * 1024 * 1024   # conservative for v7x; v5e/v6e can raise to 64-96 MiB


def _round_up(v, m):
    return (v + m - 1) // m * m


def _pad_last(a, target):
    pad = target - a.shape[-1]
    if pad == 0:
        return a
    return jnp.pad(a, [(0, 0)] * (a.ndim - 1) + [(0, pad)])


def _pick_tile(m, target_steps=8, max_tile=256):
    """Largest multiple-of-8 divisor of m that is <= min(max_tile, m // target_steps)."""
    target = max(8, min(max_tile, m // target_steps))
    target -= target % 8
    for cand in range(max(target, 8), 7, -8):
        if m % cand == 0:
            return cand
    return 8


def _pick_row_tile(n, h, w, target_steps=8, max_rows=16):
    """Largest row-tile TH dividing H s.t. (TH*W)%8==0 and N*(H/TH) >= target_steps."""
    cands = [th for th in range(1, min(h, max_rows) + 1)
             if h % th == 0 and (th * w) % 8 == 0]
    feasible = [th for th in cands if n * (h // th) >= target_steps]
    if feasible:
        return max(feasible)
    if cands:
        return max(cands)
    return h


# --------------------------- in-kernel helpers --------------------------------

def _bn_scale_shift(s_ref, q_ref, g_ref, be_ref, inv_count):
    """Fold per-tile BN partials into per-channel scale/shift (training-mode BN)."""
    mean = jnp.sum(s_ref[...], axis=0, keepdims=True) * inv_count
    msq = jnp.sum(q_ref[...], axis=0, keepdims=True) * inv_count
    var = jnp.maximum(msq - mean * mean, 0.0)
    scale = g_ref[...] * lax.rsqrt(var + EPS)
    shift = be_ref[...] - mean * scale
    return scale, shift


def _emit_stats(s_ref, q_ref, t):
    """Write this tile's (sum, sum-of-squares) into row 0 of an (8, C) stats block."""
    z = jnp.zeros((7, t.shape[1]), jnp.float32)
    s_ref[...] = jnp.concatenate([jnp.sum(t, axis=0, keepdims=True), z], axis=0)
    q_ref[...] = jnp.concatenate([jnp.sum(t * t, axis=0, keepdims=True), z], axis=0)


# ------------------------------ kernel bodies ----------------------------------

def conv1x1_stats_kernel(x_ref, w_ref, b_ref, t_ref, s_ref, q_ref):
    """t = x @ w1 + b1 (bf16 operands, f32 acc) plus per-tile BN1 partials."""
    t = jnp.dot(x_ref[...].astype(jnp.bfloat16), w_ref[...],
                preferred_element_type=jnp.float32) + b_ref[...]
    t_ref[...] = t
    _emit_stats(s_ref, q_ref, t)


def bn_relu_conv3x3_stats_kernel(x_ref, s_ref, q_ref, g_ref, be_ref,
                                 w_ref, b_ref, t_ref, so_ref, qo_ref,
                                 ypad_ref, *, W, TH, nH, C, inv_count):
    """BN1 + ReLU (scale/shift folded in-kernel from partials), then the 3x3
    conv over one TH-row tile as 9 accumulating MXU dots.  The dh taps are
    aligned slab views of a row-padded scratch; the dw=+-1 taps are flattened
    row shifts (jnp.roll) with a width-edge mask.  Emits BN2 partials."""
    f32, bf16 = jnp.float32, jnp.bfloat16
    hb = pl.program_id(1)                       # row-tile index inside the image
    scale, shift = _bn_scale_shift(s_ref, q_ref, g_ref, be_ref, inv_count)

    def bn_relu(v):
        return jnp.maximum(v * scale + shift, 0.0)

    rows = TH * W
    base = hb * rows

    # interior rows of this row tile
    ypad_ref[W:W + rows, :] = bn_relu(x_ref[pl.ds(base, rows), :])

    # top halo row (previous image row, or zeros at the image border)
    @pl.when(hb == 0)
    def _():
        ypad_ref[0:W, :] = jnp.zeros((W, C), f32)

    @pl.when(hb > 0)
    def _():
        ypad_ref[0:W, :] = bn_relu(x_ref[pl.ds(base - W, W), :])

    # bottom halo row
    @pl.when(hb == nH - 1)
    def _():
        ypad_ref[W + rows:, :] = jnp.zeros((W, C), f32)

    @pl.when(hb < nH - 1)
    def _():
        ypad_ref[W + rows:, :] = bn_relu(x_ref[pl.ds(base + rows, W), :])

    # width-edge masks for the flattened-row shifts (dw = 0 / 2 taps)
    col = lax.broadcasted_iota(jnp.int32, (rows, 1), 0) % W
    left_edge = col == 0
    right_edge = col == W - 1

    acc = jnp.zeros((rows, C), f32)
    for dh in range(3):
        slab = ypad_ref[dh * W:dh * W + rows, :]        # aligned contiguous view
        for dw in range(3):
            if dw == 0:
                tap = jnp.where(left_edge, 0.0, jnp.roll(slab, 1, axis=0))
            elif dw == 2:
                tap = jnp.where(right_edge, 0.0, jnp.roll(slab, -1, axis=0))
            else:
                tap = slab
            k = dh * 3 + dw
            acc = acc + jnp.dot(tap.astype(bf16), w_ref[k * C:(k + 1) * C, :],
                                preferred_element_type=f32)
    t = acc + b_ref[...]
    t_ref[...] = t
    _emit_stats(so_ref, qo_ref, t)


def bn_relu_conv1x1_stats_kernel(x_ref, s_ref, q_ref, g_ref, be_ref,
                                 w_ref, b_ref, t_ref, so_ref, qo_ref,
                                 *, inv_count):
    """y = relu(BN2(x)); t = y @ w3 + b3; emits BN3 partials."""
    scale, shift = _bn_scale_shift(s_ref, q_ref, g_ref, be_ref, inv_count)
    y = jnp.maximum(x_ref[...] * scale + shift, 0.0)
    t = jnp.dot(y.astype(jnp.bfloat16), w_ref[...],
                preferred_element_type=jnp.float32) + b_ref[...]
    t_ref[...] = t
    _emit_stats(so_ref, qo_ref, t)


def bn_residual_relu_kernel(t_ref, s_ref, q_ref, g_ref, be_ref,
                            x_ref, r_ref, o_ref, *, inv_count):
    """o = relu(BN3(t) + x @ R) where R is a 0/1 channel-replication matrix."""
    scale, shift = _bn_scale_shift(s_ref, q_ref, g_ref, be_ref, inv_count)
    res = jnp.dot(x_ref[...], r_ref[...], preferred_element_type=jnp.float32)
    o_ref[...] = jnp.maximum(t_ref[...] * scale + shift + res, 0.0)


def bn_relu_out_kernel(t_ref, s_ref, q_ref, g_ref, be_ref, o_ref, *, inv_count):
    """o = relu(BN3(t)) (no residual)."""
    scale, shift = _bn_scale_shift(s_ref, q_ref, g_ref, be_ref, inv_count)
    o_ref[...] = jnp.maximum(t_ref[...] * scale + shift, 0.0)


# --------------------------------- wrapper -------------------------------------

def bottleneck_forward(x_nhwc, p, residual=True):
    f32, bf16 = jnp.float32, jnp.bfloat16
    N, H, W, Cin = x_nhwc.shape
    Cmid = p["w1"].shape[1]
    Cout = p["w3"].shape[1]
    HW = H * W
    M = N * HW
    assert HW % 8 == 0, "H*W must be a multiple of 8"

    Cmid_p = _round_up(Cmid, LANE)
    Cout_p = _round_up(Cout, LANE)

    TM = _pick_tile(M)
    nM = M // TM
    TH = _pick_row_tile(N, H, W)
    nH = H // TH
    inv_count = 1.0 / float(M)

    x2d = x_nhwc.reshape(M, Cin).astype(f32)

    w1_bf = _pad_last(p["w1"], Cmid_p).astype(bf16)
    b1 = _pad_last(p["b1"].reshape(1, -1), Cmid_p).astype(f32)
    g1 = _pad_last(p["g1"].reshape(1, -1), Cmid_p).astype(f32)
    be1 = _pad_last(p["be1"].reshape(1, -1), Cmid_p).astype(f32)

    w2_bf = jnp.pad(p["w2"], ((0, 0), (0, 0),
                              (0, Cmid_p - Cmid), (0, Cmid_p - Cmid))
                    ).reshape(9 * Cmid_p, Cmid_p).astype(bf16)
    b2 = _pad_last(p["b2"].reshape(1, -1), Cmid_p).astype(f32)
    g2 = _pad_last(p["g2"].reshape(1, -1), Cmid_p).astype(f32)
    be2 = _pad_last(p["be2"].reshape(1, -1), Cmid_p).astype(f32)

    w3_bf = jnp.pad(p["w3"], ((0, Cmid_p - Cmid), (0, Cout_p - Cout))).astype(bf16)
    b3 = _pad_last(p["b3"].reshape(1, -1), Cout_p).astype(f32)
    g3 = _pad_last(p["g3"].reshape(1, -1), Cout_p).astype(f32)
    be3 = _pad_last(p["be3"].reshape(1, -1), Cout_p).astype(f32)

    cp1 = pltpu.CompilerParams(dimension_semantics=("parallel",),
                               vmem_limit_bytes=VMEM_LIMIT)
    cp2 = pltpu.CompilerParams(dimension_semantics=("parallel", "parallel"),
                               vmem_limit_bytes=VMEM_LIMIT)

    # ------------- stage 1: conv1 (1x1) + BN1 partial stats ------------------
    t1, s1, q1 = pl.pallas_call(
        conv1x1_stats_kernel,
        grid=(nM,),
        in_specs=[
            pl.BlockSpec((TM, Cin), lambda i: (i, 0)),        # full-extent last dim
            pl.BlockSpec((Cin, Cmid_p), lambda i: (0, 0)),
            pl.BlockSpec((1, Cmid_p), lambda i: (0, 0)),
        ],
        out_shape=(
            jax.ShapeDtypeStruct((M, Cmid_p), f32),
            jax.ShapeDtypeStruct((nM * 8, Cmid_p), f32),
            jax.ShapeDtypeStruct((nM * 8, Cmid_p), f32),
        ),
        out_specs=(
            pl.BlockSpec((TM, Cmid_p), lambda i: (i, 0)),
            pl.BlockSpec((8, Cmid_p), lambda i: (i, 0)),
            pl.BlockSpec((8, Cmid_p), lambda i: (i, 0)),
        ),
        compiler_params=cp1,
        cost_estimate=pl.CostEstimate(
            flops=2 * M * Cin * Cmid_p, transcendentals=0,
            bytes_accessed=M * Cin * 4 + Cin * Cmid_p * 2 + M * Cmid_p * 4),
    )(x2d, w1_bf, b1)

    # --- stage 2: BN1+ReLU -> conv2 (3x3, row tiles) + BN2 partial stats -----
    t2, s2, q2 = pl.pallas_call(
        functools.partial(bn_relu_conv3x3_stats_kernel, W=W, TH=TH, nH=nH,
                          C=Cmid_p, inv_count=inv_count),
        grid=(N, nH),
        in_specs=[
            pl.BlockSpec((HW, Cmid_p), lambda n, h: (n, 0)),
            pl.BlockSpec((nM * 8, Cmid_p), lambda n, h: (0, 0)),
            pl.BlockSpec((nM * 8, Cmid_p), lambda n, h: (0, 0)),
            pl.BlockSpec((1, Cmid_p), lambda n, h: (0, 0)),
            pl.BlockSpec((1, Cmid_p), lambda n, h: (0, 0)),
            pl.BlockSpec((9 * Cmid_p, Cmid_p), lambda n, h: (0, 0)),
            pl.BlockSpec((1, Cmid_p), lambda n, h: (0, 0)),
        ],
        out_shape=(
            jax.ShapeDtypeStruct((M, Cmid_p), f32),
            jax.ShapeDtypeStruct((N * nH * 8, Cmid_p), f32),
            jax.ShapeDtypeStruct((N * nH * 8, Cmid_p), f32),
        ),
        out_specs=(
            pl.BlockSpec((TH * W, Cmid_p), lambda n, h: (n * nH + h, 0)),
            pl.BlockSpec((8, Cmid_p), lambda n, h: (n * nH + h, 0)),
            pl.BlockSpec((8, Cmid_p), lambda n, h: (n * nH + h, 0)),
        ),
        scratch_shapes=[pltpu.VMEM(((TH + 2) * W, Cmid_p), f32)],   # row-padded y1
        compiler_params=cp2,
        cost_estimate=pl.CostEstimate(
            flops=2 * M * 9 * Cmid_p * Cmid_p, transcendentals=0,
            bytes_accessed=2 * M * Cmid_p * 4 + 9 * Cmid_p * Cmid_p * 2),
    )(t1, s1, q1, g1, be1, w2_bf, b2)

    # -------- stage 3: BN2+ReLU -> conv3 (1x1) + BN3 partial stats -----------
    t3, s3, q3 = pl.pallas_call(
        functools.partial(bn_relu_conv1x1_stats_kernel, inv_count=inv_count),
        grid=(nM,),
        in_specs=[
            pl.BlockSpec((TM, Cmid_p), lambda i: (i, 0)),
            pl.BlockSpec((N * nH * 8, Cmid_p), lambda i: (0, 0)),
            pl.BlockSpec((N * nH * 8, Cmid_p), lambda i: (0, 0)),
            pl.BlockSpec((1, Cmid_p), lambda i: (0, 0)),
            pl.BlockSpec((1, Cmid_p), lambda i: (0, 0)),
            pl.BlockSpec((Cmid_p, Cout_p), lambda i: (0, 0)),
            pl.BlockSpec((1, Cout_p), lambda i: (0, 0)),
        ],
        out_shape=(
            jax.ShapeDtypeStruct((M, Cout_p), f32),
            jax.ShapeDtypeStruct((nM * 8, Cout_p), f32),
            jax.ShapeDtypeStruct((nM * 8, Cout_p), f32),
        ),
        out_specs=(
            pl.BlockSpec((TM, Cout_p), lambda i: (i, 0)),
            pl.BlockSpec((8, Cout_p), lambda i: (i, 0)),
            pl.BlockSpec((8, Cout_p), lambda i: (i, 0)),
        ),
        compiler_params=cp1,
        cost_estimate=pl.CostEstimate(
            flops=2 * M * Cmid_p * Cout_p, transcendentals=0,
            bytes_accessed=M * Cmid_p * 4 + Cmid_p * Cout_p * 2 + M * Cout_p * 4),
    )(t2, s2, q2, g2, be2, w3_bf, b3)

    # ------------- stage 4: BN3 (+ residual) + final ReLU --------------------
    if residual:
        if Cin == Cout:
            reps = 1
        else:
            assert Cout == 4 * Cin, "PyTorch slice-add branch assumes out = 4*in"
            reps = 4
        rmat = _pad_last(jnp.tile(jnp.eye(Cin, dtype=f32), (1, reps)), Cout_p)
        out2d = pl.pallas_call(
            functools.partial(bn_residual_relu_kernel, inv_count=inv_count),
            grid=(nM,),
            in_specs=[
                pl.BlockSpec((TM, Cout_p), lambda i: (i, 0)),
                pl.BlockSpec((nM * 8, Cout_p), lambda i: (0, 0)),
                pl.BlockSpec((nM * 8, Cout_p), lambda i: (0, 0)),
                pl.BlockSpec((1, Cout_p), lambda i: (0, 0)),
                pl.BlockSpec((1, Cout_p), lambda i: (0, 0)),
                pl.BlockSpec((TM, Cin), lambda i: (i, 0)),
                pl.BlockSpec((Cin, Cout_p), lambda i: (0, 0)),
            ],
            out_shape=jax.ShapeDtypeStruct((M, Cout_p), f32),
            out_specs=pl.BlockSpec((TM, Cout_p), lambda i: (i, 0)),
            compiler_params=cp1,
            cost_estimate=pl.CostEstimate(
                flops=2 * M * Cin * Cout_p + 3 * M * Cout_p, transcendentals=0,
                bytes_accessed=2 * M * Cout_p * 4 + M * Cin * 4),
        )(t3, s3, q3, g3, be3, x2d, rmat)
    else:
        out2d = pl.pallas_call(
            functools.partial(bn_relu_out_kernel, inv_count=inv_count),
            grid=(nM,),
            in_specs=[
                pl.BlockSpec((TM, Cout_p), lambda i: (i, 0)),
                pl.BlockSpec((nM * 8, Cout_p), lambda i: (0, 0)),
                pl.BlockSpec((nM * 8, Cout_p), lambda i: (0, 0)),
                pl.BlockSpec((1, Cout_p), lambda i: (0, 0)),
                pl.BlockSpec((1, Cout_p), lambda i: (0, 0)),
            ],
            out_shape=jax.ShapeDtypeStruct((M, Cout_p), f32),
            out_specs=pl.BlockSpec((TM, Cout_p), lambda i: (i, 0)),
            compiler_params=cp1,
            cost_estimate=pl.CostEstimate(
                flops=3 * M * Cout_p, transcendentals=0,
                bytes_accessed=2 * M * Cout_p * 4),
        )(t3, s3, q3, g3, be3)

    return out2d.reshape(N, H, W, Cout_p)[..., :Cout]


# --------------- pure-JAX reference (matched matmul precision) -----------------
def reference(x_nhwc, p, residual=True):
    """Faithful module math: bf16 matmul operands / f32 accumulation, f32
    training-mode BatchNorm (centered variance, eps=1e-5).  The 3x3 conv is a
    9-tap einsum sum so its precision path matches a bf16 MXU matmul."""
    f32, bf16 = jnp.float32, jnp.bfloat16
    N, H, W, Cin = x_nhwc.shape
    Cmid = p["w1"].shape[1]
    Cout = p["w3"].shape[1]

    def bn(h, g, be):
        mean = h.mean(axis=(0, 1, 2), keepdims=True)
        var = ((h - mean) ** 2).mean(axis=(0, 1, 2), keepdims=True)
        return (h - mean) * lax.rsqrt(var + EPS) * g + be

    def mm(h, w):
        return jnp.einsum("nhwc,cd->nhwd", h.astype(bf16), w.astype(bf16),
                          preferred_element_type=f32)

    y = jax.nn.relu(bn(mm(x_nhwc, p["w1"]) + p["b1"], p["g1"], p["be1"]))
    yp = jnp.pad(y, ((0, 0), (1, 1), (1, 1), (0, 0)))
    acc = jnp.zeros((N, H, W, Cmid), f32)
    for dh in range(3):
        for dw in range(3):
            acc = acc + jnp.einsum(
                "nhwc,cd->nhwd",
                yp[:, dh:dh + H, dw:dw + W, :].astype(bf16),
                p["w2"][dh, dw].astype(bf16),
                preferred_element_type=f32)
    y = jax.nn.relu(bn(acc + p["b2"], p["g2"], p["be2"]))
    y = bn(mm(y, p["w3"]) + p["b3"], p["g3"], p["be3"])
    if residual:
        if Cin == Cout:
            y = y + x_nhwc
        else:
            reps = Cout // Cin
            y = y + jnp.concatenate([x_nhwc] * reps, axis=-1)
    return jax.nn.relu(y)


if __name__ == "__main__":
    key = jax.random.PRNGKey(0)
    N, H, W = 2, 16, 16
    Cin, Cmid, Cout = 64, 64, 256   # nn.Conv2d defaults of the module

    ks = jax.random.split(key, 13)
    x_nchw = jax.random.normal(ks[0], (N, Cin, H, W), jnp.float32)  # PyTorch layout
    x = jnp.transpose(x_nchw, (0, 2, 3, 1))                         # -> NHWC

    params = {
        "w1": 0.1 * jax.random.normal(ks[1], (Cin, Cmid), jnp.float32),
        "b1": 0.1 * jax.random.normal(ks[2], (1, Cmid), jnp.float32),
        "g1": 1.0 + 0.1 * jax.random.normal(ks[3], (1, Cmid), jnp.float32),
        "be1": 0.1 * jax.random.normal(ks[4], (1, Cmid), jnp.float32),
        "w2": 0.1 * jax.random.normal(ks[5], (3, 3, Cmid, Cmid), jnp.float32),  # HWIO
        "b2": 0.1 * jax.random.normal(ks[6], (1, Cmid), jnp.float32),
        "g2": 1.0 + 0.1 * jax.random.normal(ks[7], (1, Cmid), jnp.float32),
        "be2": 0.1 * jax.random.normal(ks[8], (1, Cmid), jnp.float32),
        "w3": 0.1 * jax.random.normal(ks[9], (Cmid, Cout), jnp.float32),
        "b3": 0.1 * jax.random.normal(ks[10], (1, Cout), jnp.float32),
        "g3": 1.0 + 0.1 * jax.random.normal(ks[11], (1, Cout), jnp.float32),
        "be3": 0.1 * jax.random.normal(ks[12], (1, Cout), jnp.float32),
    }

    fwd = jax.jit(functools.partial(bottleneck_forward, residual=True))
    out = fwd(x, params)
    jax.block_until_ready(out)

    ref = reference(x, params, residual=True)
    # bf16 MXU operands -> allow bf16-scale tolerance against the reference.
    if not bool(jnp.allclose(out, ref, rtol=2e-2, atol=2e-2)):
        err = float(jnp.max(jnp.abs(out - ref)))
        raise AssertionError(f"mismatch vs reference, max abs err = {err}")

    print("KERNEL_OK")
</pallas_src>

<mosaic_0001>
module attributes {stable_mosaic.version = 11 : i64} {
  func.func @conv1x1_stats_kernel(%arg0: i32, %arg1: memref<64x64xf32, #tpu.memory_space<vmem>>, %arg2: memref<64x128xbf16, #tpu.memory_space<vmem>>, %arg3: memref<1x128xf32, #tpu.memory_space<vmem>>, %arg4: memref<64x128xf32, #tpu.memory_space<vmem>>, %arg5: memref<8x128xf32, #tpu.memory_space<vmem>>, %arg6: memref<8x128xf32, #tpu.memory_space<vmem>>) attributes {dimension_semantics = [#tpu.dimension_semantics<parallel>], iteration_bounds = array<i64: 8>, scalar_prefetch = 0 : i64, scratch_operands = 0 : i64, tpu.core_type = #tpu.core_type<tc>, window_params = [{transform_indices = @transform_0, window_bounds = array<i64: 64, 64>}, {pipeline_mode = #tpu.pipeline_mode<synchronous>, transform_indices = @transform_1, window_bounds = array<i64: 64, 128>}, {pipeline_mode = #tpu.pipeline_mode<synchronous>, transform_indices = @transform_2, window_bounds = array<i64: 1, 128>}, {transform_indices = @transform_3, window_bounds = array<i64: 64, 128>}, {transform_indices = @transform_4, window_bounds = array<i64: 8, 128>}, {transform_indices = @transform_5, window_bounds = array<i64: 8, 128>}]} {
    %c0 = arith.constant 0 : index
    %c0_0 = arith.constant 0 : index
    %0 = vector.load %arg1[%c0, %c0_0] : memref<64x64xf32, #tpu.memory_space<vmem>>, vector<64x64xf32>
    %1 = arith.truncf %0 : vector<64x64xf32> to vector<64x64xbf16>
    %c0_1 = arith.constant 0 : index
    %c0_2 = arith.constant 0 : index
    %2 = vector.load %arg2[%c0_1, %c0_2] : memref<64x128xbf16, #tpu.memory_space<vmem>>, vector<64x128xbf16>
    %cst = arith.constant dense<0.000000e+00> : vector<64x128xf32>
    %3 = tpu.matmul %1, %2, %cst {dimension_numbers = #tpu.dot_dimension_numbers<[1], [0], [0], [1], [0, 0, 1, 1], [], []>} : vector<64x64xbf16>, vector<64x128xbf16>, vector<64x128xf32> -> vector<64x128xf32>
    %c0_3 = arith.constant 0 : index
    %c0_4 = arith.constant 0 : index
    %4 = vector.load %arg3[%c0_3, %c0_4] : memref<1x128xf32, #tpu.memory_space<vmem>>, vector<1x128xf32>
    %5 = vector.broadcast %4 : vector<1x128xf32> to vector<64x128xf32>
    %6 = arith.addf %3, %5 : vector<64x128xf32>
    %c0_5 = arith.constant 0 : index
    %c0_6 = arith.constant 0 : index
    %7 = vector.load %arg4[%c0_5, %c0_6] : memref<64x128xf32, #tpu.memory_space<vmem>>, vector<64x128xf32>
    tpu.vector_store %arg4[%c0_5, %c0_6], %6 {strides = array<i32>} : memref<64x128xf32, #tpu.memory_space<vmem>>, vector<64x128xf32>,
    %cst_7 = arith.constant 0.000000e+00 : f32
    %8 = vector.broadcast %cst_7 : f32 to vector<7x128xf32>
    %cst_8 = arith.constant dense<0.000000e+00> : vector<128xf32>
    %9 = vector.multi_reduction <add>, %6, %cst_8 [0] : vector<64x128xf32> to vector<128xf32>
    %10 = vector.shape_cast %9 : vector<128xf32> to vector<1x128xf32>
    %11 = tpu.concatenate %10, %8 in 0 : vector<1x128xf32>, vector<7x128xf32> -> vector<8x128xf32>
    %c0_9 = arith.constant 0 : index
    %c0_10 = arith.constant 0 : index
    %12 = vector.load %arg5[%c0_9, %c0_10] : memref<8x128xf32, #tpu.memory_space<vmem>>, vector<8x128xf32>
    tpu.vector_store %arg5[%c0_9, %c0_10], %11 {strides = array<i32>} : memref<8x128xf32, #tpu.memory_space<vmem>>, vector<8x128xf32>,
    %13 = arith.mulf %6, %6 : vector<64x128xf32>
    %cst_11 = arith.constant dense<0.000000e+00> : vector<128xf32>
    %14 = vector.multi_reduction <add>, %13, %cst_11 [0] : vector<64x128xf32> to vector<128xf32>
    %15 = vector.shape_cast %14 : vector<128xf32> to vector<1x128xf32>
    %16 = tpu.concatenate %15, %8 in 0 : vector<1x128xf32>, vector<7x128xf32> -> vector<8x128xf32>
    %c0_12 = arith.constant 0 : index
    %c0_13 = arith.constant 0 : index
    %17 = vector.load %arg6[%c0_12, %c0_13] : memref<8x128xf32, #tpu.memory_space<vmem>>, vector<8x128xf32>
    tpu.vector_store %arg6[%c0_12, %c0_13], %16 {strides = array<i32>} : memref<8x128xf32, #tpu.memory_space<vmem>>, vector<8x128xf32>,
    return
  }
  func.func @transform_0(%arg0: i32) -> (i32, i32) {
    %c0_i32 = arith.constant 0 : i32
    %c0_i32_0 = arith.constant 0 : i32
    return %arg0, %c0_i32 : i32, i32
  }
  func.func @transform_1(%arg0: i32) -> (i32, i32) {
    %c0_i32 = arith.constant 0 : i32
    %c0_i32_0 = arith.constant 0 : i32
    %c0_i32_1 = arith.constant 0 : i32
    return %c0_i32, %c0_i32_0 : i32, i32
  }
  func.func @transform_2(%arg0: i32) -> (i32, i32) {
    %c0_i32 = arith.constant 0 : i32
    %c0_i32_0 = arith.constant 0 : i32
    %c0_i32_1 = arith.constant 0 : i32
    return %c0_i32, %c0_i32_0 : i32, i32
  }
  func.func @transform_3(%arg0: i32) -> (i32, i32) {
    %c0_i32 = arith.constant 0 : i32
    %c0_i32_0 = arith.constant 0 : i32
    return %arg0, %c0_i32 : i32, i32
  }
  func.func @transform_4(%arg0: i32) -> (i32, i32) {
    %c0_i32 = arith.constant 0 : i32
    %c0_i32_0 = arith.constant 0 : i32
    return %arg0, %c0_i32 : i32, i32
  }
  func.func @transform_5(%arg0: i32) -> (i32, i32) {
    %c0_i32 = arith.constant 0 : i32
    %c0_i32_0 = arith.constant 0 : i32
    return %arg0, %c0_i32 : i32, i32
  }
}

module attributes {stable_mosaic.version = 11 : i64} {
  func.func @bn_relu_conv3x3_stats_kernel(%arg0: i32, %arg1: i32, %arg2: memref<256x128xf32, #tpu.memory_space<vmem>>, %arg3: memref<64x128xf32, #tpu.memory_space<vmem>>, %arg4: memref<64x128xf32, #tpu.memory_space<vmem>>, %arg5: memref<1x128xf32, #tpu.memory_space<vmem>>, %arg6: memref<1x128xf32, #tpu.memory_space<vmem>>, %arg7: memref<1152x128xbf16, #tpu.memory_space<vmem>>, %arg8: memref<1x128xf32, #tpu.memory_space<vmem>>, %arg9: memref<64x128xf32, #tpu.memory_space<vmem>>, %arg10: memref<8x128xf32, #tpu.memory_space<vmem>>, %arg11: memref<8x128xf32, #tpu.memory_space<vmem>>, %arg12: memref<96x128xf32, #tpu.memory_space<vmem>>) attributes {dimension_semantics = [#tpu.dimension_semantics<parallel>, #tpu.dimension_semantics<parallel>], iteration_bounds = array<i64: 2, 4>, scalar_prefetch = 0 : i64, scratch_operands = 1 : i64, tpu.core_type = #tpu.core_type<tc>, window_params = [{transform_indices = @transform_0, window_bounds = array<i64: 256, 128>}, {pipeline_mode = #tpu.pipeline_mode<synchronous>, transform_indices = @transform_1, window_bounds = array<i64: 64, 128>}, {pipeline_mode = #tpu.pipeline_mode<synchronous>, transform_indices = @transform_2, window_bounds = array<i64: 64, 128>}, {pipeline_mode = #tpu.pipeline_mode<synchronous>, transform_indices = @transform_3, window_bounds = array<i64: 1, 128>}, {pipeline_mode = #tpu.pipeline_mode<synchronous>, transform_indices = @transform_4, window_bounds = array<i64: 1, 128>}, {pipeline_mode = #tpu.pipeline_mode<synchronous>, transform_indices = @transform_5, window_bounds = array<i64: 1152, 128>}, {pipeline_mode = #tpu.pipeline_mode<synchronous>, transform_indices = @transform_6, window_bounds = array<i64: 1, 128>}, {transform_indices = @transform_7, window_bounds = array<i64: 64, 128>}, {transform_indices = @transform_8, window_bounds = array<i64: 8, 128>}, {transform_indices = @transform_9, window_bounds = array<i64: 8, 128>}]} {
    %c0 = arith.constant 0 : index
    %c0_0 = arith.constant 0 : index
    %0 = vector.load %arg3[%c0, %c0_0] : memref<64x128xf32, #tpu.memory_space<vmem>>, vector<64x128xf32>
    %cst = arith.constant dense<0.000000e+00> : vector<128xf32>
    %1 = vector.multi_reduction <add>, %0, %cst [0] : vector<64x128xf32> to vector<128xf32>
    %2 = vector.shape_cast %1 : vector<128xf32> to vector<1x128xf32>
    %cst_1 = arith.constant 0.001953125 : f32
    %3 = vector.broadcast %cst_1 : f32 to vector<1x128xf32>
    %4 = arith.mulf %2, %3 : vector<1x128xf32>
    %c0_2 = arith.constant 0 : index
    %c0_3 = arith.constant 0 : index
    %5 = vector.load %arg4[%c0_2, %c0_3] : memref<64x128xf32, #tpu.memory_space<vmem>>, vector<64x128xf32>
    %cst_4 = arith.constant dense<0.000000e+00> : vector<128xf32>
    %6 = vector.multi_reduction <add>, %5, %cst_4 [0] : vector<64x128xf32> to vector<128xf32>
    %7 = vector.shape_cast %6 : vector<128xf32> to vector<1x128xf32>
    %cst_5 = arith.constant 0.001953125 : f32
    %8 = vector.broadcast %cst_5 : f32 to vector<1x128xf32>
    %9 = arith.mulf %7, %8 : vector<1x128xf32>
    %10 = arith.mulf %4, %4 : vector<1x128xf32>
    %11 = arith.subf %9, %10 : vector<1x128xf32>
    %cst_6 = arith.constant 0.000000e+00 : f32
    %12 = vector.broadcast %cst_6 : f32 to vector<1x128xf32>
    %13 = arith.maximumf %11, %12 : vector<1x128xf32>
    %c0_7 = arith.constant 0 : index
    %c0_8 = arith.constant 0 : index
    %14 = vector.load %arg5[%c0_7, %c0_8] : memref<1x128xf32, #tpu.memory_space<vmem>>, vector<1x128xf32>
    %cst_9 = arith.constant 9.99999974E-6 : f32
    %15 = vector.broadcast %cst_9 : f32 to vector<1x128xf32>
    %16 = arith.addf %13, %15 : vector<1x128xf32>
    %17 = math.rsqrt %16 : vector<1x128xf32>
    %18 = arith.mulf %14, %17 : vector<1x128xf32>
    %c0_10 = arith.constant 0 : index
    %c0_11 = arith.constant 0 : index
    %19 = vector.load %arg6[%c0_10, %c0_11] : memref<1x128xf32, #tpu.memory_space<vmem>>, vector<1x128xf32>
    %20 = arith.mulf %4, %18 : vector<1x128xf32>
    %21 = arith.subf %19, %20 : vector<1x128xf32>
    %c64_i32 = arith.constant 64 : i32
    %22 = arith.muli %arg1, %c64_i32 : i32
    %23 = arith.index_cast %22 : i32 to index
    %c0_12 = arith.constant 0 : index
    %24 = vector.load %arg2[%23, %c0_12] : memref<256x128xf32, #tpu.memory_space<vmem>>, vector<64x128xf32>
    %25 = vector.broadcast %18 : vector<1x128xf32> to vector<64x128xf32>
    %26 = arith.mulf %24, %25 : vector<64x128xf32>
    %27 = vector.broadcast %21 : vector<1x128xf32> to vector<64x128xf32>
    %28 = arith.addf %26, %27 : vector<64x128xf32>
    %cst_13 = arith.constant 0.000000e+00 : f32
    %29 = vector.broadcast %cst_13 : f32 to vector<64x128xf32>
    %30 = arith.maximumf %28, %29 : vector<64x128xf32>
    %c16 = arith.constant 16 : index
    %c0_14 = arith.constant 0 : index
    %31 = vector.load %arg12[%c16, %c0_14] : memref<96x128xf32, #tpu.memory_space<vmem>>, vector<64x128xf32>
    tpu.vector_store %arg12[%c16, %c0_14], %30 {strides = array<i32>} : memref<96x128xf32, #tpu.memory_space<vmem>>, vector<64x128xf32>,
    %c0_i32 = arith.constant 0 : i32
    %32 = arith.cmpi eq, %arg1, %c0_i32 : i32
    %33 = arith.extui %32 : i1 to i32
    %c0_i32_15 = arith.constant 0 : i32
    %34 = arith.cmpi ne, %33, %c0_i32_15 : i32
    scf.if %34 {
      %cst_68 = arith.constant 0.000000e+00 : f32
      %161 = vector.broadcast %cst_68 : f32 to vector<16x128xf32>
      %c0_69 = arith.constant 0 : index
      %c0_70 = arith.constant 0 : index
      %162 = vector.load %arg12[%c0_69, %c0_70] : memref<96x128xf32, #tpu.memory_space<vmem>>, vector<16x128xf32>
      tpu.vector_store %arg12[%c0_69, %c0_70], %161 {strides = array<i32>} : memref<96x128xf32, #tpu.memory_space<vmem>>, vector<16x128xf32>,
    } else {
    }
    %c0_i32_16 = arith.constant 0 : i32
    %35 = arith.cmpi sgt, %arg1, %c0_i32_16 : i32
    %36 = arith.extui %35 : i1 to i32
    %c0_i32_17 = arith.constant 0 : i32
    %37 = arith.cmpi ne, %36, %c0_i32_17 : i32
    scf.if %37 {
      %c16_i32_68 = arith.constant 16 : i32
      %161 = arith.subi %22, %c16_i32_68 : i32
      %162 = arith.index_cast %161 : i32 to index
      %c0_69 = arith.constant 0 : index
      %163 = vector.load %arg2[%162, %c0_69] : memref<256x128xf32, #tpu.memory_space<vmem>>, vector<16x128xf32>
      %164 = vector.broadcast %18 : vector<1x128xf32> to vector<16x128xf32>
      %165 = arith.mulf %163, %164 : vector<16x128xf32>
      %166 = vector.broadcast %21 : vector<1x128xf32> to vector<16x128xf32>
      %167 = arith.addf %165, %166 : vector<16x128xf32>
      %cst_70 = arith.constant 0.000000e+00 : f32
      %168 = vector.broadcast %cst_70 : f32 to vector<16x128xf32>
      %169 = arith.maximumf %167, %168 : vector<16x128xf32>
      %c0_71 = arith.constant 0 : index
      %c0_72 = arith.constant 0 : index
      %170 = vector.load %arg12[%c0_71, %c0_72] : memref<96x128xf32, #tpu.memory_space<vmem>>, vector<16x128xf32>
      tpu.vector_store %arg12[%c0_71, %c0_72], %169 {strides = array<i32>} : memref<96x128xf32, #tpu.memory_space<vmem>>, vector<16x128xf32>,
    } else {
    }
    %c3_i32 = arith.constant 3 : i32
    %38 = arith.cmpi eq, %arg1, %c3_i32 : i32
    %39 = arith.extui %38 : i1 to i32
    %c0_i32_18 = arith.constant 0 : i32
    %40 = arith.cmpi ne, %39, %c0_i32_18 : i32
    scf.if %40 {
      %cst_68 = arith.constant 0.000000e+00 : f32
      %161 = vector.broadcast %cst_68 : f32 to vector<16x128xf32>
      %c80 = arith.constant 80 : index
      %c0_69 = arith.constant 0 : index
      %162 = vector.load %arg12[%c80, %c0_69] : memref<96x128xf32, #tpu.memory_space<vmem>>, vector<16x128xf32>
      tpu.vector_store %arg12[%c80, %c0_69], %161 {strides = array<i32>} : memref<96x128xf32, #tpu.memory_space<vmem>>, vector<16x128xf32>,
    } else {
    }
    %c3_i32_19 = arith.constant 3 : i32
    %41 = arith.cmpi slt, %arg1, %c3_i32_19 : i32
    %42 = arith.extui %41 : i1 to i32
    %c0_i32_20 = arith.constant 0 : i32
    %43 = arith.cmpi ne, %42, %c0_i32_20 : i32
    scf.if %43 {
      %c64_i32_68 = arith.constant 64 : i32
      %161 = arith.addi %22, %c64_i32_68 : i32
      %162 = arith.index_cast %161 : i32 to index
      %c0_69 = arith.constant 0 : index
      %163 = vector.load %arg2[%162, %c0_69] : memref<256x128xf32, #tpu.memory_space<vmem>>, vector<16x128xf32>
      %164 = vector.broadcast %18 : vector<1x128xf32> to vector<16x128xf32>
      %165 = arith.mulf %163, %164 : vector<16x128xf32>
      %166 = vector.broadcast %21 : vector<1x128xf32> to vector<16x128xf32>
      %167 = arith.addf %165, %166 : vector<16x128xf32>
      %cst_70 = arith.constant 0.000000e+00 : f32
      %168 = vector.broadcast %cst_70 : f32 to vector<16x128xf32>
      %169 = arith.maximumf %167, %168 : vector<16x128xf32>
      %c80 = arith.constant 80 : index
      %c0_71 = arith.constant 0 : index
      %170 = vector.load %arg12[%c80, %c0_71] : memref<96x128xf32, #tpu.memory_space<vmem>>, vector<16x128xf32>
      tpu.vector_store %arg12[%c80, %c0_71], %169 {strides = array<i32>} : memref<96x128xf32, #tpu.memory_space<vmem>>, vector<16x128xf32>,
    } else {
    }
    %44 = tpu.iota {dimensions = array<i32: 0>} : vector<64x1xi32>
    %c16_i32 = arith.constant 16 : i32
    %c0_i32_21 = arith.constant 0 : i32
    %45 = arith.cmpi eq, %c16_i32, %c0_i32_21 : i32
    %c1_i32 = arith.constant 1 : i32
    %46 = arith.select %45, %c1_i32, %c16_i32 : i32
    %47 = vector.broadcast %46 : i32 to vector<64x1xi32>
    %48 = arith.remsi %44, %47 : vector<64x1xi32>
    %c0_i32_22 = arith.constant 0 : i32
    %49 = vector.broadcast %c0_i32_22 : i32 to vector<64x1xi32>
    %50 = arith.cmpi ne, %48, %49 : vector<64x1xi32>
    %c0_i32_23 = arith.constant 0 : i32
    %51 = vector.broadcast %c0_i32_23 : i32 to vector<64x1xi32>
    %52 = arith.cmpi slt, %48, %51 : vector<64x1xi32>
    %c0_i32_24 = arith.constant 0 : i32
    %53 = arith.cmpi slt, %46, %c0_i32_24 : i32
    %54 = vector.broadcast %53 : i1 to vector<64x1xi1>
    %55 = vector.broadcast %54 : vector<64x1xi1> to vector<64x1xi1>
    %56 = arith.xori %52, %55 : vector<64x1xi1>
    %57 = arith.andi %56, %50 : vector<64x1xi1>
    %58 = vector.broadcast %46 : i32 to vector<64x1xi32>
    %59 = arith.addi %48, %58 : vector<64x1xi32>
    %60 = arith.select %57, %59, %48 : vector<64x1xi1>, vector<64x1xi32>
    %c0_i32_25 = arith.constant 0 : i32
    %61 = vector.broadcast %c0_i32_25 : i32 to vector<64x1xi32>
    %62 = arith.cmpi eq, %60, %61 : vector<64x1xi32>
    %c15_i32 = arith.constant 15 : i32
    %63 = vector.broadcast %c15_i32 : i32 to vector<64x1xi32>
    %64 = arith.cmpi eq, %60, %63 : vector<64x1xi32>
    %cst_26 = arith.constant 0.000000e+00 : f32
    %65 = vector.broadcast %cst_26 : f32 to vector<64x128xf32>
    %c0_27 = arith.constant 0 : index
    %c0_28 = arith.constant 0 : index
    %66 = vector.load %arg12[%c0_27, %c0_28] : memref<96x128xf32, #tpu.memory_space<vmem>>, vector<64x128xf32>
    %67 = vector.extract_strided_slice %66 {offsets = [63, 0], sizes = [1, 128], strides = [1, 1]} : vector<64x128xf32> to vector<1x128xf32>
    %68 = vector.extract_strided_slice %66 {offsets = [0, 0], sizes = [63, 128], strides = [1, 1]} : vector<64x128xf32> to vector<63x128xf32>
    %69 = tpu.concatenate %67, %68 in 0 : vector<1x128xf32>, vector<63x128xf32> -> vector<64x128xf32>
    %cst_29 = arith.constant 0.000000e+00 : f32
    %70 = vector.shape_cast %62 : vector<64x1xi1> to vector<64x1xi1>
    %71 = vector.broadcast %70 : vector<64x1xi1> to vector<64x128xi1>
    %72 = vector.broadcast %cst_29 : f32 to vector<64x128xf32>
    %73 = arith.select %71, %72, %69 : vector<64x128xi1>, vector<64x128xf32>
    %74 = arith.truncf %73 : vector<64x128xf32> to vector<64x128xbf16>
    %c0_30 = arith.constant 0 : index
    %c0_31 = arith.constant 0 : index
    %75 = vector.load %arg7[%c0_30, %c0_31] : memref<1152x128xbf16, #tpu.memory_space<vmem>>, vector<128x128xbf16>
    %cst_32 = arith.constant dense<0.000000e+00> : vector<64x128xf32>
    %76 = tpu.matmul %74, %75, %cst_32 {dimension_numbers = #tpu.dot_dimension_numbers<[1], [0], [0], [1], [0, 0, 1, 1], [], []>} : vector<64x128xbf16>, vector<128x128xbf16>, vector<64x128xf32> -> vector<64x128xf32>
    %77 = arith.addf %65, %76 : vector<64x128xf32>
    %78 = arith.truncf %66 : vector<64x128xf32> to vector<64x128xbf16>
    %c128 = arith.constant 128 : index
    %c0_33 = arith.constant 0 : index
    %79 = vector.load %arg7[%c128, %c0_33] : memref<1152x128xbf16, #tpu.memory_space<vmem>>, vector<128x128xbf16>
    %cst_34 = arith.constant dense<0.000000e+00> : vector<64x128xf32>
    %80 = tpu.matmul %78, %79, %cst_34 {dimension_numbers = #tpu.dot_dimension_numbers<[1], [0], [0], [1], [0, 0, 1, 1], [], []>} : vector<64x128xbf16>, vector<128x128xbf16>, vector<64x128xf32> -> vector<64x128xf32>
    %81 = arith.addf %77, %80 : vector<64x128xf32>
    %82 = vector.extract_strided_slice %66 {offsets = [1, 0], sizes = [63, 128], strides = [1, 1]} : vector<64x128xf32> to vector<63x128xf32>
    %83 = vector.extract_strided_slice %66 {offsets = [0, 0], sizes = [1, 128], strides = [1, 1]} : vector<64x128xf32> to vector<1x128xf32>
    %84 = tpu.concatenate %82, %83 in 0 : vector<63x128xf32>, vector<1x128xf32> -> vector<64x128xf32>
    %cst_35 = arith.constant 0.000000e+00 : f32
    %85 = vector.shape_cast %64 : vector<64x1xi1> to vector<64x1xi1>
    %86 = vector.broadcast %85 : vector<64x1xi1> to vector<64x128xi1>
    %87 = vector.broadcast %cst_35 : f32 to vector<64x128xf32>
    %88 = arith.select %86, %87, %84 : vector<64x128xi1>, vector<64x128xf32>
    %89 = arith.truncf %88 : vector<64x128xf32> to vector<64x128xbf16>
    %c256 = arith.constant 256 : index
    %c0_36 = arith.constant 0 : index
    %90 = vector.load %arg7[%c256, %c0_36] : memref<1152x128xbf16, #tpu.memory_space<vmem>>, vector<128x128xbf16>
    %cst_37 = arith.constant dense<0.000000e+00> : vector<64x128xf32>
    %91 = tpu.matmul %89, %90, %cst_37 {dimension_numbers = #tpu.dot_dimension_numbers<[1], [0], [0], [1], [0, 0, 1, 1], [], []>} : vector<64x128xbf16>, vector<128x128xbf16>, vector<64x128xf32> -> vector<64x128xf32>
    %92 = arith.addf %81, %91 : vector<64x128xf32>
    %c16_38 = arith.constant 16 : index
    %c0_39 = arith.constant 0 : index
    %93 = vector.load %arg12[%c16_38, %c0_39] : memref<96x128xf32, #tpu.memory_space<vmem>>, vector<64x128xf32>
    %94 = vector.extract_strided_slice %93 {offsets = [63, 0], sizes = [1, 128], strides = [1, 1]} : vector<64x128xf32> to vector<1x128xf32>
    %95 = vector.extract_strided_slice %93 {offsets = [0, 0], sizes = [63, 128], strides = [1, 1]} : vector<64x128xf32> to vector<63x128xf32>
    %96 = tpu.concatenate %94, %95 in 0 : vector<1x128xf32>, vector<63x128xf32> -> vector<64x128xf32>
    %cst_40 = arith.constant 0.000000e+00 : f32
    %97 = vector.shape_cast %62 : vector<64x1xi1> to vector<64x1xi1>
    %98 = vector.broadcast %97 : vector<64x1xi1> to vector<64x128xi1>
    %99 = vector.broadcast %cst_40 : f32 to vector<64x128xf32>
    %100 = arith.select %98, %99, %96 : vector<64x128xi1>, vector<64x128xf32>
    %101 = arith.truncf %100 : vector<64x128xf32> to vector<64x128xbf16>
    %c384 = arith.constant 384 : index
    %c0_41 = arith.constant 0 : index
    %102 = vector.load %arg7[%c384, %c0_41] : memref<1152x128xbf16, #tpu.memory_space<vmem>>, vector<128x128xbf16>
    %cst_42 = arith.constant dense<0.000000e+00> : vector<64x128xf32>
    %103 = tpu.matmul %101, %102, %cst_42 {dimension_numbers = #tpu.dot_dimension_numbers<[1], [0], [0], [1], [0, 0, 1, 1], [], []>} : vector<64x128xbf16>, vector<128x128xbf16>, vector<64x128xf32> -> vector<64x128xf32>
    %104 = arith.addf %92, %103 : vector<64x128xf32>
    %105 = arith.truncf %93 : vector<64x128xf32> to vector<64x128xbf16>
    %c512 = arith.constant 512 : index
    %c0_43 = arith.constant 0 : index
    %106 = vector.load %arg7[%c512, %c0_43] : memref<1152x128xbf16, #tpu.memory_space<vmem>>, vector<128x128xbf16>
    %cst_44 = arith.constant dense<0.000000e+00> : vector<64x128xf32>
    %107 = tpu.matmul %105, %106, %cst_44 {dimension_numbers = #tpu.dot_dimension_numbers<[1], [0], [0], [1], [0, 0, 1, 1], [], []>} : vector<64x128xbf16>, vector<128x128xbf16>, vector<64x128xf32> -> vector<64x128xf32>
    %108 = arith.addf %104, %107 : vector<64x128xf32>
    %109 = vector.extract_strided_slice %93 {offsets = [1, 0], sizes = [63, 128], strides = [1, 1]} : vector<64x128xf32> to vector<63x128xf32>
    %110 = vector.extract_strided_slice %93 {offsets = [0, 0], sizes = [1, 128], strides = [1, 1]} : vector<64x128xf32> to vector<1x128xf32>
    %111 = tpu.concatenate %109, %110 in 0 : vector<63x128xf32>, vector<1x128xf32> -> vector<64x128xf32>
    %cst_45 = arith.constant 0.000000e+00 : f32
    %112 = vector.shape_cast %64 : vector<64x1xi1> to vector<64x1xi1>
    %113 = vector.broadcast %112 : vector<64x1xi1> to vector<64x128xi1>
    %114 = vector.broadcast %cst_45 : f32 to vector<64x128xf32>
    %115 = arith.select %113, %114, %111 : vector<64x128xi1>, vector<64x128xf32>
    %116 = arith.truncf %115 : vector<64x128xf32> to vector<64x128xbf16>
    %c640 = arith.constant 640 : index
    %c0_46 = arith.constant 0 : index
    %117 = vector.load %arg7[%c640, %c0_46] : memref<1152x128xbf16, #tpu.memory_space<vmem>>, vector<128x128xbf16>
    %cst_47 = arith.constant dense<0.000000e+00> : vector<64x128xf32>
    %118 = tpu.matmul %116, %117, %cst_47 {dimension_numbers = #tpu.dot_dimension_numbers<[1], [0], [0], [1], [0, 0, 1, 1], [], []>} : vector<64x128xbf16>, vector<128x128xbf16>, vector<64x128xf32> -> vector<64x128xf32>
    %119 = arith.addf %108, %118 : vector<64x128xf32>
    %c32 = arith.constant 32 : index
    %c0_48 = arith.constant 0 : index
    %120 = vector.load %arg12[%c32, %c0_48] : memref<96x128xf32, #tpu.memory_space<vmem>>, vector<64x128xf32>
    %121 = vector.extract_strided_slice %120 {offsets = [63, 0], sizes = [1, 128], strides = [1, 1]} : vector<64x128xf32> to vector<1x128xf32>
    %122 = vector.extract_strided_slice %120 {offsets = [0, 0], sizes = [63, 128], strides = [1, 1]} : vector<64x128xf32> to vector<63x128xf32>
    %123 = tpu.concatenate %121, %122 in 0 : vector<1x128xf32>, vector<63x128xf32> -> vector<64x128xf32>
    %cst_49 = arith.constant 0.000000e+00 : f32
    %124 = vector.shape_cast %62 : vector<64x1xi1> to vector<64x1xi1>
    %125 = vector.broadcast %124 : vector<64x1xi1> to vector<64x128xi1>
    %126 = vector.broadcast %cst_49 : f32 to vector<64x128xf32>
    %127 = arith.select %125, %126, %123 : vector<64x128xi1>, vector<64x128xf32>
    %128 = arith.truncf %127 : vector<64x128xf32> to vector<64x128xbf16>
    %c768 = arith.constant 768 : index
    %c0_50 = arith.constant 0 : index
    %129 = vector.load %arg7[%c768, %c0_50] : memref<1152x128xbf16, #tpu.memory_space<vmem>>, vector<128x128xbf16>
    %cst_51 = arith.constant dense<0.000000e+00> : vector<64x128xf32>
    %130 = tpu.matmul %128, %129, %cst_51 {dimension_numbers = #tpu.dot_dimension_numbers<[1], [0], [0], [1], [0, 0, 1, 1], [], []>} : vector<64x128xbf16>, vector<128x128xbf16>, vector<64x128xf32> -> vector<64x128xf32>
    %131 = arith.addf %119, %130 : vector<64x128xf32>
    %132 = arith.truncf %120 : vector<64x128xf32> to vector<64x128xbf16>
    %c896 = arith.constant 896 : index
    %c0_52 = arith.constant 0 : index
    %133 = vector.load %arg7[%c896, %c0_52] : memref<1152x128xbf16, #tpu.memory_space<vmem>>, vector<128x128xbf16>
    %cst_53 = arith.constant dense<0.000000e+00> : vector<64x128xf32>
    %134 = tpu.matmul %132, %133, %cst_53 {dimension_numbers = #tpu.dot_dimension_numbers<[1], [0], [0], [1], [0, 0, 1, 1], [], []>} : vector<64x128xbf16>, vector<128x128xbf16>, vector<64x128xf32> -> vector<64x128xf32>
    %135 = arith.addf %131, %134 : vector<64x128xf32>
    %136 = vector.extract_strided_slice %120 {offsets = [1, 0], sizes = [63, 128], strides = [1, 1]} : vector<64x128xf32> to vector<63x128xf32>
    %137 = vector.extract_strided_slice %120 {offsets = [0, 0], sizes = [1, 128], strides = [1, 1]} : vector<64x128xf32> to vector<1x128xf32>
    %138 = tpu.concatenate %136, %137 in 0 : vector<63x128xf32>, vector<1x128xf32> -> vector<64x128xf32>
    %cst_54 = arith.constant 0.000000e+00 : f32
    %139 = vector.shape_cast %64 : vector<64x1xi1> to vector<64x1xi1>
    %140 = vector.broadcast %139 : vector<64x1xi1> to vector<64x128xi1>
    %141 = vector.broadcast %cst_54 : f32 to vector<64x128xf32>
    %142 = arith.select %140, %141, %138 : vector<64x128xi1>, vector<64x128xf32>
    %143 = arith.truncf %142 : vector<64x128xf32> to vector<64x128xbf16>
    %c1024 = arith.constant 1024 : index
    %c0_55 = arith.constant 0 : index
    %144 = vector.load %arg7[%c1024, %c0_55] : memref<1152x128xbf16, #tpu.memory_space<vmem>>, vector<128x128xbf16>
    %cst_56 = arith.constant dense<0.000000e+00> : vector<64x128xf32>
    %145 = tpu.matmul %143, %144, %cst_56 {dimension_numbers = #tpu.dot_dimension_numbers<[1], [0], [0], [1], [0, 0, 1, 1], [], []>} : vector<64x128xbf16>, vector<128x128xbf16>, vector<64x128xf32> -> vector<64x128xf32>
    %146 = arith.addf %135, %145 : vector<64x128xf32>
    %c0_57 = arith.constant 0 : index
    %c0_58 = arith.constant 0 : index
    %147 = vector.load %arg8[%c0_57, %c0_58] : memref<1x128xf32, #tpu.memory_space<vmem>>, vector<1x128xf32>
    %148 = vector.broadcast %147 : vector<1x128xf32> to vector<64x128xf32>
    %149 = arith.addf %146, %148 : vector<64x128xf32>
    %c0_59 = arith.constant 0 : index
    %c0_60 = arith.constant 0 : index
    %150 = vector.load %arg9[%c0_59, %c0_60] : memref<64x128xf32, #tpu.memory_space<vmem>>, vector<64x128xf32>
    tpu.vector_store %arg9[%c0_59, %c0_60], %149 {strides = array<i32>} : memref<64x128xf32, #tpu.memory_space<vmem>>, vector<64x128xf32>,
    %cst_61 = arith.constant 0.000000e+00 : f32
    %151 = vector.broadcast %cst_61 : f32 to vector<7x128xf32>
    %cst_62 = arith.constant dense<0.000000e+00> : vector<128xf32>
    %152 = vector.multi_reduction <add>, %149, %cst_62 [0] : vector<64x128xf32> to vector<128xf32>
    %153 = vector.shape_cast %152 : vector<128xf32> to vector<1x128xf32>
    %154 = tpu.concatenate %153, %151 in 0 : vector<1x128xf32>, vector<7x128xf32> -> vector<8x128xf32>
    %c0_63 = arith.constant 0 : index
    %c0_64 = arith.constant 0 : index
    %155 = vector.load %arg10[%c0_63, %c0_64] : memref<8x128xf32, #tpu.memory_space<vmem>>, vector<8x128xf32>
    tpu.vector_store %arg10[%c0_63, %c0_64], %154 {strides = array<i32>} : memref<8x128xf32, #tpu.memory_space<vmem>>, vector<8x128xf32>,
    %156 = arith.mulf %149, %149 : vector<64x128xf32>
    %cst_65 = arith.constant dense<0.000000e+00> : vector<128xf32>
    %157 = vector.multi_reduction <add>, %156, %cst_65 [0] : vector<64x128xf32> to vector<128xf32>
    %158 = vector.shape_cast %157 : vector<128xf32> to vector<1x128xf32>
    %159 = tpu.concatenate %158, %151 in 0 : vector<1x128xf32>, vector<7x128xf32> -> vector<8x128xf32>
    %c0_66 = arith.constant 0 : index
    %c0_67 = arith.constant 0 : index
    %160 = vector.load %arg11[%c0_66, %c0_67] : memref<8x128xf32, #tpu.memory_space<vmem>>, vector<8x128xf32>
    tpu.vector_store %arg11[%c0_66, %c0_67], %159 {strides = array<i32>} : memref<8x128xf32, #tpu.memory_space<vmem>>, vector<8x128xf32>,
    return
  }
  func.func @transform_0(%arg0: i32, %arg1: i32) -> (i32, i32) {
    %c0_i32 = arith.constant 0 : i32
    %c0_i32_0 = arith.constant 0 : i32
    return %arg0, %c0_i32 : i32, i32
  }
  func.func @transform_1(%arg0: i32, %arg1: i32) -> (i32, i32) {
    %c0_i32 = arith.constant 0 : i32
    %c0_i32_0 = arith.constant 0 : i32
    %c0_i32_1 = arith.constant 0 : i32
    return %c0_i32, %c0_i32_0 : i32, i32
  }
  func.func @transform_2(%arg0: i32, %arg1: i32) -> (i32, i32) {
    %c0_i32 = arith.constant 0 : i32
    %c0_i32_0 = arith.constant 0 : i32
    %c0_i32_1 = arith.constant 0 : i32
    return %c0_i32, %c0_i32_0 : i32, i32
  }
  func.func @transform_3(%arg0: i32, %arg1: i32) -> (i32, i32) {
    %c0_i32 = arith.constant 0 : i32
    %c0_i32_0 = arith.constant 0 : i32
    %c0_i32_1 = arith.constant 0 : i32
    return %c0_i32, %c0_i32_0 : i32, i32
  }
  func.func @transform_4(%arg0: i32, %arg1: i32) -> (i32, i32) {
    %c0_i32 = arith.constant 0 : i32
    %c0_i32_0 = arith.constant 0 : i32
    %c0_i32_1 = arith.constant 0 : i32
    return %c0_i32, %c0_i32_0 : i32, i32
  }
  func.func @transform_5(%arg0: i32, %arg1: i32) -> (i32, i32) {
    %c0_i32 = arith.constant 0 : i32
    %c0_i32_0 = arith.constant 0 : i32
    %c0_i32_1 = arith.constant 0 : i32
    return %c0_i32, %c0_i32_0 : i32, i32
  }
  func.func @transform_6(%arg0: i32, %arg1: i32) -> (i32, i32) {
    %c0_i32 = arith.constant 0 : i32
    %c0_i32_0 = arith.constant 0 : i32
    %c0_i32_1 = arith.constant 0 : i32
    return %c0_i32, %c0_i32_0 : i32, i32
  }
  func.func @transform_7(%arg0: i32, %arg1: i32) -> (i32, i32) {
    %c4_i32 = arith.constant 4 : i32
    %0 = arith.muli %arg0, %c4_i32 : i32
    %1 = arith.addi %0, %arg1 : i32
    %c0_i32 = arith.constant 0 : i32
    %c0_i32_0 = arith.constant 0 : i32
    return %1, %c0_i32 : i32, i32
  }
  func.func @transform_8(%arg0: i32, %arg1: i32) -> (i32, i32) {
    %c4_i32 = arith.constant 4 : i32
    %0 = arith.muli %arg0, %c4_i32 : i32
    %1 = arith.addi %0, %arg1 : i32
    %c0_i32 = arith.constant 0 : i32
    %c0_i32_0 = arith.constant 0 : i32
    return %1, %c0_i32 : i32, i32
  }
  func.func @transform_9(%arg0: i32, %arg1: i32) -> (i32, i32) {
    %c4_i32 = arith.constant 4 : i32
    %0 = arith.muli %arg0, %c4_i32 : i32
    %1 = arith.addi %0, %arg1 : i32
    %c0_i32 = arith.constant 0 : i32
    %c0_i32_0 = arith.constant 0 : i32
    return %1, %c0_i32 : i32, i32
  }
}

module attributes {stable_mosaic.version = 11 : i64} {
  func.func @bn_relu_conv1x1_stats_kernel(%arg0: i32, %arg1: memref<64x128xf32, #tpu.memory_space<vmem>>, %arg2: memref<64x128xf32, #tpu.memory_space<vmem>>, %arg3: memref<64x128xf32, #tpu.memory_space<vmem>>, %arg4: memref<1x128xf32, #tpu.memory_space<vmem>>, %arg5: memref<1x128xf32, #tpu.memory_space<vmem>>, %arg6: memref<128x256xbf16, #tpu.memory_space<vmem>>, %arg7: memref<1x256xf32, #tpu.memory_space<vmem>>, %arg8: memref<64x256xf32, #tpu.memory_space<vmem>>, %arg9: memref<8x256xf32, #tpu.memory_space<vmem>>, %arg10: memref<8x256xf32, #tpu.memory_space<vmem>>) attributes {dimension_semantics = [#tpu.dimension_semantics<parallel>], iteration_bounds = array<i64: 8>, scalar_prefetch = 0 : i64, scratch_operands = 0 : i64, tpu.core_type = #tpu.core_type<tc>, window_params = [{transform_indices = @transform_0, window_bounds = array<i64: 64, 128>}, {pipeline_mode = #tpu.pipeline_mode<synchronous>, transform_indices = @transform_1, window_bounds = array<i64: 64, 128>}, {pipeline_mode = #tpu.pipeline_mode<synchronous>, transform_indices = @transform_2, window_bounds = array<i64: 64, 128>}, {pipeline_mode = #tpu.pipeline_mode<synchronous>, transform_indices = @transform_3, window_bounds = array<i64: 1, 128>}, {pipeline_mode = #tpu.pipeline_mode<synchronous>, transform_indices = @transform_4, window_bounds = array<i64: 1, 128>}, {pipeline_mode = #tpu.pipeline_mode<synchronous>, transform_indices = @transform_5, window_bounds = array<i64: 128, 256>}, {pipeline_mode = #tpu.pipeline_mode<synchronous>, transform_indices = @transform_6, window_bounds = array<i64: 1, 256>}, {transform_indices = @transform_7, window_bounds = array<i64: 64, 256>}, {transform_indices = @transform_8, window_bounds = array<i64: 8, 256>}, {transform_indices = @transform_9, window_bounds = array<i64: 8, 256>}]} {
    %c0 = arith.constant 0 : index
    %c0_0 = arith.constant 0 : index
    %0 = vector.load %arg2[%c0, %c0_0] : memref<64x128xf32, #tpu.memory_space<vmem>>, vector<64x128xf32>
    %cst = arith.constant dense<0.000000e+00> : vector<128xf32>
    %1 = vector.multi_reduction <add>, %0, %cst [0] : vector<64x128xf32> to vector<128xf32>
    %2 = vector.shape_cast %1 : vector<128xf32> to vector<1x128xf32>
    %cst_1 = arith.constant 0.001953125 : f32
    %3 = vector.broadcast %cst_1 : f32 to vector<1x128xf32>
    %4 = arith.mulf %2, %3 : vector<1x128xf32>
    %c0_2 = arith.constant 0 : index
    %c0_3 = arith.constant 0 : index
    %5 = vector.load %arg3[%c0_2, %c0_3] : memref<64x128xf32, #tpu.memory_space<vmem>>, vector<64x128xf32>
    %cst_4 = arith.constant dense<0.000000e+00> : vector<128xf32>
    %6 = vector.multi_reduction <add>, %5, %cst_4 [0] : vector<64x128xf32> to vector<128xf32>
    %7 = vector.shape_cast %6 : vector<128xf32> to vector<1x128xf32>
    %cst_5 = arith.constant 0.001953125 : f32
    %8 = vector.broadcast %cst_5 : f32 to vector<1x128xf32>
    %9 = arith.mulf %7, %8 : vector<1x128xf32>
    %10 = arith.mulf %4, %4 : vector<1x128xf32>
    %11 = arith.subf %9, %10 : vector<1x128xf32>
    %cst_6 = arith.constant 0.000000e+00 : f32
    %12 = vector.broadcast %cst_6 : f32 to vector<1x128xf32>
    %13 = arith.maximumf %11, %12 : vector<1x128xf32>
    %c0_7 = arith.constant 0 : index
    %c0_8 = arith.constant 0 : index
    %14 = vector.load %arg4[%c0_7, %c0_8] : memref<1x128xf32, #tpu.memory_space<vmem>>, vector<1x128xf32>
    %cst_9 = arith.constant 9.99999974E-6 : f32
    %15 = vector.broadcast %cst_9 : f32 to vector<1x128xf32>
    %16 = arith.addf %13, %15 : vector<1x128xf32>
    %17 = math.rsqrt %16 : vector<1x128xf32>
    %18 = arith.mulf %14, %17 : vector<1x128xf32>
    %c0_10 = arith.constant 0 : index
    %c0_11 = arith.constant 0 : index
    %19 = vector.load %arg5[%c0_10, %c0_11] : memref<1x128xf32, #tpu.memory_space<vmem>>, vector<1x128xf32>
    %20 = arith.mulf %4, %18 : vector<1x128xf32>
    %21 = arith.subf %19, %20 : vector<1x128xf32>
    %c0_12 = arith.constant 0 : index
    %c0_13 = arith.constant 0 : index
    %22 = vector.load %arg1[%c0_12, %c0_13] : memref<64x128xf32, #tpu.memory_space<vmem>>, vector<64x128xf32>
    %23 = vector.broadcast %18 : vector<1x128xf32> to vector<64x128xf32>
    %24 = arith.mulf %22, %23 : vector<64x128xf32>
    %25 = vector.broadcast %21 : vector<1x128xf32> to vector<64x128xf32>
    %26 = arith.addf %24, %25 : vector<64x128xf32>
    %cst_14 = arith.constant 0.000000e+00 : f32
    %27 = vector.broadcast %cst_14 : f32 to vector<64x128xf32>
    %28 = arith.maximumf %26, %27 : vector<64x128xf32>
    %29 = arith.truncf %28 : vector<64x128xf32> to vector<64x128xbf16>
    %c0_15 = arith.constant 0 : index
    %c0_16 = arith.constant 0 : index
    %30 = vector.load %arg6[%c0_15, %c0_16] : memref<128x256xbf16, #tpu.memory_space<vmem>>, vector<128x256xbf16>
    %cst_17 = arith.constant dense<0.000000e+00> : vector<64x256xf32>
    %31 = tpu.matmul %29, %30, %cst_17 {dimension_numbers = #tpu.dot_dimension_numbers<[1], [0], [0], [1], [0, 0, 1, 1], [], []>} : vector<64x128xbf16>, vector<128x256xbf16>, vector<64x256xf32> -> vector<64x256xf32>
    %c0_18 = arith.constant 0 : index
    %c0_19 = arith.constant 0 : index
    %32 = vector.load %arg7[%c0_18, %c0_19] : memref<1x256xf32, #tpu.memory_space<vmem>>, vector<1x256xf32>
    %33 = vector.broadcast %32 : vector<1x256xf32> to vector<64x256xf32>
    %34 = arith.addf %31, %33 : vector<64x256xf32>
    %c0_20 = arith.constant 0 : index
    %c0_21 = arith.constant 0 : index
    %35 = vector.load %arg8[%c0_20, %c0_21] : memref<64x256xf32, #tpu.memory_space<vmem>>, vector<64x256xf32>
    tpu.vector_store %arg8[%c0_20, %c0_21], %34 {strides = array<i32>} : memref<64x256xf32, #tpu.memory_space<vmem>>, vector<64x256xf32>,
    %cst_22 = arith.constant 0.000000e+00 : f32
    %36 = vector.broadcast %cst_22 : f32 to vector<7x256xf32>
    %cst_23 = arith.constant dense<0.000000e+00> : vector<256xf32>
    %37 = vector.multi_reduction <add>, %34, %cst_23 [0] : vector<64x256xf32> to vector<256xf32>
    %38 = vector.shape_cast %37 : vector<256xf32> to vector<1x256xf32>
    %39 = tpu.concatenate %38, %36 in 0 : vector<1x256xf32>, vector<7x256xf32> -> vector<8x256xf32>
    %c0_24 = arith.constant 0 : index
    %c0_25 = arith.constant 0 : index
    %40 = vector.load %arg9[%c0_24, %c0_25] : memref<8x256xf32, #tpu.memory_space<vmem>>, vector<8x256xf32>
    tpu.vector_store %arg9[%c0_24, %c0_25], %39 {strides = array<i32>} : memref<8x256xf32, #tpu.memory_space<vmem>>, vector<8x256xf32>,
    %41 = arith.mulf %34, %34 : vector<64x256xf32>
    %cst_26 = arith.constant dense<0.000000e+00> : vector<256xf32>
    %42 = vector.multi_reduction <add>, %41, %cst_26 [0] : vector<64x256xf32> to vector<256xf32>
    %43 = vector.shape_cast %42 : vector<256xf32> to vector<1x256xf32>
    %44 = tpu.concatenate %43, %36 in 0 : vector<1x256xf32>, vector<7x256xf32> -> vector<8x256xf32>
    %c0_27 = arith.constant 0 : index
    %c0_28 = arith.constant 0 : index
    %45 = vector.load %arg10[%c0_27, %c0_28] : memref<8x256xf32, #tpu.memory_space<vmem>>, vector<8x256xf32>
    tpu.vector_store %arg10[%c0_27, %c0_28], %44 {strides = array<i32>} : memref<8x256xf32, #tpu.memory_space<vmem>>, vector<8x256xf32>,
    return
  }
  func.func @transform_0(%arg0: i32) -> (i32, i32) {
    %c0_i32 = arith.constant 0 : i32
    %c0_i32_0 = arith.constant 0 : i32
    return %arg0, %c0_i32 : i32, i32
  }
  func.func @transform_1(%arg0: i32) -> (i32, i32) {
    %c0_i32 = arith.constant 0 : i32
    %c0_i32_0 = arith.constant 0 : i32
    %c0_i32_1 = arith.constant 0 : i32
    return %c0_i32, %c0_i32_0 : i32, i32
  }
  func.func @transform_2(%arg0: i32) -> (i32, i32) {
    %c0_i32 = arith.constant 0 : i32
    %c0_i32_0 = arith.constant 0 : i32
    %c0_i32_1 = arith.constant 0 : i32
    return %c0_i32, %c0_i32_0 : i32, i32
  }
  func.func @transform_3(%arg0: i32) -> (i32, i32) {
    %c0_i32 = arith.constant 0 : i32
    %c0_i32_0 = arith.constant 0 : i32
    %c0_i32_1 = arith.constant 0 : i32
    return %c0_i32, %c0_i32_0 : i32, i32
  }
  func.func @transform_4(%arg0: i32) -> (i32, i32) {
    %c0_i32 = arith.constant 0 : i32
    %c0_i32_0 = arith.constant 0 : i32
    %c0_i32_1 = arith.constant 0 : i32
    return %c0_i32, %c0_i32_0 : i32, i32
  }
  func.func @transform_5(%arg0: i32) -> (i32, i32) {
    %c0_i32 = arith.constant 0 : i32
    %c0_i32_0 = arith.constant 0 : i32
    %c0_i32_1 = arith.constant 0 : i32
    return %c0_i32, %c0_i32_0 : i32, i32
  }
  func.func @transform_6(%arg0: i32) -> (i32, i32) {
    %c0_i32 = arith.constant 0 : i32
    %c0_i32_0 = arith.constant 0 : i32
    %c0_i32_1 = arith.constant 0 : i32
    return %c0_i32, %c0_i32_0 : i32, i32
  }
  func.func @transform_7(%arg0: i32) -> (i32, i32) {
    %c0_i32 = arith.constant 0 : i32
    %c0_i32_0 = arith.constant 0 : i32
    return %arg0, %c0_i32 : i32, i32
  }
  func.func @transform_8(%arg0: i32) -> (i32, i32) {
    %c0_i32 = arith.constant 0 : i32
    %c0_i32_0 = arith.constant 0 : i32
    return %arg0, %c0_i32 : i32, i32
  }
  func.func @transform_9(%arg0: i32) -> (i32, i32) {
    %c0_i32 = arith.constant 0 : i32
    %c0_i32_0 = arith.constant 0 : i32
    return %arg0, %c0_i32 : i32, i32
  }
}

module attributes {stable_mosaic.version = 11 : i64} {
  func.func @bn_residual_relu_kernel(%arg0: i32, %arg1: memref<64x256xf32, #tpu.memory_space<vmem>>, %arg2: memref<64x256xf32, #tpu.memory_space<vmem>>, %arg3: memref<64x256xf32, #tpu.memory_space<vmem>>, %arg4: memref<1x256xf32, #tpu.memory_space<vmem>>, %arg5: memref<1x256xf32, #tpu.memory_space<vmem>>, %arg6: memref<64x64xf32, #tpu.memory_space<vmem>>, %arg7: memref<64x256xf32, #tpu.memory_space<vmem>>, %arg8: memref<64x256xf32, #tpu.memory_space<vmem>>) attributes {dimension_semantics = [#tpu.dimension_semantics<parallel>], iteration_bounds = array<i64: 8>, scalar_prefetch = 0 : i64, scratch_operands = 0 : i64, tpu.core_type = #tpu.core_type<tc>, window_params = [{transform_indices = @transform_0, window_bounds = array<i64: 64, 256>}, {pipeline_mode = #tpu.pipeline_mode<synchronous>, transform_indices = @transform_1, window_bounds = array<i64: 64, 256>}, {pipeline_mode = #tpu.pipeline_mode<synchronous>, transform_indices = @transform_2, window_bounds = array<i64: 64, 256>}, {pipeline_mode = #tpu.pipeline_mode<synchronous>, transform_indices = @transform_3, window_bounds = array<i64: 1, 256>}, {pipeline_mode = #tpu.pipeline_mode<synchronous>, transform_indices = @transform_4, window_bounds = array<i64: 1, 256>}, {transform_indices = @transform_5, window_bounds = array<i64: 64, 64>}, {pipeline_mode = #tpu.pipeline_mode<synchronous>, transform_indices = @transform_6, window_bounds = array<i64: 64, 256>}, {transform_indices = @transform_7, window_bounds = array<i64: 64, 256>}]} {
    %c0 = arith.constant 0 : index
    %c0_0 = arith.constant 0 : index
    %0 = vector.load %arg2[%c0, %c0_0] : memref<64x256xf32, #tpu.memory_space<vmem>>, vector<64x256xf32>
    %cst = arith.constant dense<0.000000e+00> : vector<256xf32>
    %1 = vector.multi_reduction <add>, %0, %cst [0] : vector<64x256xf32> to vector<256xf32>
    %2 = vector.shape_cast %1 : vector<256xf32> to vector<1x256xf32>
    %cst_1 = arith.constant 0.001953125 : f32
    %3 = vector.broadcast %cst_1 : f32 to vector<1x256xf32>
    %4 = arith.mulf %2, %3 : vector<1x256xf32>
    %c0_2 = arith.constant 0 : index
    %c0_3 = arith.constant 0 : index
    %5 = vector.load %arg3[%c0_2, %c0_3] : memref<64x256xf32, #tpu.memory_space<vmem>>, vector<64x256xf32>
    %cst_4 = arith.constant dense<0.000000e+00> : vector<256xf32>
    %6 = vector.multi_reduction <add>, %5, %cst_4 [0] : vector<64x256xf32> to vector<256xf32>
    %7 = vector.shape_cast %6 : vector<256xf32> to vector<1x256xf32>
    %cst_5 = arith.constant 0.001953125 : f32
    %8 = vector.broadcast %cst_5 : f32 to vector<1x256xf32>
    %9 = arith.mulf %7, %8 : vector<1x256xf32>
    %10 = arith.mulf %4, %4 : vector<1x256xf32>
    %11 = arith.subf %9, %10 : vector<1x256xf32>
    %cst_6 = arith.constant 0.000000e+00 : f32
    %12 = vector.broadcast %cst_6 : f32 to vector<1x256xf32>
    %13 = arith.maximumf %11, %12 : vector<1x256xf32>
    %c0_7 = arith.constant 0 : index
    %c0_8 = arith.constant 0 : index
    %14 = vector.load %arg4[%c0_7, %c0_8] : memref<1x256xf32, #tpu.memory_space<vmem>>, vector<1x256xf32>
    %cst_9 = arith.constant 9.99999974E-6 : f32
    %15 = vector.broadcast %cst_9 : f32 to vector<1x256xf32>
    %16 = arith.addf %13, %15 : vector<1x256xf32>
    %17 = math.rsqrt %16 : vector<1x256xf32>
    %18 = arith.mulf %14, %17 : vector<1x256xf32>
    %c0_10 = arith.constant 0 : index
    %c0_11 = arith.constant 0 : index
    %19 = vector.load %arg5[%c0_10, %c0_11] : memref<1x256xf32, #tpu.memory_space<vmem>>, vector<1x256xf32>
    %20 = arith.mulf %4, %18 : vector<1x256xf32>
    %21 = arith.subf %19, %20 : vector<1x256xf32>
    %c0_12 = arith.constant 0 : index
    %c0_13 = arith.constant 0 : index
    %22 = vector.load %arg6[%c0_12, %c0_13] : memref<64x64xf32, #tpu.memory_space<vmem>>, vector<64x64xf32>
    %c0_14 = arith.constant 0 : index
    %c0_15 = arith.constant 0 : index
    %23 = vector.load %arg7[%c0_14, %c0_15] : memref<64x256xf32, #tpu.memory_space<vmem>>, vector<64x256xf32>
    %cst_16 = arith.constant dense<0.000000e+00> : vector<64x256xf32>
    %24 = tpu.matmul %22, %23, %cst_16 {dimension_numbers = #tpu.dot_dimension_numbers<[1], [0], [0], [1], [0, 0, 1, 1], [], []>} : vector<64x64xf32>, vector<64x256xf32>, vector<64x256xf32> -> vector<64x256xf32>
    %c0_17 = arith.constant 0 : index
    %c0_18 = arith.constant 0 : index
    %25 = vector.load %arg1[%c0_17, %c0_18] : memref<64x256xf32, #tpu.memory_space<vmem>>, vector<64x256xf32>
    %26 = vector.broadcast %18 : vector<1x256xf32> to vector<64x256xf32>
    %27 = arith.mulf %25, %26 : vector<64x256xf32>
    %28 = vector.broadcast %21 : vector<1x256xf32> to vector<64x256xf32>
    %29 = arith.addf %27, %28 : vector<64x256xf32>
    %30 = arith.addf %29, %24 : vector<64x256xf32>
    %cst_19 = arith.constant 0.000000e+00 : f32
    %31 = vector.broadcast %cst_19 : f32 to vector<64x256xf32>
    %32 = arith.maximumf %30, %31 : vector<64x256xf32>
    %c0_20 = arith.constant 0 : index
    %c0_21 = arith.constant 0 : index
    %33 = vector.load %arg8[%c0_20, %c0_21] : memref<64x256xf32, #tpu.memory_space<vmem>>, vector<64x256xf32>
    tpu.vector_store %arg8[%c0_20, %c0_21], %32 {strides = array<i32>} : memref<64x256xf32, #tpu.memory_space<vmem>>, vector<64x256xf32>,
    return
  }
  func.func @transform_0(%arg0: i32) -> (i32, i32) {
    %c0_i32 = arith.constant 0 : i32
    %c0_i32_0 = arith.constant 0 : i32
    return %arg0, %c0_i32 : i32, i32
  }
  func.func @transform_1(%arg0: i32) -> (i32, i32) {
    %c0_i32 = arith.constant 0 : i32
    %c0_i32_0 = arith.constant 0 : i32
    %c0_i32_1 = arith.constant 0 : i32
    return %c0_i32, %c0_i32_0 : i32, i32
  }
  func.func @transform_2(%arg0: i32) -> (i32, i32) {
    %c0_i32 = arith.constant 0 : i32
    %c0_i32_0 = arith.constant 0 : i32
    %c0_i32_1 = arith.constant 0 : i32
    return %c0_i32, %c0_i32_0 : i32, i32
  }
  func.func @transform_3(%arg0: i32) -> (i32, i32) {
    %c0_i32 = arith.constant 0 : i32
    %c0_i32_0 = arith.constant 0 : i32
    %c0_i32_1 = arith.constant 0 : i32
    return %c0_i32, %c0_i32_0 : i32, i32
  }
  func.func @transform_4(%arg0: i32) -> (i32, i32) {
    %c0_i32 = arith.constant 0 : i32
    %c0_i32_0 = arith.constant 0 : i32
    %c0_i32_1 = arith.constant 0 : i32
    return %c0_i32, %c0_i32_0 : i32, i32
  }
  func.func @transform_5(%arg0: i32) -> (i32, i32) {
    %c0_i32 = arith.constant 0 : i32
    %c0_i32_0 = arith.constant 0 : i32
    return %arg0, %c0_i32 : i32, i32
  }
  func.func @transform_6(%arg0: i32) -> (i32, i32) {
    %c0_i32 = arith.constant 0 : i32
    %c0_i32_0 = arith.constant 0 : i32
    %c0_i32_1 = arith.constant 0 : i32
    return %c0_i32, %c0_i32_0 : i32, i32
  }
  func.func @transform_7(%arg0: i32) -> (i32, i32) {
    %c0_i32 = arith.constant 0 : i32
    %c0_i32_0 = arith.constant 0 : i32
    return %arg0, %c0_i32 : i32, i32
  }
}

</mosaic_0001>

<llo_original>
// kernel: tile.9
$region0: #{tile.9}
  %s0 = inlined_call_operand.vmem [shape: f32[64,4,64], index: 0, kind: input, shape index: {}]
  %s1 = inlined_call_operand.vmem [shape: f32[64,256], index: 1, kind: output, shape index: {}]
  $region1: #{tile.9} parent=0
    #allocation0 [shape = 'u8[262144]{0}', space=vmem, size = 0x40000, scoped, tag = 'scoped mem for input reshape']
    %s3 = sshllo.u32 0, 4
    %s4 = smul.addr 4, 63
    %s5 = scalar_lea.vmem %s0, %s4
    %v6 = vld [vmem:[%s5] sm:%s3]
    %s7 = scalar_lea.vmem [#allocation0], 504
    %8 = vst [vmem:[%s7] sm:%s3] %v6
    %s9 = smul.addr 4, 62
    %s10 = scalar_lea.vmem %s0, %s9
    %v11 = vld [vmem:[%s10] sm:%s3]
    %s12 = scalar_lea.vmem [#allocation0], 496
    %13 = vst [vmem:[%s12] sm:%s3] %v11
    %s14 = smul.addr 4, 61
    %s15 = scalar_lea.vmem %s0, %s14
    %v16 = vld [vmem:[%s15] sm:%s3]
    %s17 = scalar_lea.vmem [#allocation0], 488
    %18 = vst [vmem:[%s17] sm:%s3] %v16
    %s19 = smul.addr 4, 60
    %s20 = scalar_lea.vmem %s0, %s19
    %v21 = vld [vmem:[%s20] sm:%s3]
    %s22 = scalar_lea.vmem [#allocation0], 480
    %23 = vst [vmem:[%s22] sm:%s3] %v21
    %s24 = smul.addr 4, 59
    %s25 = scalar_lea.vmem %s0, %s24
    %v26 = vld [vmem:[%s25] sm:%s3]
    %s27 = scalar_lea.vmem [#allocation0], 472
    %28 = vst [vmem:[%s27] sm:%s3] %v26
    %s29 = smul.addr 4, 58
    %s30 = scalar_lea.vmem %s0, %s29
    %v31 = vld [vmem:[%s30] sm:%s3]
    %s32 = scalar_lea.vmem [#allocation0], 464
    %33 = vst [vmem:[%s32] sm:%s3] %v31
    %s34 = smul.addr 4, 57
    %s35 = scalar_lea.vmem %s0, %s34
    %v36 = vld [vmem:[%s35] sm:%s3]
    %s37 = scalar_lea.vmem [#allocation0], 456
    %38 = vst [vmem:[%s37] sm:%s3] %v36
    %s39 = smul.addr 4, 56
    %s40 = scalar_lea.vmem %s0, %s39
    %v41 = vld [vmem:[%s40] sm:%s3]
    %s42 = scalar_lea.vmem [#allocation0], 448
    %43 = vst [vmem:[%s42] sm:%s3] %v41
    %s44 = smul.addr 4, 55
    %s45 = scalar_lea.vmem %s0, %s44
    %v46 = vld [vmem:[%s45] sm:%s3]
    %s47 = scalar_lea.vmem [#allocation0], 440
    %48 = vst [vmem:[%s47] sm:%s3] %v46
    %s49 = smul.addr 4, 54
    %s50 = scalar_lea.vmem %s0, %s49
    %v51 = vld [vmem:[%s50] sm:%s3]
    %s52 = scalar_lea.vmem [#allocation0], 432
    %53 = vst [vmem:[%s52] sm:%s3] %v51
    %s54 = smul.addr 4, 53
    %s55 = scalar_lea.vmem %s0, %s54
    %v56 = vld [vmem:[%s55] sm:%s3]
    %s57 = scalar_lea.vmem [#allocation0], 424
    %58 = vst [vmem:[%s57] sm:%s3] %v56
    %s59 = smul.addr 4, 52
    %s60 = scalar_lea.vmem %s0, %s59
    %v61 = vld [vmem:[%s60] sm:%s3]
    %s62 = scalar_lea.vmem [#allocation0], 416
    %63 = vst [vmem:[%s62] sm:%s3] %v61
    %s64 = smul.addr 4, 51
    %s65 = scalar_lea.vmem %s0, %s64
    %v66 = vld [vmem:[%s65] sm:%s3]
    %s67 = scalar_lea.vmem [#allocation0], 408
    %68 = vst [vmem:[%s67] sm:%s3] %v66
    %s69 = smul.addr 4, 50
    %s70 = scalar_lea.vmem %s0, %s69
    %v71 = vld [vmem:[%s70] sm:%s3]
    %s72 = scalar_lea.vmem [#allocation0], 400
    %73 = vst [vmem:[%s72] sm:%s3] %v71
    %s74 = smul.addr 4, 49
    %s75 = scalar_lea.vmem %s0, %s74
    %v76 = vld [vmem:[%s75] sm:%s3]
    %s77 = scalar_lea.vmem [#allocation0], 392
    %78 = vst [vmem:[%s77] sm:%s3] %v76
    %s79 = smul.addr 4, 48
    %s80 = scalar_lea.vmem %s0, %s79
    %v81 = vld [vmem:[%s80] sm:%s3]
    %s82 = scalar_lea.vmem [#allocation0], 384
    %83 = vst [vmem:[%s82] sm:%s3] %v81
    %s84 = smul.addr 4, 47
    %s85 = scalar_lea.vmem %s0, %s84
    %v86 = vld [vmem:[%s85] sm:%s3]
    %s87 = scalar_lea.vmem [#allocation0], 376
    %88 = vst [vmem:[%s87] sm:%s3] %v86
    %s89 = smul.addr 4, 46
    %s90 = scalar_lea.vmem %s0, %s89
    %v91 = vld [vmem:[%s90] sm:%s3]
    %s92 = scalar_lea.vmem [#allocation0], 368
    %93 = vst [vmem:[%s92] sm:%s3] %v91
    %s94 = smul.addr 4, 45
    %s95 = scalar_lea.vmem %s0, %s94
    %v96 = vld [vmem:[%s95] sm:%s3]
    %s97 = scalar_lea.vmem [#allocation0], 360
    %98 = vst [vmem:[%s97] sm:%s3] %v96
    %s99 = smul.addr 4, 44
    %s100 = scalar_lea.vmem %s0, %s99
    %v101 = vld [vmem:[%s100] sm:%s3]
    %s102 = scalar_lea.vmem [#allocation0], 352
    %103 = vst [vmem:[%s102] sm:%s3] %v101
    %s104 = smul.addr 4, 43
    %s105 = scalar_lea.vmem %s0, %s104
    %v106 = vld [vmem:[%s105] sm:%s3]
    %s107 = scalar_lea.vmem [#allocation0], 344
    %108 = vst [vmem:[%s107] sm:%s3] %v106
    %s109 = smul.addr 4, 42
    %s110 = scalar_lea.vmem %s0, %s109
    %v111 = vld [vmem:[%s110] sm:%s3]
    %s112 = scalar_lea.vmem [#allocation0], 336
    %113 = vst [vmem:[%s112] sm:%s3] %v111
    %s114 = smul.addr 4, 41
    %s115 = scalar_lea.vmem %s0, %s114
    %v116 = vld [vmem:[%s115] sm:%s3]
    %s117 = scalar_lea.vmem [#allocation0], 328
    %118 = vst [vmem:[%s117] sm:%s3] %v116
    %s119 = smul.addr 4, 40
    %s120 = scalar_lea.vmem %s0, %s119
    %v121 = vld [vmem:[%s120] sm:%s3]
    %s122 = scalar_lea.vmem [#allocation0], 320
    %123 = vst [vmem:[%s122] sm:%s3] %v121
    %s124 = smul.addr 4, 39
    %s125 = scalar_lea.vmem %s0, %s124
    %v126 = vld [vmem:[%s125] sm:%s3]
    %s127 = scalar_lea.vmem [#allocation0], 312
    %128 = vst [vmem:[%s127] sm:%s3] %v126
    %s129 = smul.addr 4, 38
    %s130 = scalar_lea.vmem %s0, %s129
    %v131 = vld [vmem:[%s130] sm:%s3]
    %s132 = scalar_lea.vmem [#allocation0], 304
    %133 = vst [vmem:[%s132] sm:%s3] %v131
    %s134 = smul.addr 4, 37
    %s135 = scalar_lea.vmem %s0, %s134
    %v136 = vld [vmem:[%s135] sm:%s3]
    %s137 = scalar_lea.vmem [#allocation0], 296
    %138 = vst [vmem:[%s137] sm:%s3] %v136
    %s139 = smul.addr 4, 36
    %s140 = scalar_lea.vmem %s0, %s139
    %v141 = vld [vmem:[%s140] sm:%s3]
    %s142 = scalar_lea.vmem [#allocation0], 288
    %143 = vst [vmem:[%s142] sm:%s3] %v141
    %s144 = smul.addr 4, 35
    %s145 = scalar_lea.vmem %s0, %s144
    %v146 = vld [vmem:[%s145] sm:%s3]
    %s147 = scalar_lea.vmem [#allocation0], 280
    %148 = vst [vmem:[%s147] sm:%s3] %v146
    %s149 = smul.addr 4, 34
    %s150 = scalar_lea.vmem %s0, %s149
    %v151 = vld [vmem:[%s150] sm:%s3]
    %s152 = scalar_lea.vmem [#allocation0], 272
    %153 = vst [vmem:[%s152] sm:%s3] %v151
    %s154 = smul.addr 4, 33
    %s155 = scalar_lea.vmem %s0, %s154
    %v156 = vld [vmem:[%s155] sm:%s3]
    %s157 = scalar_lea.vmem [#allocation0], 264
    %158 = vst [vmem:[%s157] sm:%s3] %v156
    %s159 = smul.addr 4, 32
    %s160 = scalar_lea.vmem %s0, %s159
    %v161 = vld [vmem:[%s160] sm:%s3]
    %s162 = scalar_lea.vmem [#allocation0], 256
    %163 = vst [vmem:[%s162] sm:%s3] %v161
    %s164 = smul.addr 4, 31
    %s165 = scalar_lea.vmem %s0, %s164
    %v166 = vld [vmem:[%s165] sm:%s3]
    %s167 = scalar_lea.vmem [#allocation0], 248
    %168 = vst [vmem:[%s167] sm:%s3] %v166
    %s169 = smul.addr 4, 30
    %s170 = scalar_lea.vmem %s0, %s169
    %v171 = vld [vmem:[%s170] sm:%s3]
    %s172 = scalar_lea.vmem [#allocation0], 240
    %173 = vst [vmem:[%s172] sm:%s3] %v171
    %s174 = smul.addr 4, 29
    %s175 = scalar_lea.vmem %s0, %s174
    %v176 = vld [vmem:[%s175] sm:%s3]
    %s177 = scalar_lea.vmem [#allocation0], 232
    %178 = vst [vmem:[%s177] sm:%s3] %v176
    %s179 = smul.addr 4, 28
    %s180 = scalar_lea.vmem %s0, %s179
    %v181 = vld [vmem:[%s180] sm:%s3]
    %s182 = scalar_lea.vmem [#allocation0], 224
    %183 = vst [vmem:[%s182] sm:%s3] %v181
    %s184 = smul.addr 4, 27
    %s185 = scalar_lea.vmem %s0, %s184
    %v186 = vld [vmem:[%s185] sm:%s3]
    %s187 = scalar_lea.vmem [#allocation0], 216
    %188 = vst [vmem:[%s187] sm:%s3] %v186
    %s189 = smul.addr 4, 26
    %s190 = scalar_lea.vmem %s0, %s189
    %v191 = vld [vmem:[%s190] sm:%s3]
    %s192 = scalar_lea.vmem [#allocation0], 208
    %193 = vst [vmem:[%s192] sm:%s3] %v191
    %s194 = smul.addr 4, 25
    %s195 = scalar_lea.vmem %s0, %s194
    %v196 = vld [vmem:[%s195] sm:%s3]
    %s197 = scalar_lea.vmem [#allocation0], 200
    %198 = vst [vmem:[%s197] sm:%s3] %v196
    %s199 = smul.addr 4, 24
    %s200 = scalar_lea.vmem %s0, %s199
    %v201 = vld [vmem:[%s200] sm:%s3]
    %s202 = scalar_lea.vmem [#allocation0], 192
    %203 = vst [vmem:[%s202] sm:%s3] %v201
    %s204 = smul.addr 4, 23
    %s205 = scalar_lea.vmem %s0, %s204
    %v206 = vld [vmem:[%s205] sm:%s3]
    %s207 = scalar_lea.vmem [#allocation0], 184
    %208 = vst [vmem:[%s207] sm:%s3] %v206
    %s209 = smul.addr 4, 22
    %s210 = scalar_lea.vmem %s0, %s209
    %v211 = vld [vmem:[%s210] sm:%s3]
    %s212 = scalar_lea.vmem [#allocation0], 176
    %213 = vst [vmem:[%s212] sm:%s3] %v211
    %s214 = smul.addr 4, 21
    %s215 = scalar_lea.vmem %s0, %s214
    %v216 = vld [vmem:[%s215] sm:%s3]
    %s217 = scalar_lea.vmem [#allocation0], 168
    %218 = vst [vmem:[%s217] sm:%s3] %v216
    %s219 = smul.addr 4, 20
    %s220 = scalar_lea.vmem %s0, %s219
    %v221 = vld [vmem:[%s220] sm:%s3]
    %s222 = scalar_lea.vmem [#allocation0], 160
    %223 = vst [vmem:[%s222] sm:%s3] %v221
    %s224 = smul.addr 4, 19
    %s225 = scalar_lea.vmem %s0, %s224
    %v226 = vld [vmem:[%s225] sm:%s3]
    %s227 = scalar_lea.vmem [#allocation0], 152
    %228 = vst [vmem:[%s227] sm:%s3] %v226
    %s229 = smul.addr 4, 18
    %s230 = scalar_lea.vmem %s0, %s229
    %v231 = vld [vmem:[%s230] sm:%s3]
    %s232 = scalar_lea.vmem [#allocation0], 144
    %233 = vst [vmem:[%s232] sm:%s3] %v231
    %s234 = smul.addr 4, 17
    %s235 = scalar_lea.vmem %s0, %s234
    %v236 = vld [vmem:[%s235] sm:%s3]
    %s237 = scalar_lea.vmem [#allocation0], 136
    %238 = vst [vmem:[%s237] sm:%s3] %v236
    %s239 = smul.addr 4, 16
    %s240 = scalar_lea.vmem %s0, %s239
    %v241 = vld [vmem:[%s240] sm:%s3]
    %s242 = scalar_lea.vmem [#allocation0], 128
    %243 = vst [vmem:[%s242] sm:%s3] %v241
    %s244 = smul.addr 4, 15
    %s245 = scalar_lea.vmem %s0, %s244
    %v246 = vld [vmem:[%s245] sm:%s3]
    %s247 = scalar_lea.vmem [#allocation0], 120
    %248 = vst [vmem:[%s247] sm:%s3] %v246
    %s249 = smul.addr 4, 14
    %s250 = scalar_lea.vmem %s0, %s249
    %v251 = vld [vmem:[%s250] sm:%s3]
    %s252 = scalar_lea.vmem [#allocation0], 112
    %253 = vst [vmem:[%s252] sm:%s3] %v251
    %s254 = smul.addr 4, 13
    %s255 = scalar_lea.vmem %s0, %s254
    %v256 = vld [vmem:[%s255] sm:%s3]
    %s257 = scalar_lea.vmem [#allocation0], 104
    %258 = vst [vmem:[%s257] sm:%s3] %v256
    %s259 = smul.addr 4, 12
    %s260 = scalar_lea.vmem %s0, %s259
    %v261 = vld [vmem:[%s260] sm:%s3]
    %s262 = scalar_lea.vmem [#allocation0], 96
    %263 = vst [vmem:[%s262] sm:%s3] %v261
    %s264 = smul.addr 4, 11
    %s265 = scalar_lea.vmem %s0, %s264
    %v266 = vld [vmem:[%s265] sm:%s3]
    %s267 = scalar_lea.vmem [#allocation0], 88
    %268 = vst [vmem:[%s267] sm:%s3] %v266
    %s269 = smul.addr 4, 10
    %s270 = scalar_lea.vmem %s0, %s269
    %v271 = vld [vmem:[%s270] sm:%s3]
    %s272 = scalar_lea.vmem [#allocation0], 80
    %273 = vst [vmem:[%s272] sm:%s3] %v271
    %s274 = smul.addr 4, 9
    %s275 = scalar_lea.vmem %s0, %s274
    %v276 = vld [vmem:[%s275] sm:%s3]
    %s277 = scalar_lea.vmem [#allocation0], 72
    %278 = vst [vmem:[%s277] sm:%s3] %v276
    %s279 = smul.addr 4, 8
    %s280 = scalar_lea.vmem %s0, %s279
    %v281 = vld [vmem:[%s280] sm:%s3]
    %s282 = scalar_lea.vmem [#allocation0], 64
    %283 = vst [vmem:[%s282] sm:%s3] %v281
    %s284 = smul.addr 4, 7
    %s285 = scalar_lea.vmem %s0, %s284
    %v286 = vld [vmem:[%s285] sm:%s3]
    %s287 = scalar_lea.vmem [#allocation0], 56
    %288 = vst [vmem:[%s287] sm:%s3] %v286
    %s289 = smul.addr 4, 6
    %s290 = scalar_lea.vmem %s0, %s289
    %v291 = vld [vmem:[%s290] sm:%s3]
    %s292 = scalar_lea.vmem [#allocation0], 48
    %293 = vst [vmem:[%s292] sm:%s3] %v291
    %s294 = smul.addr 4, 5
    %s295 = scalar_lea.vmem %s0, %s294
    %v296 = vld [vmem:[%s295] sm:%s3]
    %s297 = scalar_lea.vmem [#allocation0], 40
    %298 = vst [vmem:[%s297] sm:%s3] %v296
    %s299 = smul.addr 4, 4
    %s300 = scalar_lea.vmem %s0, %s299
    %v301 = vld [vmem:[%s300] sm:%s3]
    %s302 = scalar_lea.vmem [#allocation0], 32
    %303 = vst [vmem:[%s302] sm:%s3] %v301
    %s304 = smul.addr 4, 3
    %s305 = scalar_lea.vmem %s0, %s304
    %v306 = vld [vmem:[%s305] sm:%s3]
    %s307 = scalar_lea.vmem [#allocation0], 24
    %308 = vst [vmem:[%s307] sm:%s3] %v306
    %s309 = smul.addr 4, 2
    %s310 = scalar_lea.vmem %s0, %s309
    %v311 = vld [vmem:[%s310] sm:%s3]
    %s312 = scalar_lea.vmem [#allocation0], 16
    %313 = vst [vmem:[%s312] sm:%s3] %v311
    %s314 = scalar_lea.vmem %s0, 4
    %v315 = vld [vmem:[%s314] sm:%s3]
    %s316 = scalar_lea.vmem [#allocation0], 8
    %317 = vst [vmem:[%s316] sm:%s3] %v315
    %v318 = vld [vmem:[%s0] sm:%s3]
    %319 = vst [vmem:[#allocation0] sm:%s3] %v318
    %s320 = smov 3
    %v321 = vld [vmem:[#allocation0] ss:$2 sm:%s320]
    %vm322 = vcmask 523264
    %323 = vst.msk [vmem:[%s1] ss:$8 sm:$0x3] %vm322, %v321
    %s324 = scalar_lea.vmem [#allocation0], 8
    %s325 = smov 3
    %v326 = vld [vmem:[%s324] ss:$2 sm:%s325]
    %vm327 = vcmask 523264
    %s328 = scalar_lea.vmem %s1, 1
    %329 = vst.msk [vmem:[%s328] ss:$8 sm:$0x3] %vm327, %v326
    %s330 = scalar_lea.vmem [#allocation0], 16
    %s331 = smov 3
    %v332 = vld [vmem:[%s330] ss:$2 sm:%s331]
    %vm333 = vcmask 523264
    %s334 = scalar_lea.vmem %s1, 2
    %335 = vst.msk [vmem:[%s334] ss:$8 sm:$0x3] %vm333, %v332
    %s336 = scalar_lea.vmem [#allocation0], 24
    %s337 = smov 3
    %v338 = vld [vmem:[%s336] ss:$2 sm:%s337]
    %vm339 = vcmask 523264
    %s340 = scalar_lea.vmem %s1, 3
    %341 = vst.msk [vmem:[%s340] ss:$8 sm:$0x3] %vm339, %v338
    %s342 = scalar_lea.vmem [#allocation0], 32
    %s343 = smov 3
    %v344 = vld [vmem:[%s342] ss:$2 sm:%s343]
    %vm345 = vcmask 523264
    %s346 = scalar_lea.vmem %s1, 4
    %347 = vst.msk [vmem:[%s346] ss:$8 sm:$0x3] %vm345, %v344
    %s348 = scalar_lea.vmem [#allocation0], 40
    %s349 = smov 3
    %v350 = vld [vmem:[%s348] ss:$2 sm:%s349]
    %vm351 = vcmask 523264
    %s352 = scalar_lea.vmem %s1, 5
    %353 = vst.msk [vmem:[%s352] ss:$8 sm:$0x3] %vm351, %v350
    %s354 = scalar_lea.vmem [#allocation0], 48
    %s355 = smov 3
    %v356 = vld [vmem:[%s354] ss:$2 sm:%s355]
    %vm357 = vcmask 523264
    %s358 = scalar_lea.vmem %s1, 6
    %359 = vst.msk [vmem:[%s358] ss:$8 sm:$0x3] %vm357, %v356
    %s360 = scalar_lea.vmem [#allocation0], 56
    %s361 = smov 3
    %v362 = vld [vmem:[%s360] ss:$2 sm:%s361]
    %vm363 = vcmask 523264
    %s364 = scalar_lea.vmem %s1, 7
    %365 = vst.msk [vmem:[%s364] ss:$8 sm:$0x3] %vm363, %v362
    %s366 = scalar_lea.vmem [#allocation0], 64
    %s367 = smov 3
    %v368 = vld [vmem:[%s366] ss:$2 sm:%s367]
    %vm369 = vcmask 523264
    %s370 = scalar_lea.vmem %s1, 16
    %371 = vst.msk [vmem:[%s370] ss:$8 sm:$0x3] %vm369, %v368
    %s372 = scalar_lea.vmem [#allocation0], 72
    %s373 = smov 3
    %v374 = vld [vmem:[%s372] ss:$2 sm:%s373]
    %vm375 = vcmask 523264
    %s376 = scalar_lea.vmem %s1, 17
    %377 = vst.msk [vmem:[%s376] ss:$8 sm:$0x3] %vm375, %v374
    %s378 = scalar_lea.vmem [#allocation0], 80
    %s379 = smov 3
    %v380 = vld [vmem:[%s378] ss:$2 sm:%s379]
    %vm381 = vcmask 523264
    %s382 = scalar_lea.vmem %s1, 18
    %383 = vst.msk [vmem:[%s382] ss:$8 sm:$0x3] %vm381, %v380
    %s384 = scalar_lea.vmem [#allocation0], 88
    %s385 = smov 3
    %v386 = vld [vmem:[%s384] ss:$2 sm:%s385]
    %vm387 = vcmask 523264
    %s388 = scalar_lea.vmem %s1, 19
    %389 = vst.msk [vmem:[%s388] ss:$8 sm:$0x3] %vm387, %v386
    %s390 = scalar_lea.vmem [#allocation0], 96
    %s391 = smov 3
    %v392 = vld [vmem:[%s390] ss:$2 sm:%s391]
    %vm393 = vcmask 523264
    %s394 = scalar_lea.vmem %s1, 20
    %395 = vst.msk [vmem:[%s394] ss:$8 sm:$0x3] %vm393, %v392
    %s396 = scalar_lea.vmem [#allocation0], 104
    %s397 = smov 3
    %v398 = vld [vmem:[%s396] ss:$2 sm:%s397]
    %vm399 = vcmask 523264
    %s400 = scalar_lea.vmem %s1, 21
    %401 = vst.msk [vmem:[%s400] ss:$8 sm:$0x3] %vm399, %v398
    %s402 = scalar_lea.vmem [#allocation0], 112
    %s403 = smov 3
    %v404 = vld [vmem:[%s402] ss:$2 sm:%s403]
    %vm405 = vcmask 523264
    %s406 = scalar_lea.vmem %s1, 22
    %407 = vst.msk [vmem:[%s406] ss:$8 sm:$0x3] %vm405, %v404
    %s408 = scalar_lea.vmem [#allocation0], 120
    %s409 = smov 3
    %v410 = vld [vmem:[%s408] ss:$2 sm:%s409]
    %vm411 = vcmask 523264
    %s412 = scalar_lea.vmem %s1, 23
    %413 = vst.msk [vmem:[%s412] ss:$8 sm:$0x3] %vm411, %v410
    %s414 = scalar_lea.vmem [#allocation0], 128
    %s415 = smov 3
    %v416 = vld [vmem:[%s414] ss:$2 sm:%s415]
    %vm417 = vcmask 523264
    %s418 = scalar_lea.vmem %s1, 32
    %419 = vst.msk [vmem:[%s418] ss:$8 sm:$0x3] %vm417, %v416
    %s420 = scalar_lea.vmem [#allocation0], 136
    %s421 = smov 3
    %v422 = vld [vmem:[%s420] ss:$2 sm:%s421]
    %vm423 = vcmask 523264
    %s424 = scalar_lea.vmem %s1, 33
    %425 = vst.msk [vmem:[%s424] ss:$8 sm:$0x3] %vm423, %v422
    %s426 = scalar_lea.vmem [#allocation0], 144
    %s427 = smov 3
    %v428 = vld [vmem:[%s426] ss:$2 sm:%s427]
    %vm429 = vcmask 523264
    %s430 = scalar_lea.vmem %s1, 34
    %431 = vst.msk [vmem:[%s430] ss:$8 sm:$0x3] %vm429, %v428
    %s432 = scalar_lea.vmem [#allocation0], 152
    %s433 = smov 3
    %v434 = vld [vmem:[%s432] ss:$2 sm:%s433]
    %vm435 = vcmask 523264
    %s436 = scalar_lea.vmem %s1, 35
    %437 = vst.msk [vmem:[%s436] ss:$8 sm:$0x3] %vm435, %v434
    %s438 = scalar_lea.vmem [#allocation0], 160
    %s439 = smov 3
    %v440 = vld [vmem:[%s438] ss:$2 sm:%s439]
    %vm441 = vcmask 523264
    %s442 = scalar_lea.vmem %s1, 36
    %443 = vst.msk [vmem:[%s442] ss:$8 sm:$0x3] %vm441, %v440
    %s444 = scalar_lea.vmem [#allocation0], 168
    %s445 = smov 3
    %v446 = vld [vmem:[%s444] ss:$2 sm:%s445]
    %vm447 = vcmask 523264
    %s448 = scalar_lea.vmem %s1, 37
    %449 = vst.msk [vmem:[%s448] ss:$8 sm:$0x3] %vm447, %v446
    %s450 = scalar_lea.vmem [#allocation0], 176
    %s451 = smov 3
    %v452 = vld [vmem:[%s450] ss:$2 sm:%s451]
    %vm453 = vcmask 523264
    %s454 = scalar_lea.vmem %s1, 38
    %455 = vst.msk [vmem:[%s454] ss:$8 sm:$0x3] %vm453, %v452
    %s456 = scalar_lea.vmem [#allocation0], 184
    %s457 = smov 3
    %v458 = vld [vmem:[%s456] ss:$2 sm:%s457]
    %vm459 = vcmask 523264
    %s460 = scalar_lea.vmem %s1, 39
    %461 = vst.msk [vmem:[%s460] ss:$8 sm:$0x3] %vm459, %v458
    %s462 = scalar_lea.vmem [#allocation0], 192
    %s463 = smov 3
    %v464 = vld [vmem:[%s462] ss:$2 sm:%s463]
    %vm465 = vcmask 523264
    %s466 = scalar_lea.vmem %s1, 48
    %467 = vst.msk [vmem:[%s466] ss:$8 sm:$0x3] %vm465, %v464
    %s468 = scalar_lea.vmem [#allocation0], 200
    %s469 = smov 3
    %v470 = vld [vmem:[%s468] ss:$2 sm:%s469]
    %vm471 = vcmask 523264
    %s472 = scalar_lea.vmem %s1, 49
    %473 = vst.msk [vmem:[%s472] ss:$8 sm:$0x3] %vm471, %v470
    %s474 = scalar_lea.vmem [#allocation0], 208
    %s475 = smov 3
    %v476 = vld [vmem:[%s474] ss:$2 sm:%s475]
    %vm477 = vcmask 523264
    %s478 = scalar_lea.vmem %s1, 50
    %479 = vst.msk [vmem:[%s478] ss:$8 sm:$0x3] %vm477, %v476
    %s480 = scalar_lea.vmem [#allocation0], 216
    %s481 = smov 3
    %v482 = vld [vmem:[%s480] ss:$2 sm:%s481]
    %vm483 = vcmask 523264
    %s484 = scalar_lea.vmem %s1, 51
    %485 = vst.msk [vmem:[%s484] ss:$8 sm:$0x3] %vm483, %v482
    %s486 = scalar_lea.vmem [#allocation0], 224
    %s487 = smov 3
    %v488 = vld [vmem:[%s486] ss:$2 sm:%s487]
    %vm489 = vcmask 523264
    %s490 = scalar_lea.vmem %s1, 52
    %491 = vst.msk [vmem:[%s490] ss:$8 sm:$0x3] %vm489, %v488
    %s492 = scalar_lea.vmem [#allocation0], 232
    %s493 = smov 3
    %v494 = vld [vmem:[%s492] ss:$2 sm:%s493]
    %vm495 = vcmask 523264
    %s496 = scalar_lea.vmem %s1, 53
    %497 = vst.msk [vmem:[%s496] ss:$8 sm:$0x3] %vm495, %v494
    %s498 = scalar_lea.vmem [#allocation0], 240
    %s499 = smov 3
    %v500 = vld [vmem:[%s498] ss:$2 sm:%s499]
    %vm501 = vcmask 523264
    %s502 = scalar_lea.vmem %s1, 54
    %503 = vst.msk [vmem:[%s502] ss:$8 sm:$0x3] %vm501, %v500
    %s504 = scalar_lea.vmem [#allocation0], 248
    %s505 = smov 3
    %v506 = vld [vmem:[%s504] ss:$2 sm:%s505]
    %vm507 = vcmask 523264
    %s508 = scalar_lea.vmem %s1, 55
    %509 = vst.msk [vmem:[%s508] ss:$8 sm:$0x3] %vm507, %v506
    %s510 = scalar_lea.vmem [#allocation0], 256
    %s511 = smov 3
    %v512 = vld [vmem:[%s510] ss:$2 sm:%s511]
    %vm513 = vcmask 523264
    %s514 = scalar_lea.vmem %s1, 64
    %515 = vst.msk [vmem:[%s514] ss:$8 sm:$0x3] %vm513, %v512
    %s516 = scalar_lea.vmem [#allocation0], 264
    %s517 = smov 3
    %v518 = vld [vmem:[%s516] ss:$2 sm:%s517]
    %vm519 = vcmask 523264
    %s520 = scalar_lea.vmem %s1, 65
    %521 = vst.msk [vmem:[%s520] ss:$8 sm:$0x3] %vm519, %v518
    %s522 = scalar_lea.vmem [#allocation0], 272
    %s523 = smov 3
    %v524 = vld [vmem:[%s522] ss:$2 sm:%s523]
    %vm525 = vcmask 523264
    %s526 = scalar_lea.vmem %s1, 66
    %527 = vst.msk [vmem:[%s526] ss:$8 sm:$0x3] %vm525, %v524
    %s528 = scalar_lea.vmem [#allocation0], 280
    %s529 = smov 3
    %v530 = vld [vmem:[%s528] ss:$2 sm:%s529]
    %vm531 = vcmask 523264
    %s532 = scalar_lea.vmem %s1, 67
    %533 = vst.msk [vmem:[%s532] ss:$8 sm:$0x3] %vm531, %v530
    %s534 = scalar_lea.vmem [#allocation0], 288
    %s535 = smov 3
    %v536 = vld [vmem:[%s534] ss:$2 sm:%s535]
    %vm537 = vcmask 523264
    %s538 = scalar_lea.vmem %s1, 68
    %539 = vst.msk [vmem:[%s538] ss:$8 sm:$0x3] %vm537, %v536
    %s540 = scalar_lea.vmem [#allocation0], 296
    %s541 = smov 3
    %v542 = vld [vmem:[%s540] ss:$2 sm:%s541]
    %vm543 = vcmask 523264
    %s544 = scalar_lea.vmem %s1, 69
    %545 = vst.msk [vmem:[%s544] ss:$8 sm:$0x3] %vm543, %v542
    %s546 = scalar_lea.vmem [#allocation0], 304
    %s547 = smov 3
    %v548 = vld [vmem:[%s546] ss:$2 sm:%s547]
    %vm549 = vcmask 523264
    %s550 = scalar_lea.vmem %s1, 70
    %551 = vst.msk [vmem:[%s550] ss:$8 sm:$0x3] %vm549, %v548
    %s552 = scalar_lea.vmem [#allocation0], 312
    %s553 = smov 3
    %v554 = vld [vmem:[%s552] ss:$2 sm:%s553]
    %vm555 = vcmask 523264
    %s556 = scalar_lea.vmem %s1, 71
    %557 = vst.msk [vmem:[%s556] ss:$8 sm:$0x3] %vm555, %v554
    %s558 = scalar_lea.vmem [#allocation0], 320
    %s559 = smov 3
    %v560 = vld [vmem:[%s558] ss:$2 sm:%s559]
    %vm561 = vcmask 523264
    %s562 = scalar_lea.vmem %s1, 80
    %563 = vst.msk [vmem:[%s562] ss:$8 sm:$0x3] %vm561, %v560
    %s564 = scalar_lea.vmem [#allocation0], 328
    %s565 = smov 3
    %v566 = vld [vmem:[%s564] ss:$2 sm:%s565]
    %vm567 = vcmask 523264
    %s568 = scalar_lea.vmem %s1, 81
    %569 = vst.msk [vmem:[%s568] ss:$8 sm:$0x3] %vm567, %v566
    %s570 = scalar_lea.vmem [#allocation0], 336
    %s571 = smov 3
    %v572 = vld [vmem:[%s570] ss:$2 sm:%s571]
    %vm573 = vcmask 523264
    %s574 = scalar_lea.vmem %s1, 82
    %575 = vst.msk [vmem:[%s574] ss:$8 sm:$0x3] %vm573, %v572
    %s576 = scalar_lea.vmem [#allocation0], 344
    %s577 = smov 3
    %v578 = vld [vmem:[%s576] ss:$2 sm:%s577]
    %vm579 = vcmask 523264
    %s580 = scalar_lea.vmem %s1, 83
    %581 = vst.msk [vmem:[%s580] ss:$8 sm:$0x3] %vm579, %v578
    %s582 = scalar_lea.vmem [#allocation0], 352
    %s583 = smov 3
    %v584 = vld [vmem:[%s582] ss:$2 sm:%s583]
    %vm585 = vcmask 523264
    %s586 = scalar_lea.vmem %s1, 84
    %587 = vst.msk [vmem:[%s586] ss:$8 sm:$0x3] %vm585, %v584
    %s588 = scalar_lea.vmem [#allocation0], 360
    %s589 = smov 3
    %v590 = vld [vmem:[%s588] ss:$2 sm:%s589]
    %vm591 = vcmask 523264
    %s592 = scalar_lea.vmem %s1, 85
    %593 = vst.msk [vmem:[%s592] ss:$8 sm:$0x3] %vm591, %v590
    %s594 = scalar_lea.vmem [#allocation0], 368
    %s595 = smov 3
    %v596 = vld [vmem:[%s594] ss:$2 sm:%s595]
    %vm597 = vcmask 523264
    %s598 = scalar_lea.vmem %s1, 86
    %599 = vst.msk [vmem:[%s598] ss:$8 sm:$0x3] %vm597, %v596
    %s600 = scalar_lea.vmem [#allocation0], 376
    %s601 = smov 3
    %v602 = vld [vmem:[%s600] ss:$2 sm:%s601]
    %vm603 = vcmask 523264
    %s604 = scalar_lea.vmem %s1, 87
    %605 = vst.msk [vmem:[%s604] ss:$8 sm:$0x3] %vm603, %v602
    %s606 = scalar_lea.vmem [#allocation0], 384
    %s607 = smov 3
    %v608 = vld [vmem:[%s606] ss:$2 sm:%s607]
    %vm609 = vcmask 523264
    %s610 = scalar_lea.vmem %s1, 96
    %611 = vst.msk [vmem:[%s610] ss:$8 sm:$0x3] %vm609, %v608
    %s612 = scalar_lea.vmem [#allocation0], 392
    %s613 = smov 3
    %v614 = vld [vmem:[%s612] ss:$2 sm:%s613]
    %vm615 = vcmask 523264
    %s616 = scalar_lea.vmem %s1, 97
    %617 = vst.msk [vmem:[%s616] ss:$8 sm:$0x3] %vm615, %v614
    %s618 = scalar_lea.vmem [#allocation0], 400
    %s619 = smov 3
    %v620 = vld [vmem:[%s618] ss:$2 sm:%s619]
    %vm621 = vcmask 523264
    %s622 = scalar_lea.vmem %s1, 98
    %623 = vst.msk [vmem:[%s622] ss:$8 sm:$0x3] %vm621, %v620
    %s624 = scalar_lea.vmem [#allocation0], 408
    %s625 = smov 3
    %v626 = vld [vmem:[%s624] ss:$2 sm:%s625]
    %vm627 = vcmask 523264
    %s628 = scalar_lea.vmem %s1, 99
    %629 = vst.msk [vmem:[%s628] ss:$8 sm:$0x3] %vm627, %v626
    %s630 = scalar_lea.vmem [#allocation0], 416
    %s631 = smov 3
    %v632 = vld [vmem:[%s630] ss:$2 sm:%s631]
    %vm633 = vcmask 523264
    %s634 = scalar_lea.vmem %s1, 100
    %635 = vst.msk [vmem:[%s634] ss:$8 sm:$0x3] %vm633, %v632
    %s636 = scalar_lea.vmem [#allocation0], 424
    %s637 = smov 3
    %v638 = vld [vmem:[%s636] ss:$2 sm:%s637]
    %vm639 = vcmask 523264
    %s640 = scalar_lea.vmem %s1, 101
    %641 = vst.msk [vmem:[%s640] ss:$8 sm:$0x3] %vm639, %v638
    %s642 = scalar_lea.vmem [#allocation0], 432
    %s643 = smov 3
    %v644 = vld [vmem:[%s642] ss:$2 sm:%s643]
    %vm645 = vcmask 523264
    %s646 = scalar_lea.vmem %s1, 102
    %647 = vst.msk [vmem:[%s646] ss:$8 sm:$0x3] %vm645, %v644
    %s648 = scalar_lea.vmem [#allocation0], 440
    %s649 = smov 3
    %v650 = vld [vmem:[%s648] ss:$2 sm:%s649]
    %vm651 = vcmask 523264
    %s652 = scalar_lea.vmem %s1, 103
    %653 = vst.msk [vmem:[%s652] ss:$8 sm:$0x3] %vm651, %v650
    %s654 = scalar_lea.vmem [#allocation0], 448
    %s655 = smov 3
    %v656 = vld [vmem:[%s654] ss:$2 sm:%s655]
    %vm657 = vcmask 523264
    %s658 = scalar_lea.vmem %s1, 112
    %659 = vst.msk [vmem:[%s658] ss:$8 sm:$0x3] %vm657, %v656
    %s660 = scalar_lea.vmem [#allocation0], 456
    %s661 = smov 3
    %v662 = vld [vmem:[%s660] ss:$2 sm:%s661]
    %vm663 = vcmask 523264
    %s664 = scalar_lea.vmem %s1, 113
    %665 = vst.msk [vmem:[%s664] ss:$8 sm:$0x3] %vm663, %v662
    %s666 = scalar_lea.vmem [#allocation0], 464
    %s667 = smov 3
    %v668 = vld [vmem:[%s666] ss:$2 sm:%s667]
    %vm669 = vcmask 523264
    %s670 = scalar_lea.vmem %s1, 114
    %671 = vst.msk [vmem:[%s670] ss:$8 sm:$0x3] %vm669, %v668
    %s672 = scalar_lea.vmem [#allocation0], 472
    %s673 = smov 3
    %v674 = vld [vmem:[%s672] ss:$2 sm:%s673]
    %vm675 = vcmask 523264
    %s676 = scalar_lea.vmem %s1, 115
    %677 = vst.msk [vmem:[%s676] ss:$8 sm:$0x3] %vm675, %v674
    %s678 = scalar_lea.vmem [#allocation0], 480
    %s679 = smov 3
    %v680 = vld [vmem:[%s678] ss:$2 sm:%s679]
    %vm681 = vcmask 523264
    %s682 = scalar_lea.vmem %s1, 116
    %683 = vst.msk [vmem:[%s682] ss:$8 sm:$0x3] %vm681, %v680
    %s684 = scalar_lea.vmem [#allocation0], 488
    %s685 = smov 3
    %v686 = vld [vmem:[%s684] ss:$2 sm:%s685]
    %vm687 = vcmask 523264
    %s688 = scalar_lea.vmem %s1, 117
    %689 = vst.msk [vmem:[%s688] ss:$8 sm:$0x3] %vm687, %v686
    %s690 = scalar_lea.vmem [#allocation0], 496
    %s691 = smov 3
    %v692 = vld [vmem:[%s690] ss:$2 sm:%s691]
    %vm693 = vcmask 523264
    %s694 = scalar_lea.vmem %s1, 118
    %695 = vst.msk [vmem:[%s694] ss:$8 sm:$0x3] %vm693, %v692
    %s696 = scalar_lea.vmem [#allocation0], 504
    %s697 = smov 3
    %v698 = vld [vmem:[%s696] ss:$2 sm:%s697]
    %vm699 = vcmask 523264
    %s700 = scalar_lea.vmem %s1, 119
    %701 = vst.msk [vmem:[%s700] ss:$8 sm:$0x3] %vm699, %v698
    %s702 = scalar_lea.vmem [#allocation0], 1
    %v703 = vld [vmem:[%s702] ss:$8 sm:$0xf]
    %s704 = scalar_lea.vmem [#allocation0], 1
    %v705 = vld [vmem:[%s704] ss:$8 sm:$0xf0]
    %vm706 = vcmask 1047556
    %v707 = vsel %vm706, %v705, %v703
    %708 = vrot.lane.b32.xlu0 %v707, 64
    %v709 = vpop.permute.xlu0 %708
    %vm710 = vcmask 1048064
    %711 = vst.msk [vmem:[%s1] sm:$0xff] %vm710, %v709
    %s712 = scalar_lea.vmem [#allocation0], 129
    %v713 = vld [vmem:[%s712] ss:$8 sm:$0xf]
    %s714 = scalar_lea.vmem [#allocation0], 129
    %v715 = vld [vmem:[%s714] ss:$8 sm:$0xf0]
    %vm716 = vcmask 1047556
    %v717 = vsel %vm716, %v715, %v713
    %718 = vrot.lane.b32.xlu0 %v717, 64
    %v719 = vpop.permute.xlu0 %718
    %vm720 = vcmask 1048064
    %s721 = scalar_lea.vmem %s1, 32
    %722 = vst.msk [vmem:[%s721] sm:$0xff] %vm720, %v719
    %s723 = scalar_lea.vmem [#allocation0], 257
    %v724 = vld [vmem:[%s723] ss:$8 sm:$0xf]
    %s725 = scalar_lea.vmem [#allocation0], 257
    %v726 = vld [vmem:[%s725] ss:$8 sm:$0xf0]
    %vm727 = vcmask 1047556
    %v728 = vsel %vm727, %v726, %v724
    %729 = vrot.lane.b32.xlu0 %v728, 64
    %v730 = vpop.permute.xlu0 %729
    %vm731 = vcmask 1048064
    %s732 = scalar_lea.vmem %s1, 64
    %733 = vst.msk [vmem:[%s732] sm:$0xff] %vm731, %v730
    %s734 = scalar_lea.vmem [#allocation0], 385
    %v735 = vld [vmem:[%s734] ss:$8 sm:$0xf]
    %s736 = scalar_lea.vmem [#allocation0], 385
    %v737 = vld [vmem:[%s736] ss:$8 sm:$0xf0]
    %vm738 = vcmask 1047556
    %v739 = vsel %vm738, %v737, %v735
    %740 = vrot.lane.b32.xlu0 %v739, 64
    %v741 = vpop.permute.xlu0 %740
    %vm742 = vcmask 1048064
    %s743 = scalar_lea.vmem %s1, 96
    %744 = vst.msk [vmem:[%s743] sm:$0xff] %vm742, %v741
    %s745 = scalar_lea.vmem [#allocation0], 3
    %v746 = vld [vmem:[%s745] ss:$8 sm:$0xf]
    %s747 = scalar_lea.vmem [#allocation0], 3
    %v748 = vld [vmem:[%s747] ss:$8 sm:$0xf0]
    %vm749 = vcmask 1047556
    %v750 = vsel %vm749, %v748, %v746
    %751 = vrot.lane.b32.xlu0 %v750, 64
    %v752 = vpop.permute.xlu0 %751
    %vm753 = vcmask 1048064
    %s754 = scalar_lea.vmem %s1, 8
    %755 = vst.msk [vmem:[%s754] sm:$0xff] %vm753, %v752
    %s756 = scalar_lea.vmem [#allocation0], 131
    %v757 = vld [vmem:[%s756] ss:$8 sm:$0xf]
    %s758 = scalar_lea.vmem [#allocation0], 131
    %v759 = vld [vmem:[%s758] ss:$8 sm:$0xf0]
    %vm760 = vcmask 1047556
    %v761 = vsel %vm760, %v759, %v757
    %762 = vrot.lane.b32.xlu0 %v761, 64
    %v763 = vpop.permute.xlu0 %762
    %vm764 = vcmask 1048064
    %s765 = scalar_lea.vmem %s1, 40
    %766 = vst.msk [vmem:[%s765] sm:$0xff] %vm764, %v763
    %s767 = scalar_lea.vmem [#allocation0], 259
    %v768 = vld [vmem:[%s767] ss:$8 sm:$0xf]
    %s769 = scalar_lea.vmem [#allocation0], 259
    %v770 = vld [vmem:[%s769] ss:$8 sm:$0xf0]
    %vm771 = vcmask 1047556
    %v772 = vsel %vm771, %v770, %v768
    %773 = vrot.lane.b32.xlu0 %v772, 64
    %v774 = vpop.permute.xlu0 %773
    %vm775 = vcmask 1048064
    %s776 = scalar_lea.vmem %s1, 72
    %777 = vst.msk [vmem:[%s776] sm:$0xff] %vm775, %v774
    %s778 = scalar_lea.vmem [#allocation0], 387
    %v779 = vld [vmem:[%s778] ss:$8 sm:$0xf]
    %s780 = scalar_lea.vmem [#allocation0], 387
    %v781 = vld [vmem:[%s780] ss:$8 sm:$0xf0]
    %vm782 = vcmask 1047556
    %v783 = vsel %vm782, %v781, %v779
    %784 = vrot.lane.b32.xlu0 %v783, 64
    %v785 = vpop.permute.xlu0 %784
    %vm786 = vcmask 1048064
    %s787 = scalar_lea.vmem %s1, 104
    %788 = vst.msk [vmem:[%s787] sm:$0xff] %vm786, %v785
    %s789 = scalar_lea.vmem [#allocation0], 65
    %v790 = vld [vmem:[%s789] ss:$8 sm:$0xf]
    %s791 = scalar_lea.vmem [#allocation0], 65
    %v792 = vld [vmem:[%s791] ss:$8 sm:$0xf0]
    %vm793 = vcmask 1047556
    %v794 = vsel %vm793, %v792, %v790
    %795 = vrot.lane.b32.xlu0 %v794, 64
    %v796 = vpop.permute.xlu0 %795
    %vm797 = vcmask 1048064
    %s798 = scalar_lea.vmem %s1, 16
    %799 = vst.msk [vmem:[%s798] sm:$0xff] %vm797, %v796
    %s800 = scalar_lea.vmem [#allocation0], 193
    %v801 = vld [vmem:[%s800] ss:$8 sm:$0xf]
    %s802 = scalar_lea.vmem [#allocation0], 193
    %v803 = vld [vmem:[%s802] ss:$8 sm:$0xf0]
    %vm804 = vcmask 1047556
    %v805 = vsel %vm804, %v803, %v801
    %806 = vrot.lane.b32.xlu0 %v805, 64
    %v807 = vpop.permute.xlu0 %806
    %vm808 = vcmask 1048064
    %s809 = scalar_lea.vmem %s1, 48
    %810 = vst.msk [vmem:[%s809] sm:$0xff] %vm808, %v807
    %s811 = scalar_lea.vmem [#allocation0], 321
    %v812 = vld [vmem:[%s811] ss:$8 sm:$0xf]
    %s813 = scalar_lea.vmem [#allocation0], 321
    %v814 = vld [vmem:[%s813] ss:$8 sm:$0xf0]
    %vm815 = vcmask 1047556
    %v816 = vsel %vm815, %v814, %v812
    %817 = vrot.lane.b32.xlu0 %v816, 64
    %v818 = vpop.permute.xlu0 %817
    %vm819 = vcmask 1048064
    %s820 = scalar_lea.vmem %s1, 80
    %821 = vst.msk [vmem:[%s820] sm:$0xff] %vm819, %v818
    %s822 = scalar_lea.vmem [#allocation0], 449
    %v823 = vld [vmem:[%s822] ss:$8 sm:$0xf]
    %s824 = scalar_lea.vmem [#allocation0], 449
    %v825 = vld [vmem:[%s824] ss:$8 sm:$0xf0]
    %vm826 = vcmask 1047556
    %v827 = vsel %vm826, %v825, %v823
    %828 = vrot.lane.b32.xlu0 %v827, 64
    %v829 = vpop.permute.xlu0 %828
    %vm830 = vcmask 1048064
    %s831 = scalar_lea.vmem %s1, 112
    %832 = vst.msk [vmem:[%s831] sm:$0xff] %vm830, %v829
    %s833 = scalar_lea.vmem [#allocation0], 67
    %v834 = vld [vmem:[%s833] ss:$8 sm:$0xf]
    %s835 = scalar_lea.vmem [#allocation0], 67
    %v836 = vld [vmem:[%s835] ss:$8 sm:$0xf0]
    %vm837 = vcmask 1047556
    %v838 = vsel %vm837, %v836, %v834
    %839 = vrot.lane.b32.xlu0 %v838, 64
    %v840 = vpop.permute.xlu0 %839
    %vm841 = vcmask 1048064
    %s842 = scalar_lea.vmem %s1, 24
    %843 = vst.msk [vmem:[%s842] sm:$0xff] %vm841, %v840
    %s844 = scalar_lea.vmem [#allocation0], 195
    %v845 = vld [vmem:[%s844] ss:$8 sm:$0xf]
    %s846 = scalar_lea.vmem [#allocation0], 195
    %v847 = vld [vmem:[%s846] ss:$8 sm:$0xf0]
    %vm848 = vcmask 1047556
    %v849 = vsel %vm848, %v847, %v845
    %850 = vrot.lane.b32.xlu0 %v849, 64
    %v851 = vpop.permute.xlu0 %850
    %vm852 = vcmask 1048064
    %s853 = scalar_lea.vmem %s1, 56
    %854 = vst.msk [vmem:[%s853] sm:$0xff] %vm852, %v851
    %s855 = scalar_lea.vmem [#allocation0], 323
    %v856 = vld [vmem:[%s855] ss:$8 sm:$0xf]
    %s857 = scalar_lea.vmem [#allocation0], 323
    %v858 = vld [vmem:[%s857] ss:$8 sm:$0xf0]
    %vm859 = vcmask 1047556
    %v860 = vsel %vm859, %v858, %v856
    %861 = vrot.lane.b32.xlu0 %v860, 64
    %v862 = vpop.permute.xlu0 %861
    %vm863 = vcmask 1048064
    %s864 = scalar_lea.vmem %s1, 88
    %865 = vst.msk [vmem:[%s864] sm:$0xff] %vm863, %v862
    %s866 = scalar_lea.vmem [#allocation0], 451
    %v867 = vld [vmem:[%s866] ss:$8 sm:$0xf]
    %s868 = scalar_lea.vmem [#allocation0], 451
    %v869 = vld [vmem:[%s868] ss:$8 sm:$0xf0]
    %vm870 = vcmask 1047556
    %v871 = vsel %vm870, %v869, %v867
    %872 = vrot.lane.b32.xlu0 %v871, 64
    %v873 = vpop.permute.xlu0 %872
    %vm874 = vcmask 1048064
    %s875 = scalar_lea.vmem %s1, 120
    %876 = vst.msk [vmem:[%s875] sm:$0xff] %vm874, %v873

// kernel: bottleneck_forward.7
$region0: #{bottleneck_forward.7}
  #allocation0 [shape = 'u32[]', space=smem, size = 0x4, offset = 0x4, fixed_abs, tag = 'smem constant byte address 0x4 - core index']
  #allocation1 [shape = 'u32[144,128]{1,0:T(1,128)}', space=vmem, size = 0x12000, scoped, tag = 'internal scratch']
  %s0 = inlined_call_operand.vmem [shape: f32[512,256], index: 0, kind: input, shape index: {}]
  %s1 = inlined_call_operand.vmem [shape: f32[64,256], index: 1, kind: input, shape index: {}]
  %s2 = inlined_call_operand.vmem [shape: f32[64,256], index: 2, kind: input, shape index: {}]
  %s3 = inlined_call_operand.vmem [shape: f32[1,256], index: 3, kind: input, shape index: {}]
  %s4 = inlined_call_operand.vmem [shape: f32[1,256], index: 4, kind: input, shape index: {}]
  %s5 = inlined_call_operand.vmem [shape: f32[512,64], index: 5, kind: input, shape index: {}]
  %s6 = inlined_call_operand.vmem [shape: f32[64,256], index: 6, kind: input, shape index: {}]
  %s7 = inlined_call_operand.hbm [shape: f32[512,256], index: 7, kind: output, shape index: {}]
  %s8 = sld [smem:[#allocation0]]
  $region61: #{bottleneck_forward.7} parent=0
    _
  %s10 = ssub.s32 1, %s8
  %s11 = scalar_select 0, %s10, %s8
  $region1: #{bottleneck_forward.7} parent=0
    #allocation2 [shape = 'u8[131072]{0}', space=vmem, size = 0x20000, scoped, tag = 'output window, operand 0']
    #allocation3 [shape = 's32[2]{0}', space=sflag, size = 0x8, scoped, tag = 'scoped memory for bottleneck_forward.7']
    %12 = vsyncpa [#allocation3], 0
    %s13 = scalar_lea.sflag [#allocation3], 1
    %14 = vsyncpa %s13, 0
    loop: start=0, step=1, limit=10
    $region2: #{bottleneck_forward.7} parent=1 // loop_pre_header
      _
    $region3: #{bottleneck_forward.7} parent=1 // loop_header
      %s16 = sphi 0, %s20
      %p17 = scmp.ge.s32.totalorder %s16, 10
      %s26 = sphi 0, %s28
      %s29 = sphi 0, %s26
      %s30 = sphi 0, %s29
      %s46 = sphi 0, %s30
      %s50 = sphi 0, %s50
      %s52 = sphi 0, %s50
      %s53 = sphi 0, %s52
      %s67 = sphi 0, %s53
      %s71 = sphi 0, %s71
      %s73 = sphi 0, %s71
      %s74 = sphi 0, %s73
      %s88 = sphi 0, %s74
      %s92 = sphi 0, %s92
      %s94 = sphi 0, %s92
      %s95 = sphi 0, %s94
      %s109 = sphi 0, %s95
      %s113 = sphi 0, %s113
      %s115 = sphi 0, %s113
      %s116 = sphi 0, %s115
      %s130 = sphi 0, %s116
      %s136 = sphi 0, %s138
      %s139 = sphi 0, %s136
      %s140 = sphi 0, %s139
      %s156 = sphi 0, %s140
      %s160 = sphi 0, %s160
      %s162 = sphi 0, %s160
      %s163 = sphi 0, %s162
      %s177 = sphi 0, %s163
      %s183 = sphi 0, %s185
      %s186 = sphi 0, %s183
      %s187 = sphi 0, %s186
      %s203 = sphi 0, %s187
    $region4: #{bottleneck_forward.7} parent=1 // loop_header_branch
      %19 = sbr.rel (%p17) target = $region8
    $region5: #{bottleneck_forward.7} parent=1 // loop_body
      %s21 = ssub.s32 %s16, 1
      %s22 = ssub.s32 %s16, 2
      %s23 = sadd.s32 %s16, 1
      %s24 = ssub.s32 %s16, %s23
      %p25 = scmp.eq.s32.totalorder %s24, 0
      %s27 = sadd.s32 %s26, 1
      %s28 = scalar_select %p25, %s26, %s27
      %p31 = pneg %p25
      %p32 = scmp.eq.s32.totalorder %s16, 7
      %p33 = por %p31, %p32
      %p34 = scmp.ne.s32.totalorder %s26, %s29
      %p35 = scmp.eq.s32.totalorder %s16, 0
      %p36 = por %p34, %p35
      %p37 = scmp.ne.s32.totalorder %s26, %s29
      %p38 = scmp.eq.s32.totalorder %s21, 7
      %p39 = por %p37, %p38
      %p40 = scmp.ne.s32.totalorder %s29, %s30
      %p41 = scmp.eq.s32.totalorder %s21, 0
      %p42 = por %p40, %p41
      %p43 = scmp.ne.s32.totalorder %s29, %s30
      %p44 = scmp.eq.s32.totalorder %s22, 7
      %p45 = por %p43, %p44
      %p47 = scmp.ne.s32.totalorder %s30, %s46
      %p48 = scmp.eq.s32.totalorder %s22, 0
      %p49 = por %p47, %p48
      %s51 = sadd.s32 %s50, 1
      %p54 = scmp.eq.s32.totalorder %s16, 7
      %p55 = scmp.ne.s32.totalorder %s50, %s52
      %p56 = scmp.eq.s32.totalorder %s16, 0
      %p57 = por %p55, %p56
      %p58 = scmp.ne.s32.totalorder %s50, %s52
      %p59 = scmp.eq.s32.totalorder %s21, 7
      %p60 = por %p58, %p59
      %p61 = scmp.ne.s32.totalorder %s52, %s53
      %p62 = scmp.eq.s32.totalorder %s21, 0
      %p63 = por %p61, %p62
      %p64 = scmp.ne.s32.totalorder %s52, %s53
      %p65 = scmp.eq.s32.totalorder %s22, 7
      %p66 = por %p64, %p65
      %p68 = scmp.ne.s32.totalorder %s53, %s67
      %p69 = scmp.eq.s32.totalorder %s22, 0
      %p70 = por %p68, %p69
      %s72 = sadd.s32 %s71, 1
      %p75 = scmp.eq.s32.totalorder %s16, 7
      %p76 = scmp.ne.s32.totalorder %s71, %s73
      %p77 = scmp.eq.s32.totalorder %s16, 0
      %p78 = por %p76, %p77
      %p79 = scmp.ne.s32.totalorder %s71, %s73
      %p80 = scmp.eq.s32.totalorder %s21, 7
      %p81 = por %p79, %p80
      %p82 = scmp.ne.s32.totalorder %s73, %s74
      %p83 = scmp.eq.s32.totalorder %s21, 0
      %p84 = por %p82, %p83
      %p85 = scmp.ne.s32.totalorder %s73, %s74
      %p86 = scmp.eq.s32.totalorder %s22, 7
      %p87 = por %p85, %p86
      %p89 = scmp.ne.s32.totalorder %s74, %s88
      %p90 = scmp.eq.s32.totalorder %s22, 0
      %p91 = por %p89, %p90
      %s93 = sadd.s32 %s92, 1
      %p96 = scmp.eq.s32.totalorder %s16, 7
      %p97 = scmp.ne.s32.totalorder %s92, %s94
      %p98 = scmp.eq.s32.totalorder %s16, 0
      %p99 = por %p97, %p98
      %p100 = scmp.ne.s32.totalorder %s92, %s94
      %p101 = scmp.eq.s32.totalorder %s21, 7
      %p102 = por %p100, %p101
      %p103 = scmp.ne.s32.totalorder %s94, %s95
      %p104 = scmp.eq.s32.totalorder %s21, 0
      %p105 = por %p103, %p104
      %p106 = scmp.ne.s32.totalorder %s94, %s95
      %p107 = scmp.eq.s32.totalorder %s22, 7
      %p108 = por %p106, %p107
      %p110 = scmp.ne.s32.totalorder %s95, %s109
      %p111 = scmp.eq.s32.totalorder %s22, 0
      %p112 = por %p110, %p111
      %s114 = sadd.s32 %s113, 1
      %p117 = scmp.eq.s32.totalorder %s16, 7
      %p118 = scmp.ne.s32.totalorder %s113, %s115
      %p119 = scmp.eq.s32.totalorder %s16, 0
      %p120 = por %p118, %p119
      %p121 = scmp.ne.s32.totalorder %s113, %s115
      %p122 = scmp.eq.s32.totalorder %s21, 7
      %p123 = por %p121, %p122
      %p124 = scmp.ne.s32.totalorder %s115, %s116
      %p125 = scmp.eq.s32.totalorder %s21, 0
      %p126 = por %p124, %p125
      %p127 = scmp.ne.s32.totalorder %s115, %s116
      %p128 = scmp.eq.s32.totalorder %s22, 7
      %p129 = por %p127, %p128
      %p131 = scmp.ne.s32.totalorder %s116, %s130
      %p132 = scmp.eq.s32.totalorder %s22, 0
      %p133 = por %p131, %p132
      %s134 = ssub.s32 %s16, %s23
      %p135 = scmp.eq.s32.totalorder %s134, 0
      %s137 = sadd.s32 %s136, 1
      %s138 = scalar_select %p135, %s136, %s137
      %p141 = pneg %p135
      %p142 = scmp.eq.s32.totalorder %s16, 7
      %p143 = por %p141, %p142
      %p144 = scmp.ne.s32.totalorder %s136, %s139
      %p145 = scmp.eq.s32.totalorder %s16, 0
      %p146 = por %p144, %p145
      %p147 = scmp.ne.s32.totalorder %s136, %s139
      %p148 = scmp.eq.s32.totalorder %s21, 7
      %p149 = por %p147, %p148
      %p150 = scmp.ne.s32.totalorder %s139, %s140
      %p151 = scmp.eq.s32.totalorder %s21, 0
      %p152 = por %p150, %p151
      %p153 = scmp.ne.s32.totalorder %s139, %s140
      %p154 = scmp.eq.s32.totalorder %s22, 7
      %p155 = por %p153, %p154
      %p157 = scmp.ne.s32.totalorder %s140, %s156
      %p158 = scmp.eq.s32.totalorder %s22, 0
      %p159 = por %p157, %p158
      %s161 = sadd.s32 %s160, 1
      %p164 = scmp.eq.s32.totalorder %s16, 7
      %p165 = scmp.ne.s32.totalorder %s160, %s162
      %p166 = scmp.eq.s32.totalorder %s16, 0
      %p167 = por %p165, %p166
      %p168 = scmp.ne.s32.totalorder %s160, %s162
      %p169 = scmp.eq.s32.totalorder %s21, 7
      %p170 = por %p168, %p169
      %p171 = scmp.ne.s32.totalorder %s162, %s163
      %p172 = scmp.eq.s32.totalorder %s21, 0
      %p173 = por %p171, %p172
      %p174 = scmp.ne.s32.totalorder %s162, %s163
      %p175 = scmp.eq.s32.totalorder %s22, 7
      %p176 = por %p174, %p175
      %p178 = scmp.ne.s32.totalorder %s163, %s177
      %p179 = scmp.eq.s32.totalorder %s22, 0
      %p180 = por %p178, %p179
      %s181 = ssub.s32 %s16, %s23
      %p182 = scmp.eq.s32.totalorder %s181, 0
      %s184 = sadd.s32 %s183, 1
      %s185 = scalar_select %p182, %s183, %s184
      %p188 = pneg %p182
      %p189 = scmp.eq.s32.totalorder %s16, 7
      %p190 = por %p188, %p189
      %p191 = scmp.ne.s32.totalorder %s183, %s186
      %p192 = scmp.eq.s32.totalorder %s16, 0
      %p193 = por %p191, %p192
      %p194 = scmp.ne.s32.totalorder %s183, %s186
      %p195 = scmp.eq.s32.totalorder %s21, 7
      %p196 = por %p194, %p195
      %p197 = scmp.ne.s32.totalorder %s186, %s187
      %p198 = scmp.eq.s32.totalorder %s21, 0
      %p199 = por %p197, %p198
      %p200 = scmp.ne.s32.totalorder %s186, %s187
      %p201 = scmp.eq.s32.totalorder %s22, 7
      %p202 = por %p200, %p201
      %p204 = scmp.ne.s32.totalorder %s187, %s203
      %p205 = scmp.eq.s32.totalorder %s22, 0
      %p206 = por %p204, %p205
      %p207 = scmp.le.s32.totalorder 1, %s16
      %p208 = scmp.lt.s32.totalorder %s16, 9
      %p209 = pnand %p207, %p208
      %p210 = pneg %p209
      // Predicated region
      $region9: #{bottleneck_forward.7} parent=5 // pred_check
        _
      $region10: #{bottleneck_forward.7} parent=5 // pred_check_branch
        %212 = sbr.rel (%p209) target = $region12
      $region11: #{bottleneck_forward.7} parent=5 // pred_region
        %s213 = ssub.s32 %s16, 1
        // Predicated region
        $region13: #{bottleneck_forward.7} parent=11 // pred_check
          %p214 = pneg %p63
        $region14: #{bottleneck_forward.7} parent=11 // pred_check_branch
          %216 = sbr.rel (%p214) target = $region16
        $region15: #{bottleneck_forward.7} parent=11 // pred_region
          _
        $region16: #{bottleneck_forward.7} parent=11 // pred_fallthru
          _
        // Predicated region
        $region17: #{bottleneck_forward.7} parent=11 // pred_check
          %p217 = pneg %p84
        $region18: #{bottleneck_forward.7} parent=11 // pred_check_branch
          %219 = sbr.rel (%p217) target = $region20
        $region19: #{bottleneck_forward.7} parent=11 // pred_region
          _
        $region20: #{bottleneck_forward.7} parent=11 // pred_fallthru
          _
        // Predicated region
        $region21: #{bottleneck_forward.7} parent=11 // pred_check
          %p220 = pneg %p105
        $region22: #{bottleneck_forward.7} parent=11 // pred_check_branch
          %222 = sbr.rel (%p220) target = $region24
        $region23: #{bottleneck_forward.7} parent=11 // pred_region
          _
        $region24: #{bottleneck_forward.7} parent=11 // pred_fallthru
          _
        // Predicated region
        $region25: #{bottleneck_forward.7} parent=11 // pred_check
          %p223 = pneg %p126
        $region26: #{bottleneck_forward.7} parent=11 // pred_check_branch
          %225 = sbr.rel (%p223) target = $region28
        $region27: #{bottleneck_forward.7} parent=11 // pred_region
          _
        $region28: #{bottleneck_forward.7} parent=11 // pred_fallthru
          _
        // Predicated region
        $region29: #{bottleneck_forward.7} parent=11 // pred_check
          %p226 = pneg %p173
        $region30: #{bottleneck_forward.7} parent=11 // pred_check_branch
          %228 = sbr.rel (%p226) target = $region32
        $region31: #{bottleneck_forward.7} parent=11 // pred_region
          _
        $region32: #{bottleneck_forward.7} parent=11 // pred_fallthru
          _
      $region12: #{bottleneck_forward.7} parent=5 // pred_fallthru
        _
      %p229 = scmp.lt.s32.totalorder %s16, 8
      // Predicated region
      $region33: #{bottleneck_forward.7} parent=5 // pred_check
        %p230 = pneg %p229
      $region34: #{bottleneck_forward.7} parent=5 // pred_check_branch
        %232 = sbr.rel (%p230) target = $region36
      $region35: #{bottleneck_forward.7} parent=5 // pred_region
        // Predicated region
        $region37: #{bottleneck_forward.7} parent=35 // pred_check
          %p233 = pneg %p36
        $region38: #{bottleneck_forward.7} parent=35 // pred_check_branch
          %235 = sbr.rel (%p233) target = $region40
        $region39: #{bottleneck_forward.7} parent=35 // pred_region
          %s236 = smul.u32 8, %s16
          %p237 = scmp.lt.s32.totalorder %s236, 63
          %s238 = scalar_select %p237, %s236, 63
          %s239 = smul.addr %s238, 2
          %s240 = smul.addr %s239, 8
          %s241 = scalar_lea.vmem %s0, %s240
          %s242 = smul.u32 8, %s16
        $region40: #{bottleneck_forward.7} parent=35 // pred_fallthru
          _
        // Predicated region
        $region41: #{bottleneck_forward.7} parent=35 // pred_check
          %p243 = pneg %p146
        $region42: #{bottleneck_forward.7} parent=35 // pred_check_branch
          %245 = sbr.rel (%p243) target = $region44
        $region43: #{bottleneck_forward.7} parent=35 // pred_region
          %s246 = smul.u32 8, %s16
          %p247 = scmp.lt.s32.totalorder %s246, 63
          %s248 = scalar_select %p247, %s246, 63
          %s249 = smul.addr %s248, 8
          %s250 = scalar_lea.vmem %s5, %s249
          %s251 = smul.u32 8, %s16
        $region44: #{bottleneck_forward.7} parent=35 // pred_fallthru
          _
      $region36: #{bottleneck_forward.7} parent=5 // pred_fallthru
        _
      %p252 = scmp.le.s32.totalorder 1, %s16
      %p253 = scmp.lt.s32.totalorder %s16, 9
      %p254 = pnand %p252, %p253
      %p255 = pneg %p254
      // Predicated region
      $region45: #{bottleneck_forward.7} parent=5 // pred_check
        _
      $region46: #{bottleneck_forward.7} parent=5 // pred_check_branch
        %257 = sbr.rel (%p254) target = $region48
      $region47: #{bottleneck_forward.7} parent=5 // pred_region
        %s258 = ssub.s32 %s16, 1
        %s259 = smul.u32 8, %s21
        %p260 = scmp.lt.s32.totalorder %s259, 63
        %s261 = scalar_select %p260, %s259, 63
        %s262 = smul.addr %s261, 2
        %s263 = smul.addr %s262, 8
        %s264 = scalar_lea.vmem %s0, %s263
        %p265 = pneg %p42
        %p266 = pneg %p39
        %p267 = pneg %p63
        %p268 = pneg %p60
        %p269 = pneg %p84
        %p270 = pneg %p81
        %p271 = pneg %p105
        %p272 = pneg %p102
        %p273 = pneg %p126
        %p274 = pneg %p123
        %s275 = smul.u32 8, %s21
        %p276 = scmp.lt.s32.totalorder %s275, 63
        %s277 = scalar_select %p276, %s275, 63
        %s278 = smul.addr %s277, 8
        %s279 = scalar_lea.vmem %s5, %s278
        %p280 = pneg %p152
        %p281 = pneg %p149
        %p282 = pneg %p173
        %p283 = pneg %p170
        %p284 = pneg %p199
        %p285 = pneg %p196
        %s286 = sand.u32 %s186, 1
        %s287 = scalar_lea.sflag [#allocation3], %s286
        %s288 = sand.u32 %s186, 1
        %s289 = smul.addr %s288, 128
        %s290 = scalar_lea.vmem [#allocation2], %s289
        %s291 = smul.u32 8, %s21
        %p292 = scmp.lt.s32.totalorder %s291, 63
        %s293 = scalar_select %p292, %s291, 63
        %s294 = smul.addr %s293, 2
        %s295 = smul.addr %s294, 8
        %s296 = scalar_lea.vmem %s0, %s295
        %s297 = smul.u32 8, %s21
        %s298 = smul.u32 8, %s21
        %p299 = scmp.lt.s32.totalorder %s298, 63
        %s300 = scalar_select %p299, %s298, 63
        %s301 = smul.addr %s300, 8
        %s302 = scalar_lea.vmem %s5, %s301
        %s303 = smul.u32 8, %s21
        %s304 = smul.u32 8, %s21
        %v305 = vld [vmem:[%s1] sm:$0xff]
        %v306 = vld [vmem:[%s1 + $0x8] sm:$0xff]
        %v307 = vld [vmem:[%s1 + $0x10] sm:$0xff]
        %v308 = vld [vmem:[%s1 + $0x18] sm:$0xff]
        %v309 = vld [vmem:[%s1 + $0x20] sm:$0xff]
        %v310 = vld [vmem:[%s1 + $0x28] sm:$0xff]
        %v311 = vld [vmem:[%s1 + $0x30] sm:$0xff]
        %v312 = vld [vmem:[%s1 + $0x38] sm:$0xff]
        %v313 = vld [vmem:[%s1 + $0x40] sm:$0xff]
        %v314 = vld [vmem:[%s1 + $0x48] sm:$0xff]
        %v315 = vld [vmem:[%s1 + $0x50] sm:$0xff]
        %v316 = vld [vmem:[%s1 + $0x58] sm:$0xff]
        %v317 = vld [vmem:[%s1 + $0x60] sm:$0xff]
        %v318 = vld [vmem:[%s1 + $0x68] sm:$0xff]
        %v319 = vld [vmem:[%s1 + $0x70] sm:$0xff]
        %v320 = vld [vmem:[%s1 + $0x78] sm:$0xff]
        %v321 = vadd.f32 %v305, %v307
        %v322 = vadd.f32 %v321, %v309
        %v323 = vadd.f32 %v322, %v311
        %v324 = vadd.f32 %v323, %v313
        %v325 = vadd.f32 %v324, %v315
        %v326 = vadd.f32 %v325, %v317
        %v327 = vadd.f32 %v326, %v319
        %v328 = vrot.slane %v327, 4
        %v329 = vadd.f32 %v327, %v328
        %v330 = vrot.slane %v329, 2
        %v331 = vadd.f32 %v329, %v330
        %v332 = vrot.slane %v331, 1
        %v333 = vadd.f32 %v331, %v332
        %v334 = vadd.f32 %v306, %v308
        %v335 = vadd.f32 %v334, %v310
        %v336 = vadd.f32 %v335, %v312
        %v337 = vadd.f32 %v336, %v314
        %v338 = vadd.f32 %v337, %v316
        %v339 = vadd.f32 %v338, %v318
        %v340 = vadd.f32 %v339, %v320
        %v341 = vrot.slane %v340, 4
        %v342 = vadd.f32 %v340, %v341
        %v343 = vrot.slane %v342, 2
        %v344 = vadd.f32 %v342, %v343
        %v345 = vrot.slane %v344, 1
        %v346 = vadd.f32 %v344, %v345
        %v347 = vmul.f32 %v333, 0.001953125
        %v348 = vmul.f32 %v346, 0.001953125
        %v349 = vld [vmem:[%s2] sm:$0xff]
        %v350 = vld [vmem:[%s2 + $0x8] sm:$0xff]
        %v351 = vld [vmem:[%s2 + $0x10] sm:$0xff]
        %v352 = vld [vmem:[%s2 + $0x18] sm:$0xff]
        %v353 = vld [vmem:[%s2 + $0x20] sm:$0xff]
        %v354 = vld [vmem:[%s2 + $0x28] sm:$0xff]
        %v355 = vld [vmem:[%s2 + $0x30] sm:$0xff]
        %v356 = vld [vmem:[%s2 + $0x38] sm:$0xff]
        %v357 = vld [vmem:[%s2 + $0x40] sm:$0xff]
        %v358 = vld [vmem:[%s2 + $0x48] sm:$0xff]
        %v359 = vld [vmem:[%s2 + $0x50] sm:$0xff]
        %v360 = vld [vmem:[%s2 + $0x58] sm:$0xff]
        %v361 = vld [vmem:[%s2 + $0x60] sm:$0xff]
        %v362 = vld [vmem:[%s2 + $0x68] sm:$0xff]
        %v363 = vld [vmem:[%s2 + $0x70] sm:$0xff]
        %v364 = vld [vmem:[%s2 + $0x78] sm:$0xff]
        %v365 = vadd.f32 %v349, %v351
        %v366 = vadd.f32 %v365, %v353
        %v367 = vadd.f32 %v366, %v355
        %v368 = vadd.f32 %v367, %v357
        %v369 = vadd.f32 %v368, %v359
        %v370 = vadd.f32 %v369, %v361
        %v371 = vadd.f32 %v370, %v363
        %v372 = vrot.slane %v371, 4
        %v373 = vadd.f32 %v371, %v372
        %v374 = vrot.slane %v373, 2
        %v375 = vadd.f32 %v373, %v374
        %v376 = vrot.slane %v375, 1
        %v377 = vadd.f32 %v375, %v376
        %v378 = vadd.f32 %v350, %v352
        %v379 = vadd.f32 %v378, %v354
        %v380 = vadd.f32 %v379, %v356
        %v381 = vadd.f32 %v380, %v358
        %v382 = vadd.f32 %v381, %v360
        %v383 = vadd.f32 %v382, %v362
        %v384 = vadd.f32 %v383, %v364
        %v385 = vrot.slane %v384, 4
        %v386 = vadd.f32 %v384, %v385
        %v387 = vrot.slane %v386, 2
        %v388 = vadd.f32 %v386, %v387
        %v389 = vrot.slane %v388, 1
        %v390 = vadd.f32 %v388, %v389
        %v391 = vmul.f32 %v377, 0.001953125
        %v392 = vmul.f32 %v390, 0.001953125
        %v393 = vmul.f32 %v347, %v347
        %v394 = vmul.f32 %v348, %v348
        %v395 = vsub.f32 %v391, %v393
        %v396 = vsub.f32 %v392, %v394
        %v397 = vmax.f32 %v395, 0.0
        %v398 = vmax.f32 %v396, 0.0
        %v399 = vld [vmem:[%s3] sm:$0x3]
        %v400 = vadd.f32 %v397, 1e-05
        %v401 = vadd.f32 %v398, 1e-05
        %v402 = vrsqrt.pop %v400
        %v403 = vrsqrt.pop %v401
        %v406 = vcombine.low %v402, %v403
        %v408 = vunpack.c.l.s4 1966171168
        %v409 = vunpack.c.0.s8 %v408
        %v410 = vlaneseq
        %v411 = vshrl.u32 %v410, 7
        %v412 = vsub.s32 %v409, %v411
        %v413 = vrot.slane %v406, %v412
        %v415 = vunpack.c.l.s4 1966171168
        %v416 = vunpack.c.0.s8 %v415
        %v417 = vlaneseq
        %v418 = vshrl.u32 %v417, 7
        %v419 = vsub.s32 %v416, %v418
        %v420 = vrot.slane %v413, %v419
        %v422 = vmul.f32 %v399, %v420
        %v423 = vld [vmem:[%s4] sm:$0x3]
        %v425 = vlaneseq
        %v426 = vshrl.u32 %v425, 7
        %v427 = vsub.s32 0, %v426
        %v428 = vrot.slane %v422, %v427
        %v429 = vlaneseq
        %v430 = vshrl.u32 %v429, 7
        %v431 = vsub.s32 1, %v430
        %v432 = vrot.slane %v422, %v431
        %v435 = vmul.f32 %v347, %v428
        %v436 = vmul.f32 %v348, %v432
        %v439 = vcombine.low %v435, %v436
        %v441 = vunpack.c.l.s4 1966171168
        %v442 = vunpack.c.0.s8 %v441
        %v443 = vlaneseq
        %v444 = vshrl.u32 %v443, 7
        %v445 = vsub.s32 %v442, %v444
        %v446 = vrot.slane %v439, %v445
        %v448 = vunpack.c.l.s4 1966171168
        %v449 = vunpack.c.0.s8 %v448
        %v450 = vlaneseq
        %v451 = vshrl.u32 %v450, 7
        %v452 = vsub.s32 %v449, %v451
        %v453 = vrot.slane %v446, %v452
        %v455 = vsub.f32 %v423, %v453
        %v456 = vld [vmem:[%s302] sm:$0xff]
        %v457 = vld [vmem:[%s302 + $0x8] sm:$0xff]
        %v458 = vld [vmem:[%s302 + $0x10] sm:$0xff]
        %v459 = vld [vmem:[%s302 + $0x18] sm:$0xff]
        %v460 = vld [vmem:[%s302 + $0x20] sm:$0xff]
        %v461 = vld [vmem:[%s302 + $0x28] sm:$0xff]
        %v462 = vld [vmem:[%s302 + $0x30] sm:$0xff]
        %v463 = vld [vmem:[%s302 + $0x38] sm:$0xff]
        %v464 = vld [vmem:[%s6] sm:$0xff]
        %v465 = vld [vmem:[%s6 + $0x8] sm:$0xff]
        %v466 = vld [vmem:[%s6 + $0x10] sm:$0xff]
        %v467 = vld [vmem:[%s6 + $0x18] sm:$0xff]
        %v468 = vld [vmem:[%s6 + $0x20] sm:$0xff]
        %v469 = vld [vmem:[%s6 + $0x28] sm:$0xff]
        %v470 = vld [vmem:[%s6 + $0x30] sm:$0xff]
        %v471 = vld [vmem:[%s6 + $0x38] sm:$0xff]
        %v472 = vld [vmem:[%s6 + $0x40] sm:$0xff]
        %v473 = vld [vmem:[%s6 + $0x48] sm:$0xff]
        %v474 = vld [vmem:[%s6 + $0x50] sm:$0xff]
        %v475 = vld [vmem:[%s6 + $0x58] sm:$0xff]
        %v476 = vld [vmem:[%s6 + $0x60] sm:$0xff]
        %v477 = vld [vmem:[%s6 + $0x68] sm:$0xff]
        %v478 = vld [vmem:[%s6 + $0x70] sm:$0xff]
        %v479 = vld [vmem:[%s6 + $0x78] sm:$0xff]
        %vm480 = vcmask 523264
        %v482 = vsel %vm480, %v456, 0
        %v485 = vsel %vm480, %v457, 0
        %v488 = vsel %vm480, %v458, 0
        %v491 = vsel %vm480, %v459, 0
        %v494 = vsel %vm480, %v460, 0
        %v497 = vsel %vm480, %v461, 0
        %v500 = vsel %vm480, %v462, 0
        %v503 = vsel %vm480, %v463, 0
        %505 = vmatprep.subr.mxu0 %v465
        %506 = vmatpush1.msra.mxu0 %v464
        %507 = vmatprep.subr.mxu0 %v467
        %508 = vmatpush1.msra.mxu0 %v466
        %509 = vmatprep.subr.mxu0 %v469
        %510 = vmatpush1.msra.mxu0 %v468
        %511 = vmatprep.subr.mxu0 %v471
        %512 = vmatpush1.msra.mxu0 %v470
        %513 = vmatprep.subr.mxu0 %v473
        %514 = vmatpush1.msra.mxu0 %v472
        %515 = vmatprep.subr.mxu0 %v475
        %516 = vmatpush1.msra.mxu0 %v474
        %517 = vmatprep.subr.mxu0 %v477
        %518 = vmatpush1.msra.mxu0 %v476
        %519 = vmatprep.subr.mxu0 %v479
        %520 = vmatpush1.msra.mxu0 %v478
        %521 = vmatprep.subr.mxu0 0.0
        %522 = vmatpush1.msra.mxu0 0.0
        %523 = vmatprep.subr.mxu0 0.0
        %524 = vmatpush1.msra.mxu0 0.0
        %525 = vmatprep.subr.mxu0 0.0
        %526 = vmatpush1.msra.mxu0 0.0
        %527 = vmatprep.subr.mxu0 0.0
        %528 = vmatpush1.msra.mxu0 0.0
        %529 = vmatprep.subr.mxu0 0.0
        %530 = vmatpush1.msra.mxu0 0.0
        %531 = vmatprep.subr.mxu0 0.0
        %532 = vmatpush1.msra.mxu0 0.0
        %533 = vmatprep.subr.mxu0 0.0
        %534 = vmatpush1.msra.mxu0 0.0
        %535 = vmatprep.subr.mxu0 0.0
        %536 = vmatpush1.msra.mxu0 0.0
        %537 = vmatprep.subr.mxu0 0.0
        %538 = vmatpush1.msra.mxu0 0.0
        %539 = vmatprep.subr.mxu0 0.0
        %540 = vmatpush1.msra.mxu0 0.0
        %541 = vmatprep.subr.mxu0 0.0
        %542 = vmatpush1.msra.mxu0 0.0
        %543 = vmatprep.subr.mxu0 0.0
        %544 = vmatpush1.msra.mxu0 0.0
        %545 = vmatprep.subr.mxu0 0.0
        %546 = vmatpush1.msra.mxu0 0.0
        %547 = vmatprep.subr.mxu0 0.0
        %548 = vmatpush1.msra.mxu0 0.0
        %549 = vmatprep.subr.mxu0 0.0
        %550 = vmatpush1.msra.mxu0 0.0
        %551 = vmatprep.subr.mxu0 0.0
        %552 = vmatpush1.msra.mxu0 0.0
        %553 = vmatprep.subr.mxu0 0.0
        %554 = vmatpush1.msra.mxu0 0.0
        %555 = vmatprep.subr.mxu0 0.0
        %556 = vmatpush1.msra.mxu0 0.0
        %557 = vmatprep.subr.mxu0 0.0
        %558 = vmatpush1.msra.mxu0 0.0
        %559 = vmatprep.subr.mxu0 0.0
        %560 = vmatpush1.msra.mxu0 0.0
        %561 = vmatprep.subr.mxu0 0.0
        %562 = vmatpush1.msra.mxu0 0.0
        %563 = vmatprep.subr.mxu0 0.0
        %564 = vmatpush1.msra.mxu0 0.0
        %565 = vmatprep.subr.mxu0 0.0
        %566 = vmatpush1.msra.mxu0 0.0
        %567 = vmatprep.subr.mxu0 0.0
        %568 = vmatpush1.msra.mxu0 0.0
        %569 = vmatprep.mubr.f32.mxu0 0.0
        %570 = vmatmul.mubr.f32.gmra.mrb[0].mxu0 %v482
        %v571 = vpop.f32.mrb[0].mxu0
        %v572 = vadd.f32 0.0, %v571
        %v573 = vpop.f32.mrb[0].mxu0
        %v574 = vadd.f32 0.0, %v573
        %575 = vmatprep.mubr.f32.mxu0 0.0
        %576 = vmatmul.mubr.f32.gmra.mrb[0].mxu0 %v485
        %v577 = vpop.f32.mrb[0].mxu0
        %v578 = vadd.f32 0.0, %v577
        %v579 = vpop.f32.mrb[0].mxu0
        %v580 = vadd.f32 0.0, %v579
        %581 = vmatprep.mubr.f32.mxu0 0.0
        %582 = vmatmul.mubr.f32.gmra.mrb[0].mxu0 %v488
        %v583 = vpop.f32.mrb[0].mxu0
        %v584 = vadd.f32 0.0, %v583
        %v585 = vpop.f32.mrb[0].mxu0
        %v586 = vadd.f32 0.0, %v585
        %587 = vmatprep.mubr.f32.mxu0 0.0
        %588 = vmatmul.mubr.f32.gmra.mrb[0].mxu0 %v491
        %v589 = vpop.f32.mrb[0].mxu0
        %v590 = vadd.f32 0.0, %v589
        %v591 = vpop.f32.mrb[0].mxu0
        %v592 = vadd.f32 0.0, %v591
        %593 = vmatprep.mubr.f32.mxu0 0.0
        %594 = vmatmul.mubr.f32.gmra.mrb[0].mxu0 %v494
        %v595 = vpop.f32.mrb[0].mxu0
        %v596 = vadd.f32 0.0, %v595
        %v597 = vpop.f32.mrb[0].mxu0
        %v598 = vadd.f32 0.0, %v597
        %599 = vmatprep.mubr.f32.mxu0 0.0
        %600 = vmatmul.mubr.f32.gmra.mrb[0].mxu0 %v497
        %v601 = vpop.f32.mrb[0].mxu0
        %v602 = vadd.f32 0.0, %v601
        %v603 = vpop.f32.mrb[0].mxu0
        %v604 = vadd.f32 0.0, %v603
        %605 = vmatprep.mubr.f32.mxu0 0.0
        %606 = vmatmul.mubr.f32.gmra.mrb[0].mxu0 %v500
        %v607 = vpop.f32.mrb[0].mxu0
        %v608 = vadd.f32 0.0, %v607
        %v609 = vpop.f32.mrb[0].mxu0
        %v610 = vadd.f32 0.0, %v609
        %611 = vmatprep.mubr.f32.mxu0 0.0
        %612 = vmatmul.mubr.f32.gmra.mrb[0].mxu0 %v503
        %v613 = vpop.f32.mrb[0].mxu0
        %v614 = vadd.f32 0.0, %v613
        %v615 = vpop.f32.mrb[0].mxu0
        %v616 = vadd.f32 0.0, %v615
        %617 = vdwg.mxu0
        %v618 = vld [vmem:[%s296] sm:$0xff]
        %v619 = vld [vmem:[%s296 + $0x8] sm:$0xff]
        %v620 = vld [vmem:[%s296 + $0x10] sm:$0xff]
        %v621 = vld [vmem:[%s296 + $0x18] sm:$0xff]
        %v622 = vld [vmem:[%s296 + $0x20] sm:$0xff]
        %v623 = vld [vmem:[%s296 + $0x28] sm:$0xff]
        %v624 = vld [vmem:[%s296 + $0x30] sm:$0xff]
        %v625 = vld [vmem:[%s296 + $0x38] sm:$0xff]
        %v626 = vld [vmem:[%s296 + $0x40] sm:$0xff]
        %v627 = vld [vmem:[%s296 + $0x48] sm:$0xff]
        %v628 = vld [vmem:[%s296 + $0x50] sm:$0xff]
        %v629 = vld [vmem:[%s296 + $0x58] sm:$0xff]
        %v630 = vld [vmem:[%s296 + $0x60] sm:$0xff]
        %v631 = vld [vmem:[%s296 + $0x68] sm:$0xff]
        %v632 = vld [vmem:[%s296 + $0x70] sm:$0xff]
        %v633 = vld [vmem:[%s296 + $0x78] sm:$0xff]
        %v634 = vmul.f32 %v618, %v428
        %v635 = vmul.f32 %v619, %v432
        %v636 = vmul.f32 %v620, %v428
        %v637 = vmul.f32 %v621, %v432
        %v638 = vmul.f32 %v622, %v428
        %v639 = vmul.f32 %v623, %v432
        %v640 = vmul.f32 %v624, %v428
        %v641 = vmul.f32 %v625, %v432
        %v642 = vmul.f32 %v626, %v428
        %v643 = vmul.f32 %v627, %v432
        %v644 = vmul.f32 %v628, %v428
        %v645 = vmul.f32 %v629, %v432
        %v646 = vmul.f32 %v630, %v428
        %v647 = vmul.f32 %v631, %v432
        %v648 = vmul.f32 %v632, %v428
        %v649 = vmul.f32 %v633, %v432
        %v651 = vlaneseq
        %v652 = vshrl.u32 %v651, 7
        %v653 = vsub.s32 0, %v652
        %v654 = vrot.slane %v455, %v653
        %v655 = vlaneseq
        %v656 = vshrl.u32 %v655, 7
        %v657 = vsub.s32 1, %v656
        %v658 = vrot.slane %v455, %v657
        %v661 = vadd.f32 %v634, %v654
        %v662 = vadd.f32 %v635, %v658
        %v663 = vadd.f32 %v636, %v654
        %v664 = vadd.f32 %v637, %v658
        %v665 = vadd.f32 %v638, %v654
        %v666 = vadd.f32 %v639, %v658
        %v667 = vadd.f32 %v640, %v654
        %v668 = vadd.f32 %v641, %v658
        %v669 = vadd.f32 %v642, %v654
        %v670 = vadd.f32 %v643, %v658
        %v671 = vadd.f32 %v644, %v654
        %v672 = vadd.f32 %v645, %v658
        %v673 = vadd.f32 %v646, %v654
        %v674 = vadd.f32 %v647, %v658
        %v675 = vadd.f32 %v648, %v654
        %v676 = vadd.f32 %v649, %v658
        %v677 = vadd.f32 %v661, %v572
        %v678 = vadd.f32 %v662, %v574
        %v679 = vadd.f32 %v663, %v578
        %v680 = vadd.f32 %v664, %v580
        %v681 = vadd.f32 %v665, %v584
        %v682 = vadd.f32 %v666, %v586
        %v683 = vadd.f32 %v667, %v590
        %v684 = vadd.f32 %v668, %v592
        %v685 = vadd.f32 %v669, %v596
        %v686 = vadd.f32 %v670, %v598
        %v687 = vadd.f32 %v671, %v602
        %v688 = vadd.f32 %v672, %v604
        %v689 = vadd.f32 %v673, %v608
        %v690 = vadd.f32 %v674, %v610
        %v691 = vadd.f32 %v675, %v614
        %v692 = vadd.f32 %v676, %v616
        %v693 = vmax.f32 %v677, 0.0
        %v694 = vmax.f32 %v678, 0.0
        %v695 = vmax.f32 %v679, 0.0
        %v696 = vmax.f32 %v680, 0.0
        %v697 = vmax.f32 %v681, 0.0
        %v698 = vmax.f32 %v682, 0.0
        %v699 = vmax.f32 %v683, 0.0
        %v700 = vmax.f32 %v684, 0.0
        %v701 = vmax.f32 %v685, 0.0
        %v702 = vmax.f32 %v686, 0.0
        %v703 = vmax.f32 %v687, 0.0
        %v704 = vmax.f32 %v688, 0.0
        %v705 = vmax.f32 %v689, 0.0
        %v706 = vmax.f32 %v690, 0.0
        %v707 = vmax.f32 %v691, 0.0
        %v708 = vmax.f32 %v692, 0.0
        %709 = vst [vmem:[%s290] sm:$0xff] %v693
        %710 = vst [vmem:[%s290 + $0x8] sm:$0xff] %v694
        %711 = vst [vmem:[%s290 + $0x10] sm:$0xff] %v695
        %712 = vst [vmem:[%s290 + $0x18] sm:$0xff] %v696
        %713 = vst [vmem:[%s290 + $0x20] sm:$0xff] %v697
        %714 = vst [vmem:[%s290 + $0x28] sm:$0xff] %v698
        %715 = vst [vmem:[%s290 + $0x30] sm:$0xff] %v699
        %716 = vst [vmem:[%s290 + $0x38] sm:$0xff] %v700
        %717 = vst [vmem:[%s290 + $0x40] sm:$0xff] %v701
        %718 = vst [vmem:[%s290 + $0x48] sm:$0xff] %v702
        %719 = vst [vmem:[%s290 + $0x50] sm:$0xff] %v703
        %720 = vst [vmem:[%s290 + $0x58] sm:$0xff] %v704
        %721 = vst [vmem:[%s290 + $0x60] sm:$0xff] %v705
        %722 = vst [vmem:[%s290 + $0x68] sm:$0xff] %v706
        %723 = vst [vmem:[%s290 + $0x70] sm:$0xff] %v707
        %724 = vst [vmem:[%s290 + $0x78] sm:$0xff] %v708
        %s725 = sand.u32 %s186, 1
        %s726 = scalar_lea.sflag [#allocation3], %s725
        %s727 = sand.u32 %s186, 1
        %s728 = smul.addr %s727, 128
        %s729 = scalar_lea.vmem [#allocation2], %s728
        // Predicated region
        $region49: #{bottleneck_forward.7} parent=47 // pred_check
          %p730 = pneg %p196
        $region50: #{bottleneck_forward.7} parent=47 // pred_check_branch
          %732 = sbr.rel (%p730) target = $region52
        $region51: #{bottleneck_forward.7} parent=47 // pred_region
          %s733 = smul.u32 8, %s21
          %s735 = ssub.s32 2048, 2048
          %736 = vsyncadd %s726, %s735
          %s737 = smul.addr %s733, 2
          %s738 = smul.addr %s737, 128
          %s739 = scalar_lea.hbm %s7, %s738
          %s740 = sshll.u32 %s729, 4
          %s741 = int_to_ptr.vmem [resolvable:$true] %s740
          %746 = dma.vmem_to_hbm [thread:$0]  %s741, 2048, %s739, %s726, 256, 256, 16
        $region52: #{bottleneck_forward.7} parent=47 // pred_fallthru
          _
      $region48: #{bottleneck_forward.7} parent=5 // pred_fallthru
        _
      %p747 = scmp.le.s32.totalorder 2, %s16
      // Predicated region
      $region53: #{bottleneck_forward.7} parent=5 // pred_check
        %p748 = pneg %p747
      $region54: #{bottleneck_forward.7} parent=5 // pred_check_branch
        %750 = sbr.rel (%p748) target = $region56
      $region55: #{bottleneck_forward.7} parent=5 // pred_region
        %s751 = ssub.s32 %s16, 2
        // Predicated region
        $region57: #{bottleneck_forward.7} parent=55 // pred_check
          %p752 = pneg %p202
        $region58: #{bottleneck_forward.7} parent=55 // pred_check_branch
          %754 = sbr.rel (%p752) target = $region60
        $region59: #{bottleneck_forward.7} parent=55 // pred_region
          %s755 = sand.u32 %s187, 1
          %s756 = scalar_lea.sflag [#allocation3], %s755
          %s757 = sand.u32 %s187, 1
          %s758 = smul.addr %s757, 128
          %s759 = scalar_lea.vmem [#allocation2], %s758
          %760 = dma.done %s756, 2048
        $region60: #{bottleneck_forward.7} parent=55 // pred_fallthru
          _
      $region56: #{bottleneck_forward.7} parent=5 // pred_fallthru
        _
    $region6: #{bottleneck_forward.7} parent=1 // loop_footer
      %s20 = sadd.s32 1, %s16
    $region7: #{bottleneck_forward.7} parent=1 // loop_footer_branch
      %15 = sbr.rel target = $region3
    $region8: #{bottleneck_forward.7} parent=1 // loop_exit
      _
    %761 = vsyncpa [#allocation3], 1
    %s762 = scalar_lea.sflag [#allocation3], 1
    %763 = vsyncpa %s762, 1

// kernel: bottleneck_forward.4
$region0: #{bottleneck_forward.4}
  #allocation0 [shape = 'u32[]', space=smem, size = 0x4, offset = 0x4, fixed_abs, tag = 'smem constant byte address 0x4 - core index']
  #allocation1 [shape = 'u32[144,128]{1,0:T(1,128)}', space=vmem, size = 0x12000, scoped, tag = 'internal scratch']
  %s0 = inlined_call_operand.vmem [shape: f32[512,64], index: 0, kind: input, shape index: {}]
  %s1 = inlined_call_operand.vmem [shape: bf16[64,128], index: 1, kind: input, shape index: {}]
  %s2 = inlined_call_operand.vmem [shape: f32[1,128], index: 2, kind: input, shape index: {}]
  %s3 = inlined_call_operand.vmem [shape: f32[512,128], index: 3, kind: output, shape index: {0}]
  %s4 = inlined_call_operand.vmem [shape: f32[64,128], index: 4, kind: output, shape index: {1}]
  %s5 = inlined_call_operand.vmem [shape: f32[64,128], index: 5, kind: output, shape index: {2}]
  %6 = xla_tuple %s3, %s4, %s5
  %s7 = sld [smem:[#allocation0]]
  $region61: #{bottleneck_forward.4} parent=0
    _
  %s9 = ssub.s32 1, %s7
  %s10 = scalar_select 0, %s9, %s7
  loop: start=0, step=1, limit=10
  $region2: #{bottleneck_forward.4} parent=0 // loop_pre_header
    _
  $region3: #{bottleneck_forward.4} parent=0 // loop_header
    %s12 = sphi 0, %s16
    %p13 = scmp.ge.s32.totalorder %s12, 10
    %s22 = sphi 0, %s24
    %s25 = sphi 0, %s22
    %s26 = sphi 0, %s25
    %s42 = sphi 0, %s26
    %s46 = sphi 0, %s46
    %s48 = sphi 0, %s46
    %s49 = sphi 0, %s48
    %s63 = sphi 0, %s49
    %s67 = sphi 0, %s67
    %s69 = sphi 0, %s67
    %s70 = sphi 0, %s69
    %s84 = sphi 0, %s70
    %s90 = sphi 0, %s92
    %s93 = sphi 0, %s90
    %s94 = sphi 0, %s93
    %s110 = sphi 0, %s94
    %s116 = sphi 0, %s118
    %s119 = sphi 0, %s116
    %s120 = sphi 0, %s119
    %s136 = sphi 0, %s120
    %s142 = sphi 0, %s144
    %s145 = sphi 0, %s142
    %s146 = sphi 0, %s145
    %s162 = sphi 0, %s146
  $region4: #{bottleneck_forward.4} parent=0 // loop_header_branch
    %15 = sbr.rel (%p13) target = $region8
  $region5: #{bottleneck_forward.4} parent=0 // loop_body
    %s17 = ssub.s32 %s12, 1
    %s18 = ssub.s32 %s12, 2
    %s19 = sadd.s32 %s12, 1
    %s20 = ssub.s32 %s12, %s19
    %p21 = scmp.eq.s32.totalorder %s20, 0
    %s23 = sadd.s32 %s22, 1
    %s24 = scalar_select %p21, %s22, %s23
    %p27 = pneg %p21
    %p28 = scmp.eq.s32.totalorder %s12, 7
    %p29 = por %p27, %p28
    %p30 = scmp.ne.s32.totalorder %s22, %s25
    %p31 = scmp.eq.s32.totalorder %s12, 0
    %p32 = por %p30, %p31
    %p33 = scmp.ne.s32.totalorder %s22, %s25
    %p34 = scmp.eq.s32.totalorder %s17, 7
    %p35 = por %p33, %p34
    %p36 = scmp.ne.s32.totalorder %s25, %s26
    %p37 = scmp.eq.s32.totalorder %s17, 0
    %p38 = por %p36, %p37
    %p39 = scmp.ne.s32.totalorder %s25, %s26
    %p40 = scmp.eq.s32.totalorder %s18, 7
    %p41 = por %p39, %p40
    %p43 = scmp.ne.s32.totalorder %s26, %s42
    %p44 = scmp.eq.s32.totalorder %s18, 0
    %p45 = por %p43, %p44
    %s47 = sadd.s32 %s46, 1
    %p50 = scmp.eq.s32.totalorder %s12, 7
    %p51 = scmp.ne.s32.totalorder %s46, %s48
    %p52 = scmp.eq.s32.totalorder %s12, 0
    %p53 = por %p51, %p52
    %p54 = scmp.ne.s32.totalorder %s46, %s48
    %p55 = scmp.eq.s32.totalorder %s17, 7
    %p56 = por %p54, %p55
    %p57 = scmp.ne.s32.totalorder %s48, %s49
    %p58 = scmp.eq.s32.totalorder %s17, 0
    %p59 = por %p57, %p58
    %p60 = scmp.ne.s32.totalorder %s48, %s49
    %p61 = scmp.eq.s32.totalorder %s18, 7
    %p62 = por %p60, %p61
    %p64 = scmp.ne.s32.totalorder %s49, %s63
    %p65 = scmp.eq.s32.totalorder %s18, 0
    %p66 = por %p64, %p65
    %s68 = sadd.s32 %s67, 1
    %p71 = scmp.eq.s32.totalorder %s12, 7
    %p72 = scmp.ne.s32.totalorder %s67, %s69
    %p73 = scmp.eq.s32.totalorder %s12, 0
    %p74 = por %p72, %p73
    %p75 = scmp.ne.s32.totalorder %s67, %s69
    %p76 = scmp.eq.s32.totalorder %s17, 7
    %p77 = por %p75, %p76
    %p78 = scmp.ne.s32.totalorder %s69, %s70
    %p79 = scmp.eq.s32.totalorder %s17, 0
    %p80 = por %p78, %p79
    %p81 = scmp.ne.s32.totalorder %s69, %s70
    %p82 = scmp.eq.s32.totalorder %s18, 7
    %p83 = por %p81, %p82
    %p85 = scmp.ne.s32.totalorder %s70, %s84
    %p86 = scmp.eq.s32.totalorder %s18, 0
    %p87 = por %p85, %p86
    %s88 = ssub.s32 %s12, %s19
    %p89 = scmp.eq.s32.totalorder %s88, 0
    %s91 = sadd.s32 %s90, 1
    %s92 = scalar_select %p89, %s90, %s91
    %p95 = pneg %p89
    %p96 = scmp.eq.s32.totalorder %s12, 7
    %p97 = por %p95, %p96
    %p98 = scmp.ne.s32.totalorder %s90, %s93
    %p99 = scmp.eq.s32.totalorder %s12, 0
    %p100 = por %p98, %p99
    %p101 = scmp.ne.s32.totalorder %s90, %s93
    %p102 = scmp.eq.s32.totalorder %s17, 7
    %p103 = por %p101, %p102
    %p104 = scmp.ne.s32.totalorder %s93, %s94
    %p105 = scmp.eq.s32.totalorder %s17, 0
    %p106 = por %p104, %p105
    %p107 = scmp.ne.s32.totalorder %s93, %s94
    %p108 = scmp.eq.s32.totalorder %s18, 7
    %p109 = por %p107, %p108
    %p111 = scmp.ne.s32.totalorder %s94, %s110
    %p112 = scmp.eq.s32.totalorder %s18, 0
    %p113 = por %p111, %p112
    %s114 = ssub.s32 %s12, %s19
    %p115 = scmp.eq.s32.totalorder %s114, 0
    %s117 = sadd.s32 %s116, 1
    %s118 = scalar_select %p115, %s116, %s117
    %p121 = pneg %p115
    %p122 = scmp.eq.s32.totalorder %s12, 7
    %p123 = por %p121, %p122
    %p124 = scmp.ne.s32.totalorder %s116, %s119
    %p125 = scmp.eq.s32.totalorder %s12, 0
    %p126 = por %p124, %p125
    %p127 = scmp.ne.s32.totalorder %s116, %s119
    %p128 = scmp.eq.s32.totalorder %s17, 7
    %p129 = por %p127, %p128
    %p130 = scmp.ne.s32.totalorder %s119, %s120
    %p131 = scmp.eq.s32.totalorder %s17, 0
    %p132 = por %p130, %p131
    %p133 = scmp.ne.s32.totalorder %s119, %s120
    %p134 = scmp.eq.s32.totalorder %s18, 7
    %p135 = por %p133, %p134
    %p137 = scmp.ne.s32.totalorder %s120, %s136
    %p138 = scmp.eq.s32.totalorder %s18, 0
    %p139 = por %p137, %p138
    %s140 = ssub.s32 %s12, %s19
    %p141 = scmp.eq.s32.totalorder %s140, 0
    %s143 = sadd.s32 %s142, 1
    %s144 = scalar_select %p141, %s142, %s143
    %p147 = pneg %p141
    %p148 = scmp.eq.s32.totalorder %s12, 7
    %p149 = por %p147, %p148
    %p150 = scmp.ne.s32.totalorder %s142, %s145
    %p151 = scmp.eq.s32.totalorder %s12, 0
    %p152 = por %p150, %p151
    %p153 = scmp.ne.s32.totalorder %s142, %s145
    %p154 = scmp.eq.s32.totalorder %s17, 7
    %p155 = por %p153, %p154
    %p156 = scmp.ne.s32.totalorder %s145, %s146
    %p157 = scmp.eq.s32.totalorder %s17, 0
    %p158 = por %p156, %p157
    %p159 = scmp.ne.s32.totalorder %s145, %s146
    %p160 = scmp.eq.s32.totalorder %s18, 7
    %p161 = por %p159, %p160
    %p163 = scmp.ne.s32.totalorder %s146, %s162
    %p164 = scmp.eq.s32.totalorder %s18, 0
    %p165 = por %p163, %p164
    %p166 = scmp.le.s32.totalorder 1, %s12
    %p167 = scmp.lt.s32.totalorder %s12, 9
    %p168 = pnand %p166, %p167
    %p169 = pneg %p168
    // Predicated region
    $region9: #{bottleneck_forward.4} parent=5 // pred_check
      _
    $region10: #{bottleneck_forward.4} parent=5 // pred_check_branch
      %171 = sbr.rel (%p168) target = $region12
    $region11: #{bottleneck_forward.4} parent=5 // pred_region
      %s172 = ssub.s32 %s12, 1
      // Predicated region
      $region13: #{bottleneck_forward.4} parent=11 // pred_check
        %p173 = pneg %p59
      $region14: #{bottleneck_forward.4} parent=11 // pred_check_branch
        %175 = sbr.rel (%p173) target = $region16
      $region15: #{bottleneck_forward.4} parent=11 // pred_region
        _
      $region16: #{bottleneck_forward.4} parent=11 // pred_fallthru
        _
      // Predicated region
      $region17: #{bottleneck_forward.4} parent=11 // pred_check
        %p176 = pneg %p80
      $region18: #{bottleneck_forward.4} parent=11 // pred_check_branch
        %178 = sbr.rel (%p176) target = $region20
      $region19: #{bottleneck_forward.4} parent=11 // pred_region
        _
      $region20: #{bottleneck_forward.4} parent=11 // pred_fallthru
        _
    $region12: #{bottleneck_forward.4} parent=5 // pred_fallthru
      _
    %p179 = scmp.lt.s32.totalorder %s12, 8
    // Predicated region
    $region21: #{bottleneck_forward.4} parent=5 // pred_check
      %p180 = pneg %p179
    $region22: #{bottleneck_forward.4} parent=5 // pred_check_branch
      %182 = sbr.rel (%p180) target = $region24
    $region23: #{bottleneck_forward.4} parent=5 // pred_region
      // Predicated region
      $region25: #{bottleneck_forward.4} parent=23 // pred_check
        %p183 = pneg %p32
      $region26: #{bottleneck_forward.4} parent=23 // pred_check_branch
        %185 = sbr.rel (%p183) target = $region28
      $region27: #{bottleneck_forward.4} parent=23 // pred_region
        %s186 = smul.u32 8, %s12
        %p187 = scmp.lt.s32.totalorder %s186, 63
        %s188 = scalar_select %p187, %s186, 63
        %s189 = smul.addr %s188, 8
        %s190 = scalar_lea.vmem %s0, %s189
        %s191 = smul.u32 8, %s12
      $region28: #{bottleneck_forward.4} parent=23 // pred_fallthru
        _
    $region24: #{bottleneck_forward.4} parent=5 // pred_fallthru
      _
    %p192 = scmp.le.s32.totalorder 1, %s12
    %p193 = scmp.lt.s32.totalorder %s12, 9
    %p194 = pnand %p192, %p193
    %p195 = pneg %p194
    // Predicated region
    $region29: #{bottleneck_forward.4} parent=5 // pred_check
      _
    $region30: #{bottleneck_forward.4} parent=5 // pred_check_branch
      %197 = sbr.rel (%p194) target = $region32
    $region31: #{bottleneck_forward.4} parent=5 // pred_region
      %s198 = ssub.s32 %s12, 1
      %s199 = smul.u32 8, %s17
      %p200 = scmp.lt.s32.totalorder %s199, 63
      %s201 = scalar_select %p200, %s199, 63
      %s202 = smul.addr %s201, 8
      %s203 = scalar_lea.vmem %s0, %s202
      %p204 = pneg %p38
      %p205 = pneg %p35
      %p206 = pneg %p59
      %p207 = pneg %p56
      %p208 = pneg %p80
      %p209 = pneg %p77
      %p210 = pneg %p106
      %p211 = pneg %p103
      %s212 = smul.u32 8, %s17
      %p213 = scmp.lt.s32.totalorder %s212, 63
      %s214 = scalar_select %p213, %s212, 63
      %s215 = smul.addr %s214, 8
      %s216 = scalar_lea.vmem %s3, %s215
      %p217 = pneg %p132
      %p218 = pneg %p129
      %p219 = scmp.lt.s32.totalorder %s17, 7
      %s220 = scalar_select %p219, %s17, 7
      %s221 = smul.addr %s220, 8
      %s222 = scalar_lea.vmem %s4, %s221
      %p223 = pneg %p158
      %p224 = pneg %p155
      %p225 = scmp.lt.s32.totalorder %s17, 7
      %s226 = scalar_select %p225, %s17, 7
      %s227 = smul.addr %s226, 8
      %s228 = scalar_lea.vmem %s5, %s227
      %s229 = smul.u32 8, %s17
      %p230 = scmp.lt.s32.totalorder %s229, 63
      %s231 = scalar_select %p230, %s229, 63
      %s232 = smul.addr %s231, 8
      %s233 = scalar_lea.vmem %s0, %s232
      %s234 = smul.u32 8, %s17
      %s235 = smul.u32 8, %s17
      %p236 = scmp.lt.s32.totalorder %s235, 63
      %s237 = scalar_select %p236, %s235, 63
      %s238 = smul.addr %s237, 8
      %s239 = scalar_lea.vmem %s3, %s238
      %s240 = smul.u32 8, %s17
      %p241 = scmp.lt.s32.totalorder %s17, 7
      %s242 = scalar_select %p241, %s17, 7
      %s243 = smul.addr %s242, 8
      %s244 = scalar_lea.vmem %s4, %s243
      %p245 = scmp.lt.s32.totalorder %s17, 7
      %s246 = scalar_select %p245, %s17, 7
      %s247 = smul.addr %s246, 8
      %s248 = scalar_lea.vmem %s5, %s247
      %v250 = vld [vmem:[%s233] sm:$0xff]
      %v251 = vld [vmem:[%s233 + $0x8] sm:$0xff]
      %v252 = vld [vmem:[%s233 + $0x10] sm:$0xff]
      %v253 = vld [vmem:[%s233 + $0x18] sm:$0xff]
      %v254 = vld [vmem:[%s233 + $0x20] sm:$0xff]
      %v255 = vld [vmem:[%s233 + $0x28] sm:$0xff]
      %v256 = vld [vmem:[%s233 + $0x30] sm:$0xff]
      %v257 = vld [vmem:[%s233 + $0x38] sm:$0xff]
      %v258 = vpack.c.bf16 %v251, %v250
      %v259 = vpack.c.bf16 %v253, %v252
      %v260 = vpack.c.bf16 %v255, %v254
      %v261 = vpack.c.bf16 %v257, %v256
      %v262 = vld [vmem:[%s1] sm:$0xf]
      %v263 = vld [vmem:[%s1 + $0x4] sm:$0xf]
      %v264 = vld [vmem:[%s1 + $0x8] sm:$0xf]
      %v265 = vld [vmem:[%s1 + $0xc] sm:$0xf]
      %v266 = vld [vmem:[%s1 + $0x10] sm:$0xf]
      %v267 = vld [vmem:[%s1 + $0x14] sm:$0xf]
      %v268 = vld [vmem:[%s1 + $0x18] sm:$0xf]
      %v269 = vld [vmem:[%s1 + $0x1c] sm:$0xf]
      %v270 = vld [vmem:[%s2] sm:$0x1]
      %v272 = vlaneseq
      %v273 = vshrl.u32 %v272, 7
      %v274 = vsub.s32 0, %v273
      %v275 = vrot.slane %v270, %v274
      %v285 = vunpack.c.l.b16 %v262
      %v286 = vunpack.c.l.b16 %v263
      %v287 = vunpack.c.l.b16 %v264
      %v288 = vunpack.c.l.b16 %v265
      %v289 = vunpack.c.l.b16 %v266
      %v290 = vunpack.c.l.b16 %v267
      %v291 = vunpack.c.l.b16 %v268
      %v292 = vunpack.c.l.b16 %v269
      %v293 = vpack.c.b16 %v286, %v285
      %v294 = vpack.c.b16 %v288, %v287
      %v295 = vpack.c.b16 %v290, %v289
      %v296 = vpack.c.b16 %v292, %v291
      %vm301 = vcmask 523264
      %v303 = vsel %vm301, %v258, 0
      %v306 = vsel %vm301, %v259, 0
      %v309 = vsel %vm301, %v260, 0
      %v312 = vsel %vm301, %v261, 0
      %314 = vmatprep.subr.bf16.mxu0 0
      %315 = vmatpush1.bf16.msra.mxu0 %v293
      %316 = vmatprep.subr.bf16.mxu0 0
      %317 = vmatpush1.bf16.msra.mxu0 %v294
      %318 = vmatprep.subr.bf16.mxu0 0
      %319 = vmatpush1.bf16.msra.mxu0 %v295
      %320 = vmatprep.subr.bf16.mxu0 0
      %321 = vmatpush1.bf16.msra.mxu0 %v296
      %322 = vmatprep.subr.bf16.mxu0 0
      %323 = vmatpush1.bf16.msra.mxu0 0
      %324 = vmatprep.subr.bf16.mxu0 0
      %325 = vmatpush1.bf16.msra.mxu0 0
      %326 = vmatprep.subr.bf16.mxu0 0
      %327 = vmatpush1.bf16.msra.mxu0 0
      %328 = vmatprep.subr.bf16.mxu0 0
      %329 = vmatpush1.bf16.msra.mxu0 0
      %330 = vmatprep.subr.bf16.mxu0 0
      %331 = vmatpush1.bf16.msra.mxu0 0
      %332 = vmatprep.subr.bf16.mxu0 0
      %333 = vmatpush1.bf16.msra.mxu0 0
      %334 = vmatprep.subr.bf16.mxu0 0
      %335 = vmatpush1.bf16.msra.mxu0 0
      %336 = vmatprep.subr.bf16.mxu0 0
      %337 = vmatpush1.bf16.msra.mxu0 0
      %338 = vmatprep.subr.bf16.mxu0 0
      %339 = vmatpush1.bf16.msra.mxu0 0
      %340 = vmatprep.subr.bf16.mxu0 0
      %341 = vmatpush1.bf16.msra.mxu0 0
      %342 = vmatprep.subr.bf16.mxu0 0
      %343 = vmatpush1.bf16.msra.mxu0 0
      %344 = vmatprep.subr.bf16.mxu0 0
      %345 = vmatpush1.bf16.msra.mxu0 0
      %346 = vmatprep.mubr.bf16.mxu0 0
      %347 = vmatmul.mubr.bf16.gmra.mrb[0].mxu0 %v303
      %v348 = vpop.f32.mrb[0].mxu0
      %v349 = vadd.f32 %v275, %v348
      %v350 = vpop.f32.mrb[0].mxu0
      %v351 = vpop.f32.mrb[0].mxu0
      %v352 = vadd.f32 %v275, %v351
      %v353 = vpop.f32.mrb[0].mxu0
      %354 = vmatprep.mubr.bf16.mxu0 0
      %355 = vmatmul.mubr.bf16.gmra.mrb[0].mxu0 %v306
      %v356 = vpop.f32.mrb[0].mxu0
      %v357 = vadd.f32 %v275, %v356
      %v358 = vpop.f32.mrb[0].mxu0
      %v359 = vpop.f32.mrb[0].mxu0
      %v360 = vadd.f32 %v275, %v359
      %v361 = vpop.f32.mrb[0].mxu0
      %362 = vmatprep.mubr.bf16.mxu0 0
      %363 = vmatmul.mubr.bf16.gmra.mrb[0].mxu0 %v309
      %v364 = vpop.f32.mrb[0].mxu0
      %v365 = vadd.f32 %v275, %v364
      %v366 = vpop.f32.mrb[0].mxu0
      %v367 = vpop.f32.mrb[0].mxu0
      %v368 = vadd.f32 %v275, %v367
      %v369 = vpop.f32.mrb[0].mxu0
      %370 = vmatprep.mubr.bf16.mxu0 0
      %371 = vmatmul.mubr.bf16.gmra.mrb[0].mxu0 %v312
      %v372 = vpop.f32.mrb[0].mxu0
      %v373 = vadd.f32 %v275, %v372
      %v374 = vpop.f32.mrb[0].mxu0
      %v375 = vpop.f32.mrb[0].mxu0
      %v376 = vadd.f32 %v275, %v375
      %v377 = vpop.f32.mrb[0].mxu0
      %378 = vdwg.mxu0
      %379 = vst [vmem:[%s239] sm:$0xff] %v349
      %380 = vst [vmem:[%s239 + $0x8] sm:$0xff] %v352
      %381 = vst [vmem:[%s239 + $0x10] sm:$0xff] %v357
      %382 = vst [vmem:[%s239 + $0x18] sm:$0xff] %v360
      %383 = vst [vmem:[%s239 + $0x20] sm:$0xff] %v365
      %384 = vst [vmem:[%s239 + $0x28] sm:$0xff] %v368
      %385 = vst [vmem:[%s239 + $0x30] sm:$0xff] %v373
      %386 = vst [vmem:[%s239 + $0x38] sm:$0xff] %v376
      %v387 = vadd.f32 %v349, %v352
      %v388 = vadd.f32 %v387, %v357
      %v389 = vadd.f32 %v388, %v360
      %v390 = vadd.f32 %v389, %v365
      %v391 = vadd.f32 %v390, %v368
      %v392 = vadd.f32 %v391, %v373
      %v393 = vadd.f32 %v392, %v376
      %v394 = vrot.slane %v393, 4
      %v395 = vadd.f32 %v393, %v394
      %v396 = vrot.slane %v395, 2
      %v397 = vadd.f32 %v395, %v396
      %v398 = vrot.slane %v397, 1
      %v399 = vadd.f32 %v397, %v398
      %vm400 = vcmask 1040384
      %v401 = vsel %vm400, %v399, 0.0
      %402 = vst [vmem:[%s244] sm:$0xff] %v401
      %v403 = vmul.f32 %v349, %v349
      %v404 = vmul.f32 %v352, %v352
      %v405 = vmul.f32 %v357, %v357
      %v406 = vmul.f32 %v360, %v360
      %v407 = vmul.f32 %v365, %v365
      %v408 = vmul.f32 %v368, %v368
      %v409 = vmul.f32 %v373, %v373
      %v410 = vmul.f32 %v376, %v376
      %v411 = vadd.f32 %v403, %v404
      %v412 = vadd.f32 %v411, %v405
      %v413 = vadd.f32 %v412, %v406
      %v414 = vadd.f32 %v413, %v407
      %v415 = vadd.f32 %v414, %v408
      %v416 = vadd.f32 %v415, %v409
      %v417 = vadd.f32 %v416, %v410
      %v418 = vrot.slane %v417, 4
      %v419 = vadd.f32 %v417, %v418
      %v420 = vrot.slane %v419, 2
      %v421 = vadd.f32 %v419, %v420
      %v422 = vrot.slane %v421, 1
      %v423 = vadd.f32 %v421, %v422
      %v424 = vsel %vm400, %v423, 0.0
      %425 = vst [vmem:[%s248] sm:$0xff] %v424
      %s426 = smul.u32 8, %s17
      %p427 = scmp.lt.s32.totalorder %s426, 63
      %s428 = scalar_select %p427, %s426, 63
      %s429 = smul.addr %s428, 8
      %s430 = scalar_lea.vmem %s3, %s429
      %p431 = scmp.lt.s32.totalorder %s17, 7
      %s432 = scalar_select %p431, %s17, 7
      %s433 = smul.addr %s432, 8
      %s434 = scalar_lea.vmem %s4, %s433
      %p435 = scmp.lt.s32.totalorder %s17, 7
      %s436 = scalar_select %p435, %s17, 7
      %s437 = smul.addr %s436, 8
      %s438 = scalar_lea.vmem %s5, %s437
      // Predicated region
      $region33: #{bottleneck_forward.4} parent=31 // pred_check
        %p439 = pneg %p103
      $region34: #{bottleneck_forward.4} parent=31 // pred_check_branch
        %441 = sbr.rel (%p439) target = $region36
      $region35: #{bottleneck_forward.4} parent=31 // pred_region
        %s442 = smul.u32 8, %s17
      $region36: #{bottleneck_forward.4} parent=31 // pred_fallthru
        _
      // Predicated region
      $region37: #{bottleneck_forward.4} parent=31 // pred_check
        %p443 = pneg %p129
      $region38: #{bottleneck_forward.4} parent=31 // pred_check_branch
        %445 = sbr.rel (%p443) target = $region40
      $region39: #{bottleneck_forward.4} parent=31 // pred_region
        _
      $region40: #{bottleneck_forward.4} parent=31 // pred_fallthru
        _
      // Predicated region
      $region41: #{bottleneck_forward.4} parent=31 // pred_check
        %p446 = pneg %p155
      $region42: #{bottleneck_forward.4} parent=31 // pred_check_branch
        %448 = sbr.rel (%p446) target = $region44
      $region43: #{bottleneck_forward.4} parent=31 // pred_region
        _
      $region44: #{bottleneck_forward.4} parent=31 // pred_fallthru
        _
    $region32: #{bottleneck_forward.4} parent=5 // pred_fallthru
      _
    %p449 = scmp.le.s32.totalorder 2, %s12
    // Predicated region
    $region45: #{bottleneck_forward.4} parent=5 // pred_check
      %p450 = pneg %p449
    $region46: #{bottleneck_forward.4} parent=5 // pred_check_branch
      %452 = sbr.rel (%p450) target = $region48
    $region47: #{bottleneck_forward.4} parent=5 // pred_region
      %s453 = ssub.s32 %s12, 2
      // Predicated region
      $region49: #{bottleneck_forward.4} parent=47 // pred_check
        %p454 = pneg %p109
      $region50: #{bottleneck_forward.4} parent=47 // pred_check_branch
        %456 = sbr.rel (%p454) target = $region52
      $region51: #{bottleneck_forward.4} parent=47 // pred_region
        %s457 = smul.u32 8, %s18
        %p458 = scmp.lt.s32.totalorder %s457, 63
        %s459 = scalar_select %p458, %s457, 63
        %s460 = smul.addr %s459, 8
        %s461 = scalar_lea.vmem %s3, %s460
      $region52: #{bottleneck_forward.4} parent=47 // pred_fallthru
        _
      // Predicated region
      $region53: #{bottleneck_forward.4} parent=47 // pred_check
        %p462 = pneg %p135
      $region54: #{bottleneck_forward.4} parent=47 // pred_check_branch
        %464 = sbr.rel (%p462) target = $region56
      $region55: #{bottleneck_forward.4} parent=47 // pred_region
        %p465 = scmp.lt.s32.totalorder %s18, 7
        %s466 = scalar_select %p465, %s18, 7
        %s467 = smul.addr %s466, 8
        %s468 = scalar_lea.vmem %s4, %s467
      $region56: #{bottleneck_forward.4} parent=47 // pred_fallthru
        _
      // Predicated region
      $region57: #{bottleneck_forward.4} parent=47 // pred_check
        %p469 = pneg %p161
      $region58: #{bottleneck_forward.4} parent=47 // pred_check_branch
        %471 = sbr.rel (%p469) target = $region60
      $region59: #{bottleneck_forward.4} parent=47 // pred_region
        %p472 = scmp.lt.s32.totalorder %s18, 7
        %s473 = scalar_select %p472, %s18, 7
        %s474 = smul.addr %s473, 8
        %s475 = scalar_lea.vmem %s5, %s474
      $region60: #{bottleneck_forward.4} parent=47 // pred_fallthru
        _
    $region48: #{bottleneck_forward.4} parent=5 // pred_fallthru
      _
  $region6: #{bottleneck_forward.4} parent=0 // loop_footer
    %s16 = sadd.s32 1, %s12
  $region7: #{bottleneck_forward.4} parent=0 // loop_footer_branch
    %11 = sbr.rel target = $region3
  $region8: #{bottleneck_forward.4} parent=0 // loop_exit
    _

// kernel: bottleneck_forward.6
$region0: #{bottleneck_forward.6}
  #allocation0 [shape = 'u32[]', space=smem, size = 0x4, offset = 0x4, fixed_abs, tag = 'smem constant byte address 0x4 - core index']
  #allocation1 [shape = 'u32[144,128]{1,0:T(1,128)}', space=vmem, size = 0x12000, scoped, tag = 'internal scratch']
  %s0 = inlined_call_operand.vmem [shape: f32[512,128], index: 0, kind: input, shape index: {}]
  %s1 = inlined_call_operand.vmem [shape: f32[64,128], index: 1, kind: input, shape index: {}]
  %s2 = inlined_call_operand.vmem [shape: f32[64,128], index: 2, kind: input, shape index: {}]
  %s3 = inlined_call_operand.vmem [shape: f32[1,128], index: 3, kind: input, shape index: {}]
  %s4 = inlined_call_operand.vmem [shape: f32[1,128], index: 4, kind: input, shape index: {}]
  %s5 = inlined_call_operand.vmem [shape: bf16[128,256], index: 5, kind: input, shape index: {}]
  %s6 = inlined_call_operand.vmem [shape: f32[1,256], index: 6, kind: input, shape index: {}]
  %s7 = inlined_call_operand.vmem [shape: f32[512,256], index: 7, kind: output, shape index: {0}]
  %s8 = inlined_call_operand.vmem [shape: f32[64,256], index: 8, kind: output, shape index: {1}]
  %s9 = inlined_call_operand.vmem [shape: f32[64,256], index: 9, kind: output, shape index: {2}]
  %10 = xla_tuple %s7, %s8, %s9
  %s11 = sld [smem:[#allocation0]]
  $region77: #{bottleneck_forward.6} parent=0
    _
  %s13 = ssub.s32 1, %s11
  %s14 = scalar_select 0, %s13, %s11
  loop: start=0, step=1, limit=10
  $region2: #{bottleneck_forward.6} parent=0 // loop_pre_header
    _
  $region3: #{bottleneck_forward.6} parent=0 // loop_header
    %s16 = sphi 0, %s20
    %p17 = scmp.ge.s32.totalorder %s16, 10
    %s26 = sphi 0, %s28
    %s29 = sphi 0, %s26
    %s30 = sphi 0, %s29
    %s46 = sphi 0, %s30
    %s50 = sphi 0, %s50
    %s52 = sphi 0, %s50
    %s53 = sphi 0, %s52
    %s67 = sphi 0, %s53
    %s71 = sphi 0, %s71
    %s73 = sphi 0, %s71
    %s74 = sphi 0, %s73
    %s88 = sphi 0, %s74
    %s92 = sphi 0, %s92
    %s94 = sphi 0, %s92
    %s95 = sphi 0, %s94
    %s109 = sphi 0, %s95
    %s113 = sphi 0, %s113
    %s115 = sphi 0, %s113
    %s116 = sphi 0, %s115
    %s130 = sphi 0, %s116
    %s134 = sphi 0, %s134
    %s136 = sphi 0, %s134
    %s137 = sphi 0, %s136
    %s151 = sphi 0, %s137
    %s155 = sphi 0, %s155
    %s157 = sphi 0, %s155
    %s158 = sphi 0, %s157
    %s172 = sphi 0, %s158
    %s178 = sphi 0, %s180
    %s181 = sphi 0, %s178
    %s182 = sphi 0, %s181
    %s198 = sphi 0, %s182
    %s204 = sphi 0, %s206
    %s207 = sphi 0, %s204
    %s208 = sphi 0, %s207
    %s224 = sphi 0, %s208
    %s230 = sphi 0, %s232
    %s233 = sphi 0, %s230
    %s234 = sphi 0, %s233
    %s250 = sphi 0, %s234
  $region4: #{bottleneck_forward.6} parent=0 // loop_header_branch
    %19 = sbr.rel (%p17) target = $region8
  $region5: #{bottleneck_forward.6} parent=0 // loop_body
    %s21 = ssub.s32 %s16, 1
    %s22 = ssub.s32 %s16, 2
    %s23 = sadd.s32 %s16, 1
    %s24 = ssub.s32 %s16, %s23
    %p25 = scmp.eq.s32.totalorder %s24, 0
    %s27 = sadd.s32 %s26, 1
    %s28 = scalar_select %p25, %s26, %s27
    %p31 = pneg %p25
    %p32 = scmp.eq.s32.totalorder %s16, 7
    %p33 = por %p31, %p32
    %p34 = scmp.ne.s32.totalorder %s26, %s29
    %p35 = scmp.eq.s32.totalorder %s16, 0
    %p36 = por %p34, %p35
    %p37 = scmp.ne.s32.totalorder %s26, %s29
    %p38 = scmp.eq.s32.totalorder %s21, 7
    %p39 = por %p37, %p38
    %p40 = scmp.ne.s32.totalorder %s29, %s30
    %p41 = scmp.eq.s32.totalorder %s21, 0
    %p42 = por %p40, %p41
    %p43 = scmp.ne.s32.totalorder %s29, %s30
    %p44 = scmp.eq.s32.totalorder %s22, 7
    %p45 = por %p43, %p44
    %p47 = scmp.ne.s32.totalorder %s30, %s46
    %p48 = scmp.eq.s32.totalorder %s22, 0
    %p49 = por %p47, %p48
    %s51 = sadd.s32 %s50, 1
    %p54 = scmp.eq.s32.totalorder %s16, 7
    %p55 = scmp.ne.s32.totalorder %s50, %s52
    %p56 = scmp.eq.s32.totalorder %s16, 0
    %p57 = por %p55, %p56
    %p58 = scmp.ne.s32.totalorder %s50, %s52
    %p59 = scmp.eq.s32.totalorder %s21, 7
    %p60 = por %p58, %p59
    %p61 = scmp.ne.s32.totalorder %s52, %s53
    %p62 = scmp.eq.s32.totalorder %s21, 0
    %p63 = por %p61, %p62
    %p64 = scmp.ne.s32.totalorder %s52, %s53
    %p65 = scmp.eq.s32.totalorder %s22, 7
    %p66 = por %p64, %p65
    %p68 = scmp.ne.s32.totalorder %s53, %s67
    %p69 = scmp.eq.s32.totalorder %s22, 0
    %p70 = por %p68, %p69
    %s72 = sadd.s32 %s71, 1
    %p75 = scmp.eq.s32.totalorder %s16, 7
    %p76 = scmp.ne.s32.totalorder %s71, %s73
    %p77 = scmp.eq.s32.totalorder %s16, 0
    %p78 = por %p76, %p77
    %p79 = scmp.ne.s32.totalorder %s71, %s73
    %p80 = scmp.eq.s32.totalorder %s21, 7
    %p81 = por %p79, %p80
    %p82 = scmp.ne.s32.totalorder %s73, %s74
    %p83 = scmp.eq.s32.totalorder %s21, 0
    %p84 = por %p82, %p83
    %p85 = scmp.ne.s32.totalorder %s73, %s74
    %p86 = scmp.eq.s32.totalorder %s22, 7
    %p87 = por %p85, %p86
    %p89 = scmp.ne.s32.totalorder %s74, %s88
    %p90 = scmp.eq.s32.totalorder %s22, 0
    %p91 = por %p89, %p90
    %s93 = sadd.s32 %s92, 1
    %p96 = scmp.eq.s32.totalorder %s16, 7
    %p97 = scmp.ne.s32.totalorder %s92, %s94
    %p98 = scmp.eq.s32.totalorder %s16, 0
    %p99 = por %p97, %p98
    %p100 = scmp.ne.s32.totalorder %s92, %s94
    %p101 = scmp.eq.s32.totalorder %s21, 7
    %p102 = por %p100, %p101
    %p103 = scmp.ne.s32.totalorder %s94, %s95
    %p104 = scmp.eq.s32.totalorder %s21, 0
    %p105 = por %p103, %p104
    %p106 = scmp.ne.s32.totalorder %s94, %s95
    %p107 = scmp.eq.s32.totalorder %s22, 7
    %p108 = por %p106, %p107
    %p110 = scmp.ne.s32.totalorder %s95, %s109
    %p111 = scmp.eq.s32.totalorder %s22, 0
    %p112 = por %p110, %p111
    %s114 = sadd.s32 %s113, 1
    %p117 = scmp.eq.s32.totalorder %s16, 7
    %p118 = scmp.ne.s32.totalorder %s113, %s115
    %p119 = scmp.eq.s32.totalorder %s16, 0
    %p120 = por %p118, %p119
    %p121 = scmp.ne.s32.totalorder %s113, %s115
    %p122 = scmp.eq.s32.totalorder %s21, 7
    %p123 = por %p121, %p122
    %p124 = scmp.ne.s32.totalorder %s115, %s116
    %p125 = scmp.eq.s32.totalorder %s21, 0
    %p126 = por %p124, %p125
    %p127 = scmp.ne.s32.totalorder %s115, %s116
    %p128 = scmp.eq.s32.totalorder %s22, 7
    %p129 = por %p127, %p128
    %p131 = scmp.ne.s32.totalorder %s116, %s130
    %p132 = scmp.eq.s32.totalorder %s22, 0
    %p133 = por %p131, %p132
    %s135 = sadd.s32 %s134, 1
    %p138 = scmp.eq.s32.totalorder %s16, 7
    %p139 = scmp.ne.s32.totalorder %s134, %s136
    %p140 = scmp.eq.s32.totalorder %s16, 0
    %p141 = por %p139, %p140
    %p142 = scmp.ne.s32.totalorder %s134, %s136
    %p143 = scmp.eq.s32.totalorder %s21, 7
    %p144 = por %p142, %p143
    %p145 = scmp.ne.s32.totalorder %s136, %s137
    %p146 = scmp.eq.s32.totalorder %s21, 0
    %p147 = por %p145, %p146
    %p148 = scmp.ne.s32.totalorder %s136, %s137
    %p149 = scmp.eq.s32.totalorder %s22, 7
    %p150 = por %p148, %p149
    %p152 = scmp.ne.s32.totalorder %s137, %s151
    %p153 = scmp.eq.s32.totalorder %s22, 0
    %p154 = por %p152, %p153
    %s156 = sadd.s32 %s155, 1
    %p159 = scmp.eq.s32.totalorder %s16, 7
    %p160 = scmp.ne.s32.totalorder %s155, %s157
    %p161 = scmp.eq.s32.totalorder %s16, 0
    %p162 = por %p160, %p161
    %p163 = scmp.ne.s32.totalorder %s155, %s157
    %p164 = scmp.eq.s32.totalorder %s21, 7
    %p165 = por %p163, %p164
    %p166 = scmp.ne.s32.totalorder %s157, %s158
    %p167 = scmp.eq.s32.totalorder %s21, 0
    %p168 = por %p166, %p167
    %p169 = scmp.ne.s32.totalorder %s157, %s158
    %p170 = scmp.eq.s32.totalorder %s22, 7
    %p171 = por %p169, %p170
    %p173 = scmp.ne.s32.totalorder %s158, %s172
    %p174 = scmp.eq.s32.totalorder %s22, 0
    %p175 = por %p173, %p174
    %s176 = ssub.s32 %s16, %s23
    %p177 = scmp.eq.s32.totalorder %s176, 0
    %s179 = sadd.s32 %s178, 1
    %s180 = scalar_select %p177, %s178, %s179
    %p183 = pneg %p177
    %p184 = scmp.eq.s32.totalorder %s16, 7
    %p185 = por %p183, %p184
    %p186 = scmp.ne.s32.totalorder %s178, %s181
    %p187 = scmp.eq.s32.totalorder %s16, 0
    %p188 = por %p186, %p187
    %p189 = scmp.ne.s32.totalorder %s178, %s181
    %p190 = scmp.eq.s32.totalorder %s21, 7
    %p191 = por %p189, %p190
    %p192 = scmp.ne.s32.totalorder %s181, %s182
    %p193 = scmp.eq.s32.totalorder %s21, 0
    %p194 = por %p192, %p193
    %p195 = scmp.ne.s32.totalorder %s181, %s182
    %p196 = scmp.eq.s32.totalorder %s22, 7
    %p197 = por %p195, %p196
    %p199 = scmp.ne.s32.totalorder %s182, %s198
    %p200 = scmp.eq.s32.totalorder %s22, 0
    %p201 = por %p199, %p200
    %s202 = ssub.s32 %s16, %s23
    %p203 = scmp.eq.s32.totalorder %s202, 0
    %s205 = sadd.s32 %s204, 1
    %s206 = scalar_select %p203, %s204, %s205
    %p209 = pneg %p203
    %p210 = scmp.eq.s32.totalorder %s16, 7
    %p211 = por %p209, %p210
    %p212 = scmp.ne.s32.totalorder %s204, %s207
    %p213 = scmp.eq.s32.totalorder %s16, 0
    %p214 = por %p212, %p213
    %p215 = scmp.ne.s32.totalorder %s204, %s207
    %p216 = scmp.eq.s32.totalorder %s21, 7
    %p217 = por %p215, %p216
    %p218 = scmp.ne.s32.totalorder %s207, %s208
    %p219 = scmp.eq.s32.totalorder %s21, 0
    %p220 = por %p218, %p219
    %p221 = scmp.ne.s32.totalorder %s207, %s208
    %p222 = scmp.eq.s32.totalorder %s22, 7
    %p223 = por %p221, %p222
    %p225 = scmp.ne.s32.totalorder %s208, %s224
    %p226 = scmp.eq.s32.totalorder %s22, 0
    %p227 = por %p225, %p226
    %s228 = ssub.s32 %s16, %s23
    %p229 = scmp.eq.s32.totalorder %s228, 0
    %s231 = sadd.s32 %s230, 1
    %s232 = scalar_select %p229, %s230, %s231
    %p235 = pneg %p229
    %p236 = scmp.eq.s32.totalorder %s16, 7
    %p237 = por %p235, %p236
    %p238 = scmp.ne.s32.totalorder %s230, %s233
    %p239 = scmp.eq.s32.totalorder %s16, 0
    %p240 = por %p238, %p239
    %p241 = scmp.ne.s32.totalorder %s230, %s233
    %p242 = scmp.eq.s32.totalorder %s21, 7
    %p243 = por %p241, %p242
    %p244 = scmp.ne.s32.totalorder %s233, %s234
    %p245 = scmp.eq.s32.totalorder %s21, 0
    %p246 = por %p244, %p245
    %p247 = scmp.ne.s32.totalorder %s233, %s234
    %p248 = scmp.eq.s32.totalorder %s22, 7
    %p249 = por %p247, %p248
    %p251 = scmp.ne.s32.totalorder %s234, %s250
    %p252 = scmp.eq.s32.totalorder %s22, 0
    %p253 = por %p251, %p252
    %p254 = scmp.le.s32.totalorder 1, %s16
    %p255 = scmp.lt.s32.totalorder %s16, 9
    %p256 = pnand %p254, %p255
    %p257 = pneg %p256
    // Predicated region
    $region9: #{bottleneck_forward.6} parent=5 // pred_check
      _
    $region10: #{bottleneck_forward.6} parent=5 // pred_check_branch
      %259 = sbr.rel (%p256) target = $region12
    $region11: #{bottleneck_forward.6} parent=5 // pred_region
      %s260 = ssub.s32 %s16, 1
      // Predicated region
      $region13: #{bottleneck_forward.6} parent=11 // pred_check
        %p261 = pneg %p63
      $region14: #{bottleneck_forward.6} parent=11 // pred_check_branch
        %263 = sbr.rel (%p261) target = $region16
      $region15: #{bottleneck_forward.6} parent=11 // pred_region
        _
      $region16: #{bottleneck_forward.6} parent=11 // pred_fallthru
        _
      // Predicated region
      $region17: #{bottleneck_forward.6} parent=11 // pred_check
        %p264 = pneg %p84
      $region18: #{bottleneck_forward.6} parent=11 // pred_check_branch
        %266 = sbr.rel (%p264) target = $region20
      $region19: #{bottleneck_forward.6} parent=11 // pred_region
        _
      $region20: #{bottleneck_forward.6} parent=11 // pred_fallthru
        _
      // Predicated region
      $region21: #{bottleneck_forward.6} parent=11 // pred_check
        %p267 = pneg %p105
      $region22: #{bottleneck_forward.6} parent=11 // pred_check_branch
        %269 = sbr.rel (%p267) target = $region24
      $region23: #{bottleneck_forward.6} parent=11 // pred_region
        _
      $region24: #{bottleneck_forward.6} parent=11 // pred_fallthru
        _
      // Predicated region
      $region25: #{bottleneck_forward.6} parent=11 // pred_check
        %p270 = pneg %p126
      $region26: #{bottleneck_forward.6} parent=11 // pred_check_branch
        %272 = sbr.rel (%p270) target = $region28
      $region27: #{bottleneck_forward.6} parent=11 // pred_region
        _
      $region28: #{bottleneck_forward.6} parent=11 // pred_fallthru
        _
      // Predicated region
      $region29: #{bottleneck_forward.6} parent=11 // pred_check
        %p273 = pneg %p147
      $region30: #{bottleneck_forward.6} parent=11 // pred_check_branch
        %275 = sbr.rel (%p273) target = $region32
      $region31: #{bottleneck_forward.6} parent=11 // pred_region
        _
      $region32: #{bottleneck_forward.6} parent=11 // pred_fallthru
        _
      // Predicated region
      $region33: #{bottleneck_forward.6} parent=11 // pred_check
        %p276 = pneg %p168
      $region34: #{bottleneck_forward.6} parent=11 // pred_check_branch
        %278 = sbr.rel (%p276) target = $region36
      $region35: #{bottleneck_forward.6} parent=11 // pred_region
        _
      $region36: #{bottleneck_forward.6} parent=11 // pred_fallthru
        _
    $region12: #{bottleneck_forward.6} parent=5 // pred_fallthru
      _
    %p279 = scmp.lt.s32.totalorder %s16, 8
    // Predicated region
    $region37: #{bottleneck_forward.6} parent=5 // pred_check
      %p280 = pneg %p279
    $region38: #{bottleneck_forward.6} parent=5 // pred_check_branch
      %282 = sbr.rel (%p280) target = $region40
    $region39: #{bottleneck_forward.6} parent=5 // pred_region
      // Predicated region
      $region41: #{bottleneck_forward.6} parent=39 // pred_check
        %p283 = pneg %p36
      $region42: #{bottleneck_forward.6} parent=39 // pred_check_branch
        %285 = sbr.rel (%p283) target = $region44
      $region43: #{bottleneck_forward.6} parent=39 // pred_region
        %s286 = smul.u32 8, %s16
        %p287 = scmp.lt.s32.totalorder %s286, 63
        %s288 = scalar_select %p287, %s286, 63
        %s289 = smul.addr %s288, 8
        %s290 = scalar_lea.vmem %s0, %s289
        %s291 = smul.u32 8, %s16
      $region44: #{bottleneck_forward.6} parent=39 // pred_fallthru
        _
    $region40: #{bottleneck_forward.6} parent=5 // pred_fallthru
      _
    %p292 = scmp.le.s32.totalorder 1, %s16
    %p293 = scmp.lt.s32.totalorder %s16, 9
    %p294 = pnand %p292, %p293
    %p295 = pneg %p294
    // Predicated region
    $region45: #{bottleneck_forward.6} parent=5 // pred_check
      _
    $region46: #{bottleneck_forward.6} parent=5 // pred_check_branch
      %297 = sbr.rel (%p294) target = $region48
    $region47: #{bottleneck_forward.6} parent=5 // pred_region
      %s298 = ssub.s32 %s16, 1
      %s299 = smul.u32 8, %s21
      %p300 = scmp.lt.s32.totalorder %s299, 63
      %s301 = scalar_select %p300, %s299, 63
      %s302 = smul.addr %s301, 8
      %s303 = scalar_lea.vmem %s0, %s302
      %p304 = pneg %p42
      %p305 = pneg %p39
      %p306 = pneg %p63
      %p307 = pneg %p60
      %p308 = pneg %p84
      %p309 = pneg %p81
      %p310 = pneg %p105
      %p311 = pneg %p102
      %p312 = pneg %p126
      %p313 = pneg %p123
      %p314 = pneg %p147
      %p315 = pneg %p144
      %p316 = pneg %p168
      %p317 = pneg %p165
      %p318 = pneg %p194
      %p319 = pneg %p191
      %s320 = smul.u32 8, %s21
      %p321 = scmp.lt.s32.totalorder %s320, 63
      %s322 = scalar_select %p321, %s320, 63
      %s323 = smul.addr %s322, 2
      %s324 = smul.addr %s323, 8
      %s325 = scalar_lea.vmem %s7, %s324
      %p326 = pneg %p220
      %p327 = pneg %p217
      %p328 = scmp.lt.s32.totalorder %s21, 7
      %s329 = scalar_select %p328, %s21, 7
      %s330 = smul.addr %s329, 2
      %s331 = smul.addr %s330, 8
      %s332 = scalar_lea.vmem %s8, %s331
      %p333 = pneg %p246
      %p334 = pneg %p243
      %p335 = scmp.lt.s32.totalorder %s21, 7
      %s336 = scalar_select %p335, %s21, 7
      %s337 = smul.addr %s336, 2
      %s338 = smul.addr %s337, 8
      %s339 = scalar_lea.vmem %s9, %s338
      %s340 = smul.u32 8, %s21
      %p341 = scmp.lt.s32.totalorder %s340, 63
      %s342 = scalar_select %p341, %s340, 63
      %s343 = smul.addr %s342, 8
      %s344 = scalar_lea.vmem %s0, %s343
      %s345 = smul.u32 8, %s21
      %s346 = smul.u32 8, %s21
      %p347 = scmp.lt.s32.totalorder %s346, 63
      %s348 = scalar_select %p347, %s346, 63
      %s349 = smul.addr %s348, 2
      %s350 = smul.addr %s349, 8
      %s351 = scalar_lea.vmem %s7, %s350
      %s352 = smul.u32 8, %s21
      %p353 = scmp.lt.s32.totalorder %s21, 7
      %s354 = scalar_select %p353, %s21, 7
      %s355 = smul.addr %s354, 2
      %s356 = smul.addr %s355, 8
      %s357 = scalar_lea.vmem %s8, %s356
      %p358 = scmp.lt.s32.totalorder %s21, 7
      %s359 = scalar_select %p358, %s21, 7
      %s360 = smul.addr %s359, 2
      %s361 = smul.addr %s360, 8
      %s362 = scalar_lea.vmem %s9, %s361
      %v364 = vld [vmem:[%s1] sm:$0xff]
      %v365 = vld [vmem:[%s1 + $0x8] sm:$0xff]
      %v366 = vld [vmem:[%s1 + $0x10] sm:$0xff]
      %v367 = vld [vmem:[%s1 + $0x18] sm:$0xff]
      %v368 = vld [vmem:[%s1 + $0x20] sm:$0xff]
      %v369 = vld [vmem:[%s1 + $0x28] sm:$0xff]
      %v370 = vld [vmem:[%s1 + $0x30] sm:$0xff]
      %v371 = vld [vmem:[%s1 + $0x38] sm:$0xff]
      %v372 = vadd.f32 %v364, %v365
      %v373 = vadd.f32 %v372, %v366
      %v374 = vadd.f32 %v373, %v367
      %v375 = vadd.f32 %v374, %v368
      %v376 = vadd.f32 %v375, %v369
      %v377 = vadd.f32 %v376, %v370
      %v378 = vadd.f32 %v377, %v371
      %v379 = vrot.slane %v378, 4
      %v380 = vadd.f32 %v378, %v379
      %v381 = vrot.slane %v380, 2
      %v382 = vadd.f32 %v380, %v381
      %v383 = vrot.slane %v382, 1
      %v384 = vadd.f32 %v382, %v383
      %v385 = vmul.f32 %v384, 0.001953125
      %v386 = vld [vmem:[%s2] sm:$0xff]
      %v387 = vld [vmem:[%s2 + $0x8] sm:$0xff]
      %v388 = vld [vmem:[%s2 + $0x10] sm:$0xff]
      %v389 = vld [vmem:[%s2 + $0x18] sm:$0xff]
      %v390 = vld [vmem:[%s2 + $0x20] sm:$0xff]
      %v391 = vld [vmem:[%s2 + $0x28] sm:$0xff]
      %v392 = vld [vmem:[%s2 + $0x30] sm:$0xff]
      %v393 = vld [vmem:[%s2 + $0x38] sm:$0xff]
      %v394 = vadd.f32 %v386, %v387
      %v395 = vadd.f32 %v394, %v388
      %v396 = vadd.f32 %v395, %v389
      %v397 = vadd.f32 %v396, %v390
      %v398 = vadd.f32 %v397, %v391
      %v399 = vadd.f32 %v398, %v392
      %v400 = vadd.f32 %v399, %v393
      %v401 = vrot.slane %v400, 4
      %v402 = vadd.f32 %v400, %v401
      %v403 = vrot.slane %v402, 2
      %v404 = vadd.f32 %v402, %v403
      %v405 = vrot.slane %v404, 1
      %v406 = vadd.f32 %v404, %v405
      %v407 = vmul.f32 %v406, 0.001953125
      %v408 = vmul.f32 %v385, %v385
      %v409 = vsub.f32 %v407, %v408
      %v410 = vmax.f32 %v409, 0.0
      %v411 = vld [vmem:[%s3] sm:$0x1]
      %v412 = vadd.f32 %v410, 1e-05
      %v413 = vrsqrt.pop %v412
      %v414 = vmul.f32 %v411, %v413
      %v415 = vld [vmem:[%s4] sm:$0x1]
      %v416 = vmul.f32 %v385, %v414
      %v417 = vsub.f32 %v415, %v416
      %v418 = vld [vmem:[%s344] sm:$0xff]
      %v419 = vld [vmem:[%s344 + $0x8] sm:$0xff]
      %v420 = vld [vmem:[%s344 + $0x10] sm:$0xff]
      %v421 = vld [vmem:[%s344 + $0x18] sm:$0xff]
      %v422 = vld [vmem:[%s344 + $0x20] sm:$0xff]
      %v423 = vld [vmem:[%s344 + $0x28] sm:$0xff]
      %v424 = vld [vmem:[%s344 + $0x30] sm:$0xff]
      %v425 = vld [vmem:[%s344 + $0x38] sm:$0xff]
      %v427 = vlaneseq
      %v428 = vshrl.u32 %v427, 7
      %v429 = vsub.s32 0, %v428
      %v430 = vrot.slane %v414, %v429
      %v432 = vmul.f32 %v418, %v430
      %v433 = vmul.f32 %v419, %v430
      %v434 = vmul.f32 %v420, %v430
      %v435 = vmul.f32 %v421, %v430
      %v436 = vmul.f32 %v422, %v430
      %v437 = vmul.f32 %v423, %v430
      %v438 = vmul.f32 %v424, %v430
      %v439 = vmul.f32 %v425, %v430
      %v441 = vlaneseq
      %v442 = vshrl.u32 %v441, 7
      %v443 = vsub.s32 0, %v442
      %v444 = vrot.slane %v417, %v443
      %v446 = vadd.f32 %v432, %v444
      %v447 = vadd.f32 %v433, %v444
      %v448 = vadd.f32 %v434, %v444
      %v449 = vadd.f32 %v435, %v444
      %v450 = vadd.f32 %v436, %v444
      %v451 = vadd.f32 %v437, %v444
      %v452 = vadd.f32 %v438, %v444
      %v453 = vadd.f32 %v439, %v444
      %v454 = vmax.f32 %v446, 0.0
      %v455 = vmax.f32 %v447, 0.0
      %v456 = vmax.f32 %v448, 0.0
      %v457 = vmax.f32 %v449, 0.0
      %v458 = vmax.f32 %v450, 0.0
      %v459 = vmax.f32 %v451, 0.0
      %v460 = vmax.f32 %v452, 0.0
      %v461 = vmax.f32 %v453, 0.0
      %v462 = vpack.c.bf16 %v455, %v454
      %v463 = vpack.c.bf16 %v457, %v456
      %v464 = vpack.c.bf16 %v459, %v458
      %v465 = vpack.c.bf16 %v461, %v460
      %v466 = vld [vmem:[%s5] sm:$0xff]
      %v467 = vld [vmem:[%s5 + $0x8] sm:$0xff]
      %v468 = vld [vmem:[%s5 + $0x10] sm:$0xff]
      %v469 = vld [vmem:[%s5 + $0x18] sm:$0xff]
      %v470 = vld [vmem:[%s5 + $0x20] sm:$0xff]
      %v471 = vld [vmem:[%s5 + $0x28] sm:$0xff]
      %v472 = vld [vmem:[%s5 + $0x30] sm:$0xff]
      %v473 = vld [vmem:[%s5 + $0x38] sm:$0xff]
      %v474 = vld [vmem:[%s5 + $0x40] sm:$0xff]
      %v475 = vld [vmem:[%s5 + $0x48] sm:$0xff]
      %v476 = vld [vmem:[%s5 + $0x50] sm:$0xff]
      %v477 = vld [vmem:[%s5 + $0x58] sm:$0xff]
      %v478 = vld [vmem:[%s5 + $0x60] sm:$0xff]
      %v479 = vld [vmem:[%s5 + $0x68] sm:$0xff]
      %v480 = vld [vmem:[%s5 + $0x70] sm:$0xff]
      %v481 = vld [vmem:[%s5 + $0x78] sm:$0xff]
      %v482 = vld [vmem:[%s6] sm:$0x3]
      %v484 = vlaneseq
      %v485 = vshrl.u32 %v484, 7
      %v486 = vsub.s32 0, %v485
      %v487 = vrot.slane %v482, %v486
      %v488 = vlaneseq
      %v489 = vshrl.u32 %v488, 7
      %v490 = vsub.s32 1, %v489
      %v491 = vrot.slane %v482, %v490
      %v510 = vunpack.c.l.b16 %v466
      %v511 = vunpack.c.h.b16 %v466
      %v512 = vunpack.c.l.b16 %v467
      %v513 = vunpack.c.h.b16 %v467
      %v514 = vunpack.c.l.b16 %v468
      %v515 = vunpack.c.h.b16 %v468
      %v516 = vunpack.c.l.b16 %v469
      %v517 = vunpack.c.h.b16 %v469
      %v518 = vunpack.c.l.b16 %v470
      %v519 = vunpack.c.h.b16 %v470
      %v520 = vunpack.c.l.b16 %v471
      %v521 = vunpack.c.h.b16 %v471
      %v522 = vunpack.c.l.b16 %v472
      %v523 = vunpack.c.h.b16 %v472
      %v524 = vunpack.c.l.b16 %v473
      %v525 = vunpack.c.h.b16 %v473
      %v526 = vunpack.c.l.b16 %v474
      %v527 = vunpack.c.h.b16 %v474
      %v528 = vunpack.c.l.b16 %v475
      %v529 = vunpack.c.h.b16 %v475
      %v530 = vunpack.c.l.b16 %v476
      %v531 = vunpack.c.h.b16 %v476
      %v532 = vunpack.c.l.b16 %v477
      %v533 = vunpack.c.h.b16 %v477
      %v534 = vunpack.c.l.b16 %v478
      %v535 = vunpack.c.h.b16 %v478
      %v536 = vunpack.c.l.b16 %v479
      %v537 = vunpack.c.h.b16 %v479
      %v538 = vunpack.c.l.b16 %v480
      %v539 = vunpack.c.h.b16 %v480
      %v540 = vunpack.c.l.b16 %v481
      %v541 = vunpack.c.h.b16 %v481
      %v542 = vpack.c.b16 %v512, %v510
      %v543 = vpack.c.b16 %v513, %v511
      %v544 = vpack.c.b16 %v516, %v514
      %v545 = vpack.c.b16 %v517, %v515
      %v546 = vpack.c.b16 %v520, %v518
      %v547 = vpack.c.b16 %v521, %v519
      %v548 = vpack.c.b16 %v524, %v522
      %v549 = vpack.c.b16 %v525, %v523
      %v550 = vpack.c.b16 %v528, %v526
      %v551 = vpack.c.b16 %v529, %v527
      %v552 = vpack.c.b16 %v532, %v530
      %v553 = vpack.c.b16 %v533, %v531
      %v554 = vpack.c.b16 %v536, %v534
      %v555 = vpack.c.b16 %v537, %v535
      %v556 = vpack.c.b16 %v540, %v538
      %v557 = vpack.c.b16 %v541, %v539
      %574 = vmatprep.subr.bf16.mxu0 %v543
      %575 = vmatpush1.bf16.msra.mxu0 %v542
      %576 = vmatprep.subr.bf16.mxu0 %v545
      %577 = vmatpush1.bf16.msra.mxu0 %v544
      %578 = vmatprep.subr.bf16.mxu0 %v547
      %579 = vmatpush1.bf16.msra.mxu0 %v546
      %580 = vmatprep.subr.bf16.mxu0 %v549
      %581 = vmatpush1.bf16.msra.mxu0 %v548
      %582 = vmatprep.subr.bf16.mxu0 %v551
      %583 = vmatpush1.bf16.msra.mxu0 %v550
      %584 = vmatprep.subr.bf16.mxu0 %v553
      %585 = vmatpush1.bf16.msra.mxu0 %v552
      %586 = vmatprep.subr.bf16.mxu0 %v555
      %587 = vmatpush1.bf16.msra.mxu0 %v554
      %588 = vmatprep.subr.bf16.mxu0 %v557
      %589 = vmatpush1.bf16.msra.mxu0 %v556
      %590 = vmatprep.subr.bf16.mxu0 0
      %591 = vmatpush1.bf16.msra.mxu0 0
      %592 = vmatprep.subr.bf16.mxu0 0
      %593 = vmatpush1.bf16.msra.mxu0 0
      %594 = vmatprep.subr.bf16.mxu0 0
      %595 = vmatpush1.bf16.msra.mxu0 0
      %596 = vmatprep.subr.bf16.mxu0 0
      %597 = vmatpush1.bf16.msra.mxu0 0
      %598 = vmatprep.subr.bf16.mxu0 0
      %599 = vmatpush1.bf16.msra.mxu0 0
      %600 = vmatprep.subr.bf16.mxu0 0
      %601 = vmatpush1.bf16.msra.mxu0 0
      %602 = vmatprep.subr.bf16.mxu0 0
      %603 = vmatpush1.bf16.msra.mxu0 0
      %604 = vmatprep.subr.bf16.mxu0 0
      %605 = vmatpush1.bf16.msra.mxu0 0
      %606 = vmatprep.mubr.bf16.mxu0 0
      %607 = vmatmul.mubr.bf16.gmra.mrb[0].mxu0 %v462
      %v608 = vpop.f32.mrb[0].mxu0
      %v609 = vadd.f32 %v487, %v608
      %v610 = vpop.f32.mrb[0].mxu0
      %v611 = vadd.f32 %v491, %v610
      %v612 = vpop.f32.mrb[0].mxu0
      %v613 = vadd.f32 %v487, %v612
      %v614 = vpop.f32.mrb[0].mxu0
      %v615 = vadd.f32 %v491, %v614
      %616 = vmatprep.mubr.bf16.mxu0 0
      %617 = vmatmul.mubr.bf16.gmra.mrb[0].mxu0 %v463
      %v618 = vpop.f32.mrb[0].mxu0
      %v619 = vadd.f32 %v487, %v618
      %v620 = vpop.f32.mrb[0].mxu0
      %v621 = vadd.f32 %v491, %v620
      %v622 = vpop.f32.mrb[0].mxu0
      %v623 = vadd.f32 %v487, %v622
      %v624 = vpop.f32.mrb[0].mxu0
      %v625 = vadd.f32 %v491, %v624
      %626 = vmatprep.mubr.bf16.mxu0 0
      %627 = vmatmul.mubr.bf16.gmra.mrb[0].mxu0 %v464
      %v628 = vpop.f32.mrb[0].mxu0
      %v629 = vadd.f32 %v487, %v628
      %v630 = vpop.f32.mrb[0].mxu0
      %v631 = vadd.f32 %v491, %v630
      %v632 = vpop.f32.mrb[0].mxu0
      %v633 = vadd.f32 %v487, %v632
      %v634 = vpop.f32.mrb[0].mxu0
      %v635 = vadd.f32 %v491, %v634
      %636 = vmatprep.mubr.bf16.mxu0 0
      %637 = vmatmul.mubr.bf16.gmra.mrb[0].mxu0 %v465
      %v638 = vpop.f32.mrb[0].mxu0
      %v639 = vadd.f32 %v487, %v638
      %v640 = vpop.f32.mrb[0].mxu0
      %v641 = vadd.f32 %v491, %v640
      %v642 = vpop.f32.mrb[0].mxu0
      %v643 = vadd.f32 %v487, %v642
      %v644 = vpop.f32.mrb[0].mxu0
      %v645 = vadd.f32 %v491, %v644
      %646 = vdwg.mxu0
      %647 = vst [vmem:[%s351] sm:$0xff] %v609
      %648 = vst [vmem:[%s351 + $0x8] sm:$0xff] %v611
      %649 = vst [vmem:[%s351 + $0x10] sm:$0xff] %v613
      %650 = vst [vmem:[%s351 + $0x18] sm:$0xff] %v615
      %651 = vst [vmem:[%s351 + $0x20] sm:$0xff] %v619
      %652 = vst [vmem:[%s351 + $0x28] sm:$0xff] %v621
      %653 = vst [vmem:[%s351 + $0x30] sm:$0xff] %v623
      %654 = vst [vmem:[%s351 + $0x38] sm:$0xff] %v625
      %655 = vst [vmem:[%s351 + $0x40] sm:$0xff] %v629
      %656 = vst [vmem:[%s351 + $0x48] sm:$0xff] %v631
      %657 = vst [vmem:[%s351 + $0x50] sm:$0xff] %v633
      %658 = vst [vmem:[%s351 + $0x58] sm:$0xff] %v635
      %659 = vst [vmem:[%s351 + $0x60] sm:$0xff] %v639
      %660 = vst [vmem:[%s351 + $0x68] sm:$0xff] %v641
      %661 = vst [vmem:[%s351 + $0x70] sm:$0xff] %v643
      %662 = vst [vmem:[%s351 + $0x78] sm:$0xff] %v645
      %v663 = vadd.f32 %v609, %v613
      %v664 = vadd.f32 %v663, %v619
      %v665 = vadd.f32 %v664, %v623
      %v666 = vadd.f32 %v665, %v629
      %v667 = vadd.f32 %v666, %v633
      %v668 = vadd.f32 %v667, %v639
      %v669 = vadd.f32 %v668, %v643
      %v670 = vrot.slane %v669, 4
      %v671 = vadd.f32 %v669, %v670
      %v672 = vrot.slane %v671, 2
      %v673 = vadd.f32 %v671, %v672
      %v674 = vrot.slane %v673, 1
      %v675 = vadd.f32 %v673, %v674
      %v676 = vadd.f32 %v611, %v615
      %v677 = vadd.f32 %v676, %v621
      %v678 = vadd.f32 %v677, %v625
      %v679 = vadd.f32 %v678, %v631
      %v680 = vadd.f32 %v679, %v635
      %v681 = vadd.f32 %v680, %v641
      %v682 = vadd.f32 %v681, %v645
      %v683 = vrot.slane %v682, 4
      %v684 = vadd.f32 %v682, %v683
      %v685 = vrot.slane %v684, 2
      %v686 = vadd.f32 %v684, %v685
      %v687 = vrot.slane %v686, 1
      %v688 = vadd.f32 %v686, %v687
      %vm689 = vcmask 1040384
      %v690 = vsel %vm689, %v675, 0.0
      %v691 = vsel %vm689, %v688, 0.0
      %692 = vst [vmem:[%s357] sm:$0xff] %v690
      %693 = vst [vmem:[%s357 + $0x8] sm:$0xff] %v691
      %v694 = vmul.f32 %v609, %v609
      %v695 = vmul.f32 %v611, %v611
      %v696 = vmul.f32 %v613, %v613
      %v697 = vmul.f32 %v615, %v615
      %v698 = vmul.f32 %v619, %v619
      %v699 = vmul.f32 %v621, %v621
      %v700 = vmul.f32 %v623, %v623
      %v701 = vmul.f32 %v625, %v625
      %v702 = vmul.f32 %v629, %v629
      %v703 = vmul.f32 %v631, %v631
      %v704 = vmul.f32 %v633, %v633
      %v705 = vmul.f32 %v635, %v635
      %v706 = vmul.f32 %v639, %v639
      %v707 = vmul.f32 %v641, %v641
      %v708 = vmul.f32 %v643, %v643
      %v709 = vmul.f32 %v645, %v645
      %v710 = vadd.f32 %v694, %v696
      %v711 = vadd.f32 %v710, %v698
      %v712 = vadd.f32 %v711, %v700
      %v713 = vadd.f32 %v712, %v702
      %v714 = vadd.f32 %v713, %v704
      %v715 = vadd.f32 %v714, %v706
      %v716 = vadd.f32 %v715, %v708
      %v717 = vrot.slane %v716, 4
      %v718 = vadd.f32 %v716, %v717
      %v719 = vrot.slane %v718, 2
      %v720 = vadd.f32 %v718, %v719
      %v721 = vrot.slane %v720, 1
      %v722 = vadd.f32 %v720, %v721
      %v723 = vadd.f32 %v695, %v697
      %v724 = vadd.f32 %v723, %v699
      %v725 = vadd.f32 %v724, %v701
      %v726 = vadd.f32 %v725, %v703
      %v727 = vadd.f32 %v726, %v705
      %v728 = vadd.f32 %v727, %v707
      %v729 = vadd.f32 %v728, %v709
      %v730 = vrot.slane %v729, 4
      %v731 = vadd.f32 %v729, %v730
      %v732 = vrot.slane %v731, 2
      %v733 = vadd.f32 %v731, %v732
      %v734 = vrot.slane %v733, 1
      %v735 = vadd.f32 %v733, %v734
      %v736 = vsel %vm689, %v722, 0.0
      %v737 = vsel %vm689, %v735, 0.0
      %738 = vst [vmem:[%s362] sm:$0xff] %v736
      %739 = vst [vmem:[%s362 + $0x8] sm:$0xff] %v737
      %s740 = smul.u32 8, %s21
      %p741 = scmp.lt.s32.totalorder %s740, 63
      %s742 = scalar_select %p741, %s740, 63
      %s743 = smul.addr %s742, 2
      %s744 = smul.addr %s743, 8
      %s745 = scalar_lea.vmem %s7, %s744
      %p746 = scmp.lt.s32.totalorder %s21, 7
      %s747 = scalar_select %p746, %s21, 7
      %s748 = smul.addr %s747, 2
      %s749 = smul.addr %s748, 8
      %s750 = scalar_lea.vmem %s8, %s749
      %p751 = scmp.lt.s32.totalorder %s21, 7
      %s752 = scalar_select %p751, %s21, 7
      %s753 = smul.addr %s752, 2
      %s754 = smul.addr %s753, 8
      %s755 = scalar_lea.vmem %s9, %s754
      // Predicated region
      $region49: #{bottleneck_forward.6} parent=47 // pred_check
        %p756 = pneg %p191
      $region50: #{bottleneck_forward.6} parent=47 // pred_check_branch
        %758 = sbr.rel (%p756) target = $region52
      $region51: #{bottleneck_forward.6} parent=47 // pred_region
        %s759 = smul.u32 8, %s21
      $region52: #{bottleneck_forward.6} parent=47 // pred_fallthru
        _
      // Predicated region
      $region53: #{bottleneck_forward.6} parent=47 // pred_check
        %p760 = pneg %p217
      $region54: #{bottleneck_forward.6} parent=47 // pred_check_branch
        %762 = sbr.rel (%p760) target = $region56
      $region55: #{bottleneck_forward.6} parent=47 // pred_region
        _
      $region56: #{bottleneck_forward.6} parent=47 // pred_fallthru
        _
      // Predicated region
      $region57: #{bottleneck_forward.6} parent=47 // pred_check
        %p763 = pneg %p243
      $region58: #{bottleneck_forward.6} parent=47 // pred_check_branch
        %765 = sbr.rel (%p763) target = $region60
      $region59: #{bottleneck_forward.6} parent=47 // pred_region
        _
      $region60: #{bottleneck_forward.6} parent=47 // pred_fallthru
        _
    $region48: #{bottleneck_forward.6} parent=5 // pred_fallthru
      _
    %p766 = scmp.le.s32.totalorder 2, %s16
    // Predicated region
    $region61: #{bottleneck_forward.6} parent=5 // pred_check
      %p767 = pneg %p766
    $region62: #{bottleneck_forward.6} parent=5 // pred_check_branch
      %769 = sbr.rel (%p767) target = $region64
    $region63: #{bottleneck_forward.6} parent=5 // pred_region
      %s770 = ssub.s32 %s16, 2
      // Predicated region
      $region65: #{bottleneck_forward.6} parent=63 // pred_check
        %p771 = pneg %p197
      $region66: #{bottleneck_forward.6} parent=63 // pred_check_branch
        %773 = sbr.rel (%p771) target = $region68
      $region67: #{bottleneck_forward.6} parent=63 // pred_region
        %s774 = smul.u32 8, %s22
        %p775 = scmp.lt.s32.totalorder %s774, 63
        %s776 = scalar_select %p775, %s774, 63
        %s777 = smul.addr %s776, 2
        %s778 = smul.addr %s777, 8
        %s779 = scalar_lea.vmem %s7, %s778
      $region68: #{bottleneck_forward.6} parent=63 // pred_fallthru
        _
      // Predicated region
      $region69: #{bottleneck_forward.6} parent=63 // pred_check
        %p780 = pneg %p223
      $region70: #{bottleneck_forward.6} parent=63 // pred_check_branch
        %782 = sbr.rel (%p780) target = $region72
      $region71: #{bottleneck_forward.6} parent=63 // pred_region
        %p783 = scmp.lt.s32.totalorder %s22, 7
        %s784 = scalar_select %p783, %s22, 7
        %s785 = smul.addr %s784, 2
        %s786 = smul.addr %s785, 8
        %s787 = scalar_lea.vmem %s8, %s786
      $region72: #{bottleneck_forward.6} parent=63 // pred_fallthru
        _
      // Predicated region
      $region73: #{bottleneck_forward.6} parent=63 // pred_check
        %p788 = pneg %p249
      $region74: #{bottleneck_forward.6} parent=63 // pred_check_branch
        %790 = sbr.rel (%p788) target = $region76
      $region75: #{bottleneck_forward.6} parent=63 // pred_region
        %p791 = scmp.lt.s32.totalorder %s22, 7
        %s792 = scalar_select %p791, %s22, 7
        %s793 = smul.addr %s792, 2
        %s794 = smul.addr %s793, 8
        %s795 = scalar_lea.vmem %s9, %s794
      $region76: #{bottleneck_forward.6} parent=63 // pred_fallthru
        _
    $region64: #{bottleneck_forward.6} parent=5 // pred_fallthru
      _
  $region6: #{bottleneck_forward.6} parent=0 // loop_footer
    %s20 = sadd.s32 1, %s16
  $region7: #{bottleneck_forward.6} parent=0 // loop_footer_branch
    %15 = sbr.rel target = $region3
  $region8: #{bottleneck_forward.6} parent=0 // loop_exit
    _

// kernel: bottleneck_forward.5
$region0: #{bottleneck_forward.5}
  #allocation0 [shape = 'u32[]', space=smem, size = 0x4, offset = 0x4, fixed_abs, tag = 'smem constant byte address 0x4 - core index']
  #allocation1 [shape = 'u32[144,128]{1,0:T(1,128)}', space=vmem, size = 0x12000, scoped, tag = 'internal scratch']
  #allocation2 [shape = 'f32[96,128]{1,0:T(8,128)}', space=vmem, size = 0xc000, scoped, tag = 'scratch operand']
  %s0 = inlined_call_operand.vmem [shape: f32[512,128], index: 0, kind: input, shape index: {}]
  %s1 = inlined_call_operand.vmem [shape: f32[64,128], index: 1, kind: input, shape index: {}]
  %s2 = inlined_call_operand.vmem [shape: f32[64,128], index: 2, kind: input, shape index: {}]
  %s3 = inlined_call_operand.vmem [shape: f32[1,128], index: 3, kind: input, shape index: {}]
  %s4 = inlined_call_operand.vmem [shape: f32[1,128], index: 4, kind: input, shape index: {}]
  %s5 = inlined_call_operand.vmem [shape: bf16[1152,128], index: 5, kind: input, shape index: {}]
  %s6 = inlined_call_operand.vmem [shape: f32[1,128], index: 6, kind: input, shape index: {}]
  %s7 = inlined_call_operand.vmem [shape: f32[512,128], index: 7, kind: output, shape index: {0}]
  %s8 = inlined_call_operand.vmem [shape: f32[64,128], index: 8, kind: output, shape index: {1}]
  %s9 = inlined_call_operand.vmem [shape: f32[64,128], index: 9, kind: output, shape index: {2}]
  %10 = xla_tuple %s7, %s8, %s9
  %s11 = sld [smem:[#allocation0]]
  $region93: #{bottleneck_forward.5} parent=0
    _
  %s13 = ssub.s32 1, %s11
  %s14 = scalar_select 0, %s13, %s11
  loop: start=0, step=1, limit=10
  $region2: #{bottleneck_forward.5} parent=0 // loop_pre_header
    _
  $region3: #{bottleneck_forward.5} parent=0 // loop_header
    %s16 = sphi 0, %s20
    %p17 = scmp.ge.s32.totalorder %s16, 10
    %s23 = sphi 0, %s35
    %s24 = sphi 0, %s31
    %s25 = sphi 0, %s23
    %s26 = sphi 0, %s24
    %s27 = sphi 0, %s25
    %s28 = sphi 0, %s26
    %s38 = sphi 0, %s40
    %s41 = sphi 0, %s38
    %s42 = sphi 0, %s41
    %s58 = sphi 0, %s42
    %s62 = sphi 0, %s62
    %s64 = sphi 0, %s62
    %s65 = sphi 0, %s64
    %s79 = sphi 0, %s65
    %s83 = sphi 0, %s83
    %s85 = sphi 0, %s83
    %s86 = sphi 0, %s85
    %s100 = sphi 0, %s86
    %s104 = sphi 0, %s104
    %s106 = sphi 0, %s104
    %s107 = sphi 0, %s106
    %s121 = sphi 0, %s107
    %s125 = sphi 0, %s125
    %s127 = sphi 0, %s125
    %s128 = sphi 0, %s127
    %s142 = sphi 0, %s128
    %s146 = sphi 0, %s146
    %s148 = sphi 0, %s146
    %s149 = sphi 0, %s148
    %s163 = sphi 0, %s149
    %s167 = sphi 0, %s167
    %s169 = sphi 0, %s167
    %s170 = sphi 0, %s169
    %s184 = sphi 0, %s170
    %s194 = sphi 0, %s196
    %s197 = sphi 0, %s194
    %s198 = sphi 0, %s197
    %s214 = sphi 0, %s198
    %s224 = sphi 0, %s226
    %s227 = sphi 0, %s224
    %s228 = sphi 0, %s227
    %s244 = sphi 0, %s228
    %s254 = sphi 0, %s256
    %s257 = sphi 0, %s254
    %s258 = sphi 0, %s257
    %s274 = sphi 0, %s258
  $region4: #{bottleneck_forward.5} parent=0 // loop_header_branch
    %19 = sbr.rel (%p17) target = $region8
  $region5: #{bottleneck_forward.5} parent=0 // loop_body
    %s21 = ssub.s32 %s16, 1
    %s22 = ssub.s32 %s16, 2
    %s29 = sadd.s32 1, %s24
    %p30 = scmp.ge.s32.totalorder %s29, 4
    %s31 = scalar_select %p30, 0, %s29
    %s32 = sadd.s32 1, %s23
    %s33 = scalar_select %p30, %s32, %s23
    %p34 = scmp.ge.s32.totalorder %s33, 2
    %s35 = scalar_select %p34, 0, %s33
    %s36 = ssub.s32 %s23, %s35
    %p37 = scmp.eq.s32.totalorder %s36, 0
    %s39 = sadd.s32 %s38, 1
    %s40 = scalar_select %p37, %s38, %s39
    %p43 = pneg %p37
    %p44 = scmp.eq.s32.totalorder %s16, 7
    %p45 = por %p43, %p44
    %p46 = scmp.ne.s32.totalorder %s38, %s41
    %p47 = scmp.eq.s32.totalorder %s16, 0
    %p48 = por %p46, %p47
    %p49 = scmp.ne.s32.totalorder %s38, %s41
    %p50 = scmp.eq.s32.totalorder %s21, 7
    %p51 = por %p49, %p50
    %p52 = scmp.ne.s32.totalorder %s41, %s42
    %p53 = scmp.eq.s32.totalorder %s21, 0
    %p54 = por %p52, %p53
    %p55 = scmp.ne.s32.totalorder %s41, %s42
    %p56 = scmp.eq.s32.totalorder %s22, 7
    %p57 = por %p55, %p56
    %p59 = scmp.ne.s32.totalorder %s42, %s58
    %p60 = scmp.eq.s32.totalorder %s22, 0
    %p61 = por %p59, %p60
    %s63 = sadd.s32 %s62, 1
    %p66 = scmp.eq.s32.totalorder %s16, 7
    %p67 = scmp.ne.s32.totalorder %s62, %s64
    %p68 = scmp.eq.s32.totalorder %s16, 0
    %p69 = por %p67, %p68
    %p70 = scmp.ne.s32.totalorder %s62, %s64
    %p71 = scmp.eq.s32.totalorder %s21, 7
    %p72 = por %p70, %p71
    %p73 = scmp.ne.s32.totalorder %s64, %s65
    %p74 = scmp.eq.s32.totalorder %s21, 0
    %p75 = por %p73, %p74
    %p76 = scmp.ne.s32.totalorder %s64, %s65
    %p77 = scmp.eq.s32.totalorder %s22, 7
    %p78 = por %p76, %p77
    %p80 = scmp.ne.s32.totalorder %s65, %s79
    %p81 = scmp.eq.s32.totalorder %s22, 0
    %p82 = por %p80, %p81
    %s84 = sadd.s32 %s83, 1
    %p87 = scmp.eq.s32.totalorder %s16, 7
    %p88 = scmp.ne.s32.totalorder %s83, %s85
    %p89 = scmp.eq.s32.totalorder %s16, 0
    %p90 = por %p88, %p89
    %p91 = scmp.ne.s32.totalorder %s83, %s85
    %p92 = scmp.eq.s32.totalorder %s21, 7
    %p93 = por %p91, %p92
    %p94 = scmp.ne.s32.totalorder %s85, %s86
    %p95 = scmp.eq.s32.totalorder %s21, 0
    %p96 = por %p94, %p95
    %p97 = scmp.ne.s32.totalorder %s85, %s86
    %p98 = scmp.eq.s32.totalorder %s22, 7
    %p99 = por %p97, %p98
    %p101 = scmp.ne.s32.totalorder %s86, %s100
    %p102 = scmp.eq.s32.totalorder %s22, 0
    %p103 = por %p101, %p102
    %s105 = sadd.s32 %s104, 1
    %p108 = scmp.eq.s32.totalorder %s16, 7
    %p109 = scmp.ne.s32.totalorder %s104, %s106
    %p110 = scmp.eq.s32.totalorder %s16, 0
    %p111 = por %p109, %p110
    %p112 = scmp.ne.s32.totalorder %s104, %s106
    %p113 = scmp.eq.s32.totalorder %s21, 7
    %p114 = por %p112, %p113
    %p115 = scmp.ne.s32.totalorder %s106, %s107
    %p116 = scmp.eq.s32.totalorder %s21, 0
    %p117 = por %p115, %p116
    %p118 = scmp.ne.s32.totalorder %s106, %s107
    %p119 = scmp.eq.s32.totalorder %s22, 7
    %p120 = por %p118, %p119
    %p122 = scmp.ne.s32.totalorder %s107, %s121
    %p123 = scmp.eq.s32.totalorder %s22, 0
    %p124 = por %p122, %p123
    %s126 = sadd.s32 %s125, 1
    %p129 = scmp.eq.s32.totalorder %s16, 7
    %p130 = scmp.ne.s32.totalorder %s125, %s127
    %p131 = scmp.eq.s32.totalorder %s16, 0
    %p132 = por %p130, %p131
    %p133 = scmp.ne.s32.totalorder %s125, %s127
    %p134 = scmp.eq.s32.totalorder %s21, 7
    %p135 = por %p133, %p134
    %p136 = scmp.ne.s32.totalorder %s127, %s128
    %p137 = scmp.eq.s32.totalorder %s21, 0
    %p138 = por %p136, %p137
    %p139 = scmp.ne.s32.totalorder %s127, %s128
    %p140 = scmp.eq.s32.totalorder %s22, 7
    %p141 = por %p139, %p140
    %p143 = scmp.ne.s32.totalorder %s128, %s142
    %p144 = scmp.eq.s32.totalorder %s22, 0
    %p145 = por %p143, %p144
    %s147 = sadd.s32 %s146, 1
    %p150 = scmp.eq.s32.totalorder %s16, 7
    %p151 = scmp.ne.s32.totalorder %s146, %s148
    %p152 = scmp.eq.s32.totalorder %s16, 0
    %p153 = por %p151, %p152
    %p154 = scmp.ne.s32.totalorder %s146, %s148
    %p155 = scmp.eq.s32.totalorder %s21, 7
    %p156 = por %p154, %p155
    %p157 = scmp.ne.s32.totalorder %s148, %s149
    %p158 = scmp.eq.s32.totalorder %s21, 0
    %p159 = por %p157, %p158
    %p160 = scmp.ne.s32.totalorder %s148, %s149
    %p161 = scmp.eq.s32.totalorder %s22, 7
    %p162 = por %p160, %p161
    %p164 = scmp.ne.s32.totalorder %s149, %s163
    %p165 = scmp.eq.s32.totalorder %s22, 0
    %p166 = por %p164, %p165
    %s168 = sadd.s32 %s167, 1
    %p171 = scmp.eq.s32.totalorder %s16, 7
    %p172 = scmp.ne.s32.totalorder %s167, %s169
    %p173 = scmp.eq.s32.totalorder %s16, 0
    %p174 = por %p172, %p173
    %p175 = scmp.ne.s32.totalorder %s167, %s169
    %p176 = scmp.eq.s32.totalorder %s21, 7
    %p177 = por %p175, %p176
    %p178 = scmp.ne.s32.totalorder %s169, %s170
    %p179 = scmp.eq.s32.totalorder %s21, 0
    %p180 = por %p178, %p179
    %p181 = scmp.ne.s32.totalorder %s169, %s170
    %p182 = scmp.eq.s32.totalorder %s22, 7
    %p183 = por %p181, %p182
    %p185 = scmp.ne.s32.totalorder %s170, %s184
    %p186 = scmp.eq.s32.totalorder %s22, 0
    %p187 = por %p185, %p186
    %s188 = smul.u32 %s23, 4
    %s189 = sadd.s32 %s188, %s24
    %s190 = smul.u32 %s35, 4
    %s191 = sadd.s32 %s190, %s31
    %s192 = ssub.s32 %s189, %s191
    %p193 = scmp.eq.s32.totalorder %s192, 0
    %s195 = sadd.s32 %s194, 1
    %s196 = scalar_select %p193, %s194, %s195
    %p199 = pneg %p193
    %p200 = scmp.eq.s32.totalorder %s16, 7
    %p201 = por %p199, %p200
    %p202 = scmp.ne.s32.totalorder %s194, %s197
    %p203 = scmp.eq.s32.totalorder %s16, 0
    %p204 = por %p202, %p203
    %p205 = scmp.ne.s32.totalorder %s194, %s197
    %p206 = scmp.eq.s32.totalorder %s21, 7
    %p207 = por %p205, %p206
    %p208 = scmp.ne.s32.totalorder %s197, %s198
    %p209 = scmp.eq.s32.totalorder %s21, 0
    %p210 = por %p208, %p209
    %p211 = scmp.ne.s32.totalorder %s197, %s198
    %p212 = scmp.eq.s32.totalorder %s22, 7
    %p213 = por %p211, %p212
    %p215 = scmp.ne.s32.totalorder %s198, %s214
    %p216 = scmp.eq.s32.totalorder %s22, 0
    %p217 = por %p215, %p216
    %s218 = smul.u32 %s23, 4
    %s219 = sadd.s32 %s218, %s24
    %s220 = smul.u32 %s35, 4
    %s221 = sadd.s32 %s220, %s31
    %s222 = ssub.s32 %s219, %s221
    %p223 = scmp.eq.s32.totalorder %s222, 0
    %s225 = sadd.s32 %s224, 1
    %s226 = scalar_select %p223, %s224, %s225
    %p229 = pneg %p223
    %p230 = scmp.eq.s32.totalorder %s16, 7
    %p231 = por %p229, %p230
    %p232 = scmp.ne.s32.totalorder %s224, %s227
    %p233 = scmp.eq.s32.totalorder %s16, 0
    %p234 = por %p232, %p233
    %p235 = scmp.ne.s32.totalorder %s224, %s227
    %p236 = scmp.eq.s32.totalorder %s21, 7
    %p237 = por %p235, %p236
    %p238 = scmp.ne.s32.totalorder %s227, %s228
    %p239 = scmp.eq.s32.totalorder %s21, 0
    %p240 = por %p238, %p239
    %p241 = scmp.ne.s32.totalorder %s227, %s228
    %p242 = scmp.eq.s32.totalorder %s22, 7
    %p243 = por %p241, %p242
    %p245 = scmp.ne.s32.totalorder %s228, %s244
    %p246 = scmp.eq.s32.totalorder %s22, 0
    %p247 = por %p245, %p246
    %s248 = smul.u32 %s23, 4
    %s249 = sadd.s32 %s248, %s24
    %s250 = smul.u32 %s35, 4
    %s251 = sadd.s32 %s250, %s31
    %s252 = ssub.s32 %s249, %s251
    %p253 = scmp.eq.s32.totalorder %s252, 0
    %s255 = sadd.s32 %s254, 1
    %s256 = scalar_select %p253, %s254, %s255
    %p259 = pneg %p253
    %p260 = scmp.eq.s32.totalorder %s16, 7
    %p261 = por %p259, %p260
    %p262 = scmp.ne.s32.totalorder %s254, %s257
    %p263 = scmp.eq.s32.totalorder %s16, 0
    %p264 = por %p262, %p263
    %p265 = scmp.ne.s32.totalorder %s254, %s257
    %p266 = scmp.eq.s32.totalorder %s21, 7
    %p267 = por %p265, %p266
    %p268 = scmp.ne.s32.totalorder %s257, %s258
    %p269 = scmp.eq.s32.totalorder %s21, 0
    %p270 = por %p268, %p269
    %p271 = scmp.ne.s32.totalorder %s257, %s258
    %p272 = scmp.eq.s32.totalorder %s22, 7
    %p273 = por %p271, %p272
    %p275 = scmp.ne.s32.totalorder %s258, %s274
    %p276 = scmp.eq.s32.totalorder %s22, 0
    %p277 = por %p275, %p276
    %p278 = scmp.le.s32.totalorder 1, %s16
    %p279 = scmp.lt.s32.totalorder %s16, 9
    %p280 = pnand %p278, %p279
    %p281 = pneg %p280
    // Predicated region
    $region9: #{bottleneck_forward.5} parent=5 // pred_check
      _
    $region10: #{bottleneck_forward.5} parent=5 // pred_check_branch
      %283 = sbr.rel (%p280) target = $region12
    $region11: #{bottleneck_forward.5} parent=5 // pred_region
      %s284 = ssub.s32 %s16, 1
      // Predicated region
      $region13: #{bottleneck_forward.5} parent=11 // pred_check
        %p285 = pneg %p75
      $region14: #{bottleneck_forward.5} parent=11 // pred_check_branch
        %287 = sbr.rel (%p285) target = $region16
      $region15: #{bottleneck_forward.5} parent=11 // pred_region
        _
      $region16: #{bottleneck_forward.5} parent=11 // pred_fallthru
        _
      // Predicated region
      $region17: #{bottleneck_forward.5} parent=11 // pred_check
        %p288 = pneg %p96
      $region18: #{bottleneck_forward.5} parent=11 // pred_check_branch
        %290 = sbr.rel (%p288) target = $region20
      $region19: #{bottleneck_forward.5} parent=11 // pred_region
        _
      $region20: #{bottleneck_forward.5} parent=11 // pred_fallthru
        _
      // Predicated region
      $region21: #{bottleneck_forward.5} parent=11 // pred_check
        %p291 = pneg %p117
      $region22: #{bottleneck_forward.5} parent=11 // pred_check_branch
        %293 = sbr.rel (%p291) target = $region24
      $region23: #{bottleneck_forward.5} parent=11 // pred_region
        _
      $region24: #{bottleneck_forward.5} parent=11 // pred_fallthru
        _
      // Predicated region
      $region25: #{bottleneck_forward.5} parent=11 // pred_check
        %p294 = pneg %p138
      $region26: #{bottleneck_forward.5} parent=11 // pred_check_branch
        %296 = sbr.rel (%p294) target = $region28
      $region27: #{bottleneck_forward.5} parent=11 // pred_region
        _
      $region28: #{bottleneck_forward.5} parent=11 // pred_fallthru
        _
      // Predicated region
      $region29: #{bottleneck_forward.5} parent=11 // pred_check
        %p297 = pneg %p159
      $region30: #{bottleneck_forward.5} parent=11 // pred_check_branch
        %299 = sbr.rel (%p297) target = $region32
      $region31: #{bottleneck_forward.5} parent=11 // pred_region
        _
      $region32: #{bottleneck_forward.5} parent=11 // pred_fallthru
        _
      // Predicated region
      $region33: #{bottleneck_forward.5} parent=11 // pred_check
        %p300 = pneg %p180
      $region34: #{bottleneck_forward.5} parent=11 // pred_check_branch
        %302 = sbr.rel (%p300) target = $region36
      $region35: #{bottleneck_forward.5} parent=11 // pred_region
        _
      $region36: #{bottleneck_forward.5} parent=11 // pred_fallthru
        _
    $region12: #{bottleneck_forward.5} parent=5 // pred_fallthru
      _
    %p303 = scmp.lt.s32.totalorder %s16, 8
    // Predicated region
    $region37: #{bottleneck_forward.5} parent=5 // pred_check
      %p304 = pneg %p303
    $region38: #{bottleneck_forward.5} parent=5 // pred_check_branch
      %306 = sbr.rel (%p304) target = $region40
    $region39: #{bottleneck_forward.5} parent=5 // pred_region
      // Predicated region
      $region41: #{bottleneck_forward.5} parent=39 // pred_check
        %p307 = pneg %p48
      $region42: #{bottleneck_forward.5} parent=39 // pred_check_branch
        %309 = sbr.rel (%p307) target = $region44
      $region43: #{bottleneck_forward.5} parent=39 // pred_region
        %s310 = smul.u32 32, %s23
        %p311 = scmp.lt.s32.totalorder %s310, 63
        %s312 = scalar_select %p311, %s310, 63
        %s313 = smul.addr %s312, 8
        %s314 = scalar_lea.vmem %s0, %s313
        %s315 = smul.u32 32, %s23
      $region44: #{bottleneck_forward.5} parent=39 // pred_fallthru
        _
    $region40: #{bottleneck_forward.5} parent=5 // pred_fallthru
      _
    %p316 = scmp.le.s32.totalorder 1, %s16
    %p317 = scmp.lt.s32.totalorder %s16, 9
    %p318 = pnand %p316, %p317
    %p319 = pneg %p318
    // Predicated region
    $region45: #{bottleneck_forward.5} parent=5 // pred_check
      _
    $region46: #{bottleneck_forward.5} parent=5 // pred_check_branch
      %321 = sbr.rel (%p318) target = $region48
    $region47: #{bottleneck_forward.5} parent=5 // pred_region
      %s322 = ssub.s32 %s16, 1
      %s323 = smul.u32 32, %s25
      %p324 = scmp.lt.s32.totalorder %s323, 63
      %s325 = scalar_select %p324, %s323, 63
      %s326 = smul.addr %s325, 8
      %s327 = scalar_lea.vmem %s0, %s326
      %p328 = pneg %p54
      %p329 = pneg %p51
      %p330 = pneg %p75
      %p331 = pneg %p72
      %p332 = pneg %p96
      %p333 = pneg %p93
      %p334 = pneg %p117
      %p335 = pneg %p114
      %p336 = pneg %p138
      %p337 = pneg %p135
      %p338 = pneg %p159
      %p339 = pneg %p156
      %p340 = pneg %p180
      %p341 = pneg %p177
      %p342 = pneg %p210
      %p343 = pneg %p207
      %s344 = smul.u32 %s25, 4
      %s345 = sadd.s32 %s344, %s26
      %s346 = smul.u32 8, %s345
      %p347 = scmp.lt.s32.totalorder %s346, 63
      %s348 = scalar_select %p347, %s346, 63
      %s349 = smul.addr %s348, 8
      %s350 = scalar_lea.vmem %s7, %s349
      %p351 = pneg %p240
      %p352 = pneg %p237
      %s353 = smul.u32 %s25, 4
      %s354 = sadd.s32 %s353, %s26
      %p355 = scmp.lt.s32.totalorder %s354, 7
      %s356 = scalar_select %p355, %s354, 7
      %s357 = smul.addr %s356, 8
      %s358 = scalar_lea.vmem %s8, %s357
      %p359 = pneg %p270
      %p360 = pneg %p267
      %s361 = smul.u32 %s25, 4
      %s362 = sadd.s32 %s361, %s26
      %p363 = scmp.lt.s32.totalorder %s362, 7
      %s364 = scalar_select %p363, %s362, 7
      %s365 = smul.addr %s364, 8
      %s366 = scalar_lea.vmem %s9, %s365
      %s367 = smul.u32 32, %s25
      %p368 = scmp.lt.s32.totalorder %s367, 63
      %s369 = scalar_select %p368, %s367, 63
      %s370 = smul.addr %s369, 8
      %s371 = scalar_lea.vmem %s0, %s370
      %s372 = smul.u32 32, %s25
      %s373 = smul.u32 %s25, 4
      %s374 = sadd.s32 %s373, %s26
      %s375 = smul.u32 8, %s374
      %p376 = scmp.lt.s32.totalorder %s375, 63
      %s377 = scalar_select %p376, %s375, 63
      %s378 = smul.addr %s377, 8
      %s379 = scalar_lea.vmem %s7, %s378
      %s380 = smul.u32 %s25, 4
      %s381 = sadd.s32 %s380, %s26
      %s382 = smul.u32 8, %s381
      %s383 = smul.u32 %s25, 4
      %s384 = sadd.s32 %s383, %s26
      %p385 = scmp.lt.s32.totalorder %s384, 7
      %s386 = scalar_select %p385, %s384, 7
      %s387 = smul.addr %s386, 8
      %s388 = scalar_lea.vmem %s8, %s387
      %s389 = smul.u32 %s25, 4
      %s390 = sadd.s32 %s389, %s26
      %s391 = smul.u32 %s25, 4
      %s392 = sadd.s32 %s391, %s26
      %p393 = scmp.lt.s32.totalorder %s392, 7
      %s394 = scalar_select %p393, %s392, 7
      %s395 = smul.addr %s394, 8
      %s396 = scalar_lea.vmem %s9, %s395
      %s397 = smul.u32 %s25, 4
      %s398 = sadd.s32 %s397, %s26
      %v400 = vld [vmem:[%s1] sm:$0xff]
      %v401 = vld [vmem:[%s1 + $0x8] sm:$0xff]
      %v402 = vld [vmem:[%s1 + $0x10] sm:$0xff]
      %v403 = vld [vmem:[%s1 + $0x18] sm:$0xff]
      %v404 = vld [vmem:[%s1 + $0x20] sm:$0xff]
      %v405 = vld [vmem:[%s1 + $0x28] sm:$0xff]
      %v406 = vld [vmem:[%s1 + $0x30] sm:$0xff]
      %v407 = vld [vmem:[%s1 + $0x38] sm:$0xff]
      %v408 = vadd.f32 %v400, %v401
      %v409 = vadd.f32 %v408, %v402
      %v410 = vadd.f32 %v409, %v403
      %v411 = vadd.f32 %v410, %v404
      %v412 = vadd.f32 %v411, %v405
      %v413 = vadd.f32 %v412, %v406
      %v414 = vadd.f32 %v413, %v407
      %v415 = vrot.slane %v414, 4
      %v416 = vadd.f32 %v414, %v415
      %v417 = vrot.slane %v416, 2
      %v418 = vadd.f32 %v416, %v417
      %v419 = vrot.slane %v418, 1
      %v420 = vadd.f32 %v418, %v419
      %v421 = vmul.f32 %v420, 0.001953125
      %v422 = vld [vmem:[%s2] sm:$0xff]
      %v423 = vld [vmem:[%s2 + $0x8] sm:$0xff]
      %v424 = vld [vmem:[%s2 + $0x10] sm:$0xff]
      %v425 = vld [vmem:[%s2 + $0x18] sm:$0xff]
      %v426 = vld [vmem:[%s2 + $0x20] sm:$0xff]
      %v427 = vld [vmem:[%s2 + $0x28] sm:$0xff]
      %v428 = vld [vmem:[%s2 + $0x30] sm:$0xff]
      %v429 = vld [vmem:[%s2 + $0x38] sm:$0xff]
      %v430 = vadd.f32 %v422, %v423
      %v431 = vadd.f32 %v430, %v424
      %v432 = vadd.f32 %v431, %v425
      %v433 = vadd.f32 %v432, %v426
      %v434 = vadd.f32 %v433, %v427
      %v435 = vadd.f32 %v434, %v428
      %v436 = vadd.f32 %v435, %v429
      %v437 = vrot.slane %v436, 4
      %v438 = vadd.f32 %v436, %v437
      %v439 = vrot.slane %v438, 2
      %v440 = vadd.f32 %v438, %v439
      %v441 = vrot.slane %v440, 1
      %v442 = vadd.f32 %v440, %v441
      %v443 = vmul.f32 %v442, 0.001953125
      %v444 = vmul.f32 %v421, %v421
      %v445 = vsub.f32 %v443, %v444
      %v446 = vmax.f32 %v445, 0.0
      %v447 = vld [vmem:[%s3] sm:$0x1]
      %v448 = vadd.f32 %v446, 1e-05
      %v449 = vrsqrt.pop %v448
      %v450 = vmul.f32 %v447, %v449
      %v451 = vld [vmem:[%s4] sm:$0x1]
      %v452 = vmul.f32 %v421, %v450
      %v453 = vsub.f32 %v451, %v452
      %s454 = smul.u32 %s26, 64
      %s455 = scalar_lea.vmem %s371, %s454
      %v456 = vld [vmem:[%s455] sm:$0xff]
      %v457 = vld [vmem:[%s455 + $0x8] sm:$0xff]
      %v458 = vld [vmem:[%s455 + $0x10] sm:$0xff]
      %v459 = vld [vmem:[%s455 + $0x18] sm:$0xff]
      %v460 = vld [vmem:[%s455 + $0x20] sm:$0xff]
      %v461 = vld [vmem:[%s455 + $0x28] sm:$0xff]
      %v462 = vld [vmem:[%s455 + $0x30] sm:$0xff]
      %v463 = vld [vmem:[%s455 + $0x38] sm:$0xff]
      %v465 = vlaneseq
      %v466 = vshrl.u32 %v465, 7
      %v467 = vsub.s32 0, %v466
      %v468 = vrot.slane %v450, %v467
      %v470 = vmul.f32 %v456, %v468
      %v471 = vmul.f32 %v457, %v468
      %v472 = vmul.f32 %v458, %v468
      %v473 = vmul.f32 %v459, %v468
      %v474 = vmul.f32 %v460, %v468
      %v475 = vmul.f32 %v461, %v468
      %v476 = vmul.f32 %v462, %v468
      %v477 = vmul.f32 %v463, %v468
      %v479 = vlaneseq
      %v480 = vshrl.u32 %v479, 7
      %v481 = vsub.s32 0, %v480
      %v482 = vrot.slane %v453, %v481
      %v484 = vadd.f32 %v470, %v482
      %v485 = vadd.f32 %v471, %v482
      %v486 = vadd.f32 %v472, %v482
      %v487 = vadd.f32 %v473, %v482
      %v488 = vadd.f32 %v474, %v482
      %v489 = vadd.f32 %v475, %v482
      %v490 = vadd.f32 %v476, %v482
      %v491 = vadd.f32 %v477, %v482
      %v492 = vmax.f32 %v484, 0.0
      %v493 = vmax.f32 %v485, 0.0
      %v494 = vmax.f32 %v486, 0.0
      %v495 = vmax.f32 %v487, 0.0
      %v496 = vmax.f32 %v488, 0.0
      %v497 = vmax.f32 %v489, 0.0
      %v498 = vmax.f32 %v490, 0.0
      %v499 = vmax.f32 %v491, 0.0
      %500 = vst [vmem:[#allocation2 + $0x10] sm:$0xff] %v492
      %501 = vst [vmem:[#allocation2 + $0x18] sm:$0xff] %v493
      %502 = vst [vmem:[#allocation2 + $0x20] sm:$0xff] %v494
      %503 = vst [vmem:[#allocation2 + $0x28] sm:$0xff] %v495
      %504 = vst [vmem:[#allocation2 + $0x30] sm:$0xff] %v496
      %505 = vst [vmem:[#allocation2 + $0x38] sm:$0xff] %v497
      %506 = vst [vmem:[#allocation2 + $0x40] sm:$0xff] %v498
      %507 = vst [vmem:[#allocation2 + $0x48] sm:$0xff] %v499
      %p508 = scmp.eq.s32.totalorder %s26, 0
      // Predicated region
      $region49: #{bottleneck_forward.5} parent=47 // pred_check
        %p509 = pneg %p508
      $region50: #{bottleneck_forward.5} parent=47 // pred_check_branch
        %511 = sbr.rel (%p509) target = $region52
      $region51: #{bottleneck_forward.5} parent=47 // pred_region
        %512 = vst [vmem:[#allocation2] sm:$0xff] 0.0
        %513 = vst [vmem:[#allocation2 + $0x8] sm:$0xff] 0.0
      $region52: #{bottleneck_forward.5} parent=47 // pred_fallthru
        _
      %p514 = scmp.gt.s32.totalorder %s26, 0
      // Predicated region
      $region53: #{bottleneck_forward.5} parent=47 // pred_check
        %p515 = pneg %p514
      $region54: #{bottleneck_forward.5} parent=47 // pred_check_branch
        %517 = sbr.rel (%p515) target = $region56
      $region55: #{bottleneck_forward.5} parent=47 // pred_region
        %s518 = ssub.s32 %s454, 16
        %s519 = scalar_lea.vmem %s371, %s518
        %v520 = vld [vmem:[%s519] sm:$0xff]
        %v521 = vld [vmem:[%s519 + $0x8] sm:$0xff]
        %v522 = vmul.f32 %v520, %v468
        %v523 = vmul.f32 %v521, %v468
        %v524 = vadd.f32 %v522, %v482
        %v525 = vadd.f32 %v523, %v482
        %v526 = vmax.f32 %v524, 0.0
        %v527 = vmax.f32 %v525, 0.0
        %528 = vst [vmem:[#allocation2] sm:$0xff] %v526
        %529 = vst [vmem:[#allocation2 + $0x8] sm:$0xff] %v527
      $region56: #{bottleneck_forward.5} parent=47 // pred_fallthru
        _
      %p530 = scmp.eq.s32.totalorder %s26, 3
      // Predicated region
      $region57: #{bottleneck_forward.5} parent=47 // pred_check
        %p531 = pneg %p530
      $region58: #{bottleneck_forward.5} parent=47 // pred_check_branch
        %533 = sbr.rel (%p531) target = $region60
      $region59: #{bottleneck_forward.5} parent=47 // pred_region
        %534 = vst [vmem:[#allocation2 + $0x50] sm:$0xff] 0.0
        %535 = vst [vmem:[#allocation2 + $0x58] sm:$0xff] 0.0
      $region60: #{bottleneck_forward.5} parent=47 // pred_fallthru
        _
      %p536 = scmp.lt.s32.totalorder %s26, 3
      // Predicated region
      $region61: #{bottleneck_forward.5} parent=47 // pred_check
        %p537 = pneg %p536
      $region62: #{bottleneck_forward.5} parent=47 // pred_check_branch
        %539 = sbr.rel (%p537) target = $region64
      $region63: #{bottleneck_forward.5} parent=47 // pred_region
        %s540 = sadd.s32 %s454, 64
        %s541 = scalar_lea.vmem %s371, %s540
        %v542 = vld [vmem:[%s541] sm:$0xff]
        %v543 = vld [vmem:[%s541 + $0x8] sm:$0xff]
        %v544 = vmul.f32 %v542, %v468
        %v545 = vmul.f32 %v543, %v468
        %v546 = vadd.f32 %v544, %v482
        %v547 = vadd.f32 %v545, %v482
        %v548 = vmax.f32 %v546, 0.0
        %v549 = vmax.f32 %v547, 0.0
        %550 = vst [vmem:[#allocation2 + $0x50] sm:$0xff] %v548
        %551 = vst [vmem:[#allocation2 + $0x58] sm:$0xff] %v549
      $region64: #{bottleneck_forward.5} parent=47 // pred_fallthru
        _
      %v552 = vlaneseq
      %v553 = vshrl.u32 %v552, 7
      %v554 = vadd.s32 %v553, 8
      %v555 = vadd.s32 %v553, 16
      %v556 = vadd.s32 %v553, 24
      %v557 = vadd.s32 %v553, 32
      %v558 = vadd.s32 %v553, 40
      %v559 = vadd.s32 %v553, 48
      %v560 = vadd.s32 %v553, 56
      %vm561 = vcmp.lt.s32.totalorder %v553, 0
      %v562 = vsub.s32 0, %v553
      %v563 = vsel %vm561, %v562, %v553
      %v564 = vshrl.u32 %v563, 4
      %v565 = vand.u32 %v563, 15
      %v566 = vsub.s32 0, %v565
      %v567 = vsel %vm561, %v566, %v565
      %vm568 = vcmp.lt.s32.totalorder %v554, 0
      %v569 = vsub.s32 0, %v554
      %v570 = vsel %vm568, %v569, %v554
      %v571 = vshrl.u32 %v570, 4
      %v572 = vand.u32 %v570, 15
      %v573 = vsub.s32 0, %v572
      %v574 = vsel %vm568, %v573, %v572
      %vm575 = vcmp.lt.s32.totalorder %v555, 0
      %v576 = vsub.s32 0, %v555
      %v577 = vsel %vm575, %v576, %v555
      %v578 = vshrl.u32 %v577, 4
      %v579 = vand.u32 %v577, 15
      %v580 = vsub.s32 0, %v579
      %v581 = vsel %vm575, %v580, %v579
      %vm582 = vcmp.lt.s32.totalorder %v556, 0
      %v583 = vsub.s32 0, %v556
      %v584 = vsel %vm582, %v583, %v556
      %v585 = vshrl.u32 %v584, 4
      %v586 = vand.u32 %v584, 15
      %v587 = vsub.s32 0, %v586
      %v588 = vsel %vm582, %v587, %v586
      %vm589 = vcmp.lt.s32.totalorder %v557, 0
      %v590 = vsub.s32 0, %v557
      %v591 = vsel %vm589, %v590, %v557
      %v592 = vshrl.u32 %v591, 4
      %v593 = vand.u32 %v591, 15
      %v594 = vsub.s32 0, %v593
      %v595 = vsel %vm589, %v594, %v593
      %vm596 = vcmp.lt.s32.totalorder %v558, 0
      %v597 = vsub.s32 0, %v558
      %v598 = vsel %vm596, %v597, %v558
      %v599 = vshrl.u32 %v598, 4
      %v600 = vand.u32 %v598, 15
      %v601 = vsub.s32 0, %v600
      %v602 = vsel %vm596, %v601, %v600
      %vm603 = vcmp.lt.s32.totalorder %v559, 0
      %v604 = vsub.s32 0, %v559
      %v605 = vsel %vm603, %v604, %v559
      %v606 = vshrl.u32 %v605, 4
      %v607 = vand.u32 %v605, 15
      %v608 = vsub.s32 0, %v607
      %v609 = vsel %vm603, %v608, %v607
      %vm610 = vcmp.lt.s32.totalorder %v560, 0
      %v611 = vsub.s32 0, %v560
      %v612 = vsel %vm610, %v611, %v560
      %v613 = vshrl.u32 %v612, 4
      %v614 = vand.u32 %v612, 15
      %v615 = vsub.s32 0, %v614
      %v616 = vsel %vm610, %v615, %v614
      %vm617 = vcmp.ne.s32.totalorder %v567, 0
      %vm618 = vcmp.ne.s32.totalorder %v574, 0
      %vm619 = vcmp.ne.s32.totalorder %v581, 0
      %vm620 = vcmp.ne.s32.totalorder %v588, 0
      %vm621 = vcmp.ne.s32.totalorder %v595, 0
      %vm622 = vcmp.ne.s32.totalorder %v602, 0
      %vm623 = vcmp.ne.s32.totalorder %v609, 0
      %vm624 = vcmp.ne.s32.totalorder %v616, 0
      %vm625 = vcmp.lt.s32.totalorder %v567, 0
      %vm626 = vcmp.lt.s32.totalorder %v574, 0
      %vm627 = vcmp.lt.s32.totalorder %v581, 0
      %vm628 = vcmp.lt.s32.totalorder %v588, 0
      %vm629 = vcmp.lt.s32.totalorder %v595, 0
      %vm630 = vcmp.lt.s32.totalorder %v602, 0
      %vm631 = vcmp.lt.s32.totalorder %v609, 0
      %vm632 = vcmp.lt.s32.totalorder %v616, 0
      %vm633 = vmand %vm625, %vm617
      %vm634 = vmand %vm626, %vm618
      %vm635 = vmand %vm627, %vm619
      %vm636 = vmand %vm628, %vm620
      %vm637 = vmand %vm629, %vm621
      %vm638 = vmand %vm630, %vm622
      %vm639 = vmand %vm631, %vm623
      %vm640 = vmand %vm632, %vm624
      %v641 = vadd.s32 %v567, 16
      %v642 = vadd.s32 %v574, 16
      %v643 = vadd.s32 %v581, 16
      %v644 = vadd.s32 %v588, 16
      %v645 = vadd.s32 %v595, 16
      %v646 = vadd.s32 %v602, 16
      %v647 = vadd.s32 %v609, 16
      %v648 = vadd.s32 %v616, 16
      %v649 = vsel %vm633, %v641, %v567
      %v650 = vsel %vm634, %v642, %v574
      %v651 = vsel %vm635, %v643, %v581
      %v652 = vsel %vm636, %v644, %v588
      %v653 = vsel %vm637, %v645, %v595
      %v654 = vsel %vm638, %v646, %v602
      %v655 = vsel %vm639, %v647, %v609
      %v656 = vsel %vm640, %v648, %v616
      %vm657 = vcmp.eq.s32.totalorder %v649, 0
      %vm658 = vcmp.eq.s32.totalorder %v650, 0
      %vm659 = vcmp.eq.s32.totalorder %v651, 0
      %vm660 = vcmp.eq.s32.totalorder %v652, 0
      %vm661 = vcmp.eq.s32.totalorder %v653, 0
      %vm662 = vcmp.eq.s32.totalorder %v654, 0
      %vm663 = vcmp.eq.s32.totalorder %v655, 0
      %vm664 = vcmp.eq.s32.totalorder %v656, 0
      %vm665 = vcmp.eq.s32.totalorder %v649, 15
      %vm666 = vcmp.eq.s32.totalorder %v650, 15
      %vm667 = vcmp.eq.s32.totalorder %v651, 15
      %vm668 = vcmp.eq.s32.totalorder %v652, 15
      %vm669 = vcmp.eq.s32.totalorder %v653, 15
      %vm670 = vcmp.eq.s32.totalorder %v654, 15
      %vm671 = vcmp.eq.s32.totalorder %v655, 15
      %vm672 = vcmp.eq.s32.totalorder %v656, 15
      %v673 = vld [vmem:[#allocation2] sm:$0xff]
      %v674 = vld [vmem:[#allocation2 + $0x8] sm:$0xff]
      %v675 = vld [vmem:[#allocation2 + $0x10] sm:$0xff]
      %v676 = vld [vmem:[#allocation2 + $0x18] sm:$0xff]
      %v677 = vld [vmem:[#allocation2 + $0x20] sm:$0xff]
      %v678 = vld [vmem:[#allocation2 + $0x28] sm:$0xff]
      %v679 = vld [vmem:[#allocation2 + $0x30] sm:$0xff]
      %v680 = vld [vmem:[#allocation2 + $0x38] sm:$0xff]
      %v682 = vrot.slane %v680, 7
      %vm691 = vcmask 1040384
      %v692 = vrot.slane %v673, 7
      %v693 = vrot.slane %v674, 7
      %v694 = vsel %vm691, %v692, %v693
      %v695 = vrot.slane %v675, 7
      %v696 = vsel %vm691, %v693, %v695
      %v697 = vrot.slane %v676, 7
      %v698 = vsel %vm691, %v695, %v697
      %v699 = vrot.slane %v677, 7
      %v700 = vsel %vm691, %v697, %v699
      %v701 = vrot.slane %v678, 7
      %v702 = vsel %vm691, %v699, %v701
      %v703 = vrot.slane %v679, 7
      %v704 = vsel %vm691, %v701, %v703
      %v705 = vsel %vm691, %v703, %v682
      %v714 = vsel %vm691, %v682, %v692
      %v715 = vsel %vm657, 1, 0
      %v716 = vsel %vm658, 1, 0
      %v717 = vsel %vm659, 1, 0
      %v718 = vsel %vm660, 1, 0
      %v719 = vsel %vm661, 1, 0
      %v720 = vsel %vm662, 1, 0
      %v721 = vsel %vm663, 1, 0
      %v722 = vsel %vm664, 1, 0
      %vm723 = vcmp.eq.s32.totalorder %v715, 1
      %vm724 = vcmp.eq.s32.totalorder %v716, 1
      %vm725 = vcmp.eq.s32.totalorder %v717, 1
      %vm726 = vcmp.eq.s32.totalorder %v718, 1
      %vm727 = vcmp.eq.s32.totalorder %v719, 1
      %vm728 = vcmp.eq.s32.totalorder %v720, 1
      %vm729 = vcmp.eq.s32.totalorder %v721, 1
      %vm730 = vcmp.eq.s32.totalorder %v722, 1
      %v731 = vsel %vm723, 0.0, %v714
      %v732 = vsel %vm724, 0.0, %v694
      %v733 = vsel %vm725, 0.0, %v696
      %v734 = vsel %vm726, 0.0, %v698
      %v735 = vsel %vm727, 0.0, %v700
      %v736 = vsel %vm728, 0.0, %v702
      %v737 = vsel %vm729, 0.0, %v704
      %v738 = vsel %vm730, 0.0, %v705
      %v739 = vpack.c.bf16 %v732, %v731
      %v740 = vpack.c.bf16 %v734, %v733
      %v741 = vpack.c.bf16 %v736, %v735
      %v742 = vpack.c.bf16 %v738, %v737
      %v743 = vld [vmem:[%s5] sm:$0xf]
      %v744 = vld [vmem:[%s5 + $0x4] sm:$0xf]
      %v745 = vld [vmem:[%s5 + $0x8] sm:$0xf]
      %v746 = vld [vmem:[%s5 + $0xc] sm:$0xf]
      %v747 = vld [vmem:[%s5 + $0x10] sm:$0xf]
      %v748 = vld [vmem:[%s5 + $0x14] sm:$0xf]
      %v749 = vld [vmem:[%s5 + $0x18] sm:$0xf]
      %v750 = vld [vmem:[%s5 + $0x1c] sm:$0xf]
      %v751 = vld [vmem:[%s5 + $0x20] sm:$0xf]
      %v752 = vld [vmem:[%s5 + $0x24] sm:$0xf]
      %v753 = vld [vmem:[%s5 + $0x28] sm:$0xf]
      %v754 = vld [vmem:[%s5 + $0x2c] sm:$0xf]
      %v755 = vld [vmem:[%s5 + $0x30] sm:$0xf]
      %v756 = vld [vmem:[%s5 + $0x34] sm:$0xf]
      %v757 = vld [vmem:[%s5 + $0x38] sm:$0xf]
      %v758 = vld [vmem:[%s5 + $0x3c] sm:$0xf]
      %v759 = vpack.c.bf16 %v674, %v673
      %v760 = vpack.c.bf16 %v676, %v675
      %v761 = vpack.c.bf16 %v678, %v677
      %v762 = vpack.c.bf16 %v680, %v679
      %v763 = vld [vmem:[%s5 + $0x40] sm:$0xf]
      %v764 = vld [vmem:[%s5 + $0x44] sm:$0xf]
      %v765 = vld [vmem:[%s5 + $0x48] sm:$0xf]
      %v766 = vld [vmem:[%s5 + $0x4c] sm:$0xf]
      %v767 = vld [vmem:[%s5 + $0x50] sm:$0xf]
      %v768 = vld [vmem:[%s5 + $0x54] sm:$0xf]
      %v769 = vld [vmem:[%s5 + $0x58] sm:$0xf]
      %v770 = vld [vmem:[%s5 + $0x5c] sm:$0xf]
      %v771 = vld [vmem:[%s5 + $0x60] sm:$0xf]
      %v772 = vld [vmem:[%s5 + $0x64] sm:$0xf]
      %v773 = vld [vmem:[%s5 + $0x68] sm:$0xf]
      %v774 = vld [vmem:[%s5 + $0x6c] sm:$0xf]
      %v775 = vld [vmem:[%s5 + $0x70] sm:$0xf]
      %v776 = vld [vmem:[%s5 + $0x74] sm:$0xf]
      %v777 = vld [vmem:[%s5 + $0x78] sm:$0xf]
      %v778 = vld [vmem:[%s5 + $0x7c] sm:$0xf]
      %v795 = vunpack.c.l.b16 %v763
      %v796 = vunpack.c.l.b16 %v764
      %v797 = vunpack.c.l.b16 %v765
      %v798 = vunpack.c.l.b16 %v766
      %v799 = vunpack.c.l.b16 %v767
      %v800 = vunpack.c.l.b16 %v768
      %v801 = vunpack.c.l.b16 %v769
      %v802 = vunpack.c.l.b16 %v770
      %v803 = vunpack.c.l.b16 %v771
      %v804 = vunpack.c.l.b16 %v772
      %v805 = vunpack.c.l.b16 %v773
      %v806 = vunpack.c.l.b16 %v774
      %v807 = vunpack.c.l.b16 %v775
      %v808 = vunpack.c.l.b16 %v776
      %v809 = vunpack.c.l.b16 %v777
      %v810 = vunpack.c.l.b16 %v778
      %v811 = vpack.c.b16 %v796, %v795
      %v812 = vpack.c.b16 %v798, %v797
      %v813 = vpack.c.b16 %v800, %v799
      %v814 = vpack.c.b16 %v802, %v801
      %v815 = vpack.c.b16 %v804, %v803
      %v816 = vpack.c.b16 %v806, %v805
      %v817 = vpack.c.b16 %v808, %v807
      %v818 = vpack.c.b16 %v810, %v809
      %827 = vmatprep.subr.bf16.mxu0 0
      %828 = vmatpush1.bf16.msra.mxu0 %v811
      %829 = vmatprep.subr.bf16.mxu0 0
      %830 = vmatpush1.bf16.msra.mxu0 %v812
      %831 = vmatprep.subr.bf16.mxu0 0
      %832 = vmatpush1.bf16.msra.mxu0 %v813
      %833 = vmatprep.subr.bf16.mxu0 0
      %834 = vmatpush1.bf16.msra.mxu0 %v814
      %835 = vmatprep.subr.bf16.mxu0 0
      %836 = vmatpush1.bf16.msra.mxu0 %v815
      %837 = vmatprep.subr.bf16.mxu0 0
      %838 = vmatpush1.bf16.msra.mxu0 %v816
      %839 = vmatprep.subr.bf16.mxu0 0
      %840 = vmatpush1.bf16.msra.mxu0 %v817
      %841 = vmatprep.subr.bf16.mxu0 0
      %842 = vmatpush1.bf16.msra.mxu0 %v818
      %843 = vmatprep.subr.bf16.mxu0 0
      %844 = vmatpush1.bf16.msra.mxu0 0
      %845 = vmatprep.subr.bf16.mxu0 0
      %846 = vmatpush1.bf16.msra.mxu0 0
      %847 = vmatprep.subr.bf16.mxu0 0
      %848 = vmatpush1.bf16.msra.mxu0 0
      %849 = vmatprep.subr.bf16.mxu0 0
      %850 = vmatpush1.bf16.msra.mxu0 0
      %851 = vmatprep.subr.bf16.mxu0 0
      %852 = vmatpush1.bf16.msra.mxu0 0
      %853 = vmatprep.subr.bf16.mxu0 0
      %854 = vmatpush1.bf16.msra.mxu0 0
      %855 = vmatprep.subr.bf16.mxu0 0
      %856 = vmatpush1.bf16.msra.mxu0 0
      %857 = vmatprep.subr.bf16.mxu0 0
      %858 = vmatpush1.bf16.msra.mxu0 0
      %859 = vmatprep.mubr.bf16.mxu0 0
      %860 = vmatmul.mubr.bf16.gmra.mrb[0].mxu0 %v759
      %v861 = vpop.f32.mrb[0].mxu0
      %v862 = vadd.f32 0.0, %v861
      %v863 = vpop.f32.mrb[0].mxu0
      %v864 = vpop.f32.mrb[0].mxu0
      %v865 = vadd.f32 0.0, %v864
      %v866 = vpop.f32.mrb[0].mxu0
      %867 = vmatprep.mubr.bf16.mxu0 0
      %868 = vmatmul.mubr.bf16.gmra.mrb[0].mxu0 %v760
      %v869 = vpop.f32.mrb[0].mxu0
      %v870 = vadd.f32 0.0, %v869
      %v871 = vpop.f32.mrb[0].mxu0
      %v872 = vpop.f32.mrb[0].mxu0
      %v873 = vadd.f32 0.0, %v872
      %v874 = vpop.f32.mrb[0].mxu0
      %875 = vmatprep.mubr.bf16.mxu0 0
      %876 = vmatmul.mubr.bf16.gmra.mrb[0].mxu0 %v761
      %v877 = vpop.f32.mrb[0].mxu0
      %v878 = vadd.f32 0.0, %v877
      %v879 = vpop.f32.mrb[0].mxu0
      %v880 = vpop.f32.mrb[0].mxu0
      %v881 = vadd.f32 0.0, %v880
      %v882 = vpop.f32.mrb[0].mxu0
      %883 = vmatprep.mubr.bf16.mxu0 0
      %884 = vmatmul.mubr.bf16.gmra.mrb[0].mxu0 %v762
      %v885 = vpop.f32.mrb[0].mxu0
      %v886 = vadd.f32 0.0, %v885
      %v887 = vpop.f32.mrb[0].mxu0
      %v888 = vpop.f32.mrb[0].mxu0
      %v889 = vadd.f32 0.0, %v888
      %v890 = vpop.f32.mrb[0].mxu0
      %891 = vdwg.mxu0
      %v908 = vunpack.c.l.b16 %v743
      %v909 = vunpack.c.l.b16 %v744
      %v910 = vunpack.c.l.b16 %v745
      %v911 = vunpack.c.l.b16 %v746
      %v912 = vunpack.c.l.b16 %v747
      %v913 = vunpack.c.l.b16 %v748
      %v914 = vunpack.c.l.b16 %v749
      %v915 = vunpack.c.l.b16 %v750
      %v916 = vunpack.c.l.b16 %v751
      %v917 = vunpack.c.l.b16 %v752
      %v918 = vunpack.c.l.b16 %v753
      %v919 = vunpack.c.l.b16 %v754
      %v920 = vunpack.c.l.b16 %v755
      %v921 = vunpack.c.l.b16 %v756
      %v922 = vunpack.c.l.b16 %v757
      %v923 = vunpack.c.l.b16 %v758
      %v924 = vpack.c.b16 %v909, %v908
      %v925 = vpack.c.b16 %v911, %v910
      %v926 = vpack.c.b16 %v913, %v912
      %v927 = vpack.c.b16 %v915, %v914
      %v928 = vpack.c.b16 %v917, %v916
      %v929 = vpack.c.b16 %v919, %v918
      %v930 = vpack.c.b16 %v921, %v920
      %v931 = vpack.c.b16 %v923, %v922
      %940 = vmatprep.subr.bf16.mxu0 0
      %941 = vmatpush1.bf16.msra.mxu0 %v924
      %942 = vmatprep.subr.bf16.mxu0 0
      %943 = vmatpush1.bf16.msra.mxu0 %v925
      %944 = vmatprep.subr.bf16.mxu0 0
      %945 = vmatpush1.bf16.msra.mxu0 %v926
      %946 = vmatprep.subr.bf16.mxu0 0
      %947 = vmatpush1.bf16.msra.mxu0 %v927
      %948 = vmatprep.subr.bf16.mxu0 0
      %949 = vmatpush1.bf16.msra.mxu0 %v928
      %950 = vmatprep.subr.bf16.mxu0 0
      %951 = vmatpush1.bf16.msra.mxu0 %v929
      %952 = vmatprep.subr.bf16.mxu0 0
      %953 = vmatpush1.bf16.msra.mxu0 %v930
      %954 = vmatprep.subr.bf16.mxu0 0
      %955 = vmatpush1.bf16.msra.mxu0 %v931
      %956 = vmatprep.subr.bf16.mxu0 0
      %957 = vmatpush1.bf16.msra.mxu0 0
      %958 = vmatprep.subr.bf16.mxu0 0
      %959 = vmatpush1.bf16.msra.mxu0 0
      %960 = vmatprep.subr.bf16.mxu0 0
      %961 = vmatpush1.bf16.msra.mxu0 0
      %962 = vmatprep.subr.bf16.mxu0 0
      %963 = vmatpush1.bf16.msra.mxu0 0
      %964 = vmatprep.subr.bf16.mxu0 0
      %965 = vmatpush1.bf16.msra.mxu0 0
      %966 = vmatprep.subr.bf16.mxu0 0
      %967 = vmatpush1.bf16.msra.mxu0 0
      %968 = vmatprep.subr.bf16.mxu0 0
      %969 = vmatpush1.bf16.msra.mxu0 0
      %970 = vmatprep.subr.bf16.mxu0 0
      %971 = vmatpush1.bf16.msra.mxu0 0
      %972 = vmatprep.mubr.bf16.mxu0 0
      %973 = vmatmul.mubr.bf16.gmra.mrb[0].mxu0 %v739
      %v974 = vpop.f32.mrb[0].mxu0
      %v975 = vadd.f32 %v862, %v974
      %v976 = vpop.f32.mrb[0].mxu0
      %v977 = vpop.f32.mrb[0].mxu0
      %v978 = vadd.f32 %v865, %v977
      %v979 = vpop.f32.mrb[0].mxu0
      %980 = vmatprep.mubr.bf16.mxu0 0
      %981 = vmatmul.mubr.bf16.gmra.mrb[0].mxu0 %v740
      %v982 = vpop.f32.mrb[0].mxu0
      %v983 = vadd.f32 %v870, %v982
      %v984 = vpop.f32.mrb[0].mxu0
      %v985 = vpop.f32.mrb[0].mxu0
      %v986 = vadd.f32 %v873, %v985
      %v987 = vpop.f32.mrb[0].mxu0
      %988 = vmatprep.mubr.bf16.mxu0 0
      %989 = vmatmul.mubr.bf16.gmra.mrb[0].mxu0 %v741
      %v990 = vpop.f32.mrb[0].mxu0
      %v991 = vadd.f32 %v878, %v990
      %v992 = vpop.f32.mrb[0].mxu0
      %v993 = vpop.f32.mrb[0].mxu0
      %v994 = vadd.f32 %v881, %v993
      %v995 = vpop.f32.mrb[0].mxu0
      %996 = vmatprep.mubr.bf16.mxu0 0
      %997 = vmatmul.mubr.bf16.gmra.mrb[0].mxu0 %v742
      %v998 = vpop.f32.mrb[0].mxu0
      %v999 = vadd.f32 %v886, %v998
      %v1000 = vpop.f32.mrb[0].mxu0
      %v1001 = vpop.f32.mrb[0].mxu0
      %v1002 = vadd.f32 %v889, %v1001
      %v1003 = vpop.f32.mrb[0].mxu0
      %1004 = vdwg.mxu0
      %vm1005 = vcmask 1046528
      %v1006 = vrot.slane %v673, 1
      %v1007 = vrot.slane %v674, 1
      %v1008 = vsel %vm1005, %v1006, %v1007
      %v1009 = vrot.slane %v675, 1
      %v1010 = vsel %vm1005, %v1007, %v1009
      %v1011 = vrot.slane %v676, 1
      %v1012 = vsel %vm1005, %v1009, %v1011
      %v1013 = vrot.slane %v677, 1
      %v1014 = vsel %vm1005, %v1011, %v1013
      %v1015 = vrot.slane %v678, 1
      %v1016 = vsel %vm1005, %v1013, %v1015
      %v1017 = vrot.slane %v679, 1
      %v1018 = vsel %vm1005, %v1015, %v1017
      %v1019 = vrot.slane %v680, 1
      %v1020 = vsel %vm1005, %v1017, %v1019
      %v1030 = vsel %vm1005, %v1019, %v1006
      %v1031 = vsel %vm665, 1, 0
      %v1032 = vsel %vm666, 1, 0
      %v1033 = vsel %vm667, 1, 0
      %v1034 = vsel %vm668, 1, 0
      %v1035 = vsel %vm669, 1, 0
      %v1036 = vsel %vm670, 1, 0
      %v1037 = vsel %vm671, 1, 0
      %v1038 = vsel %vm672, 1, 0
      %vm1039 = vcmp.eq.s32.totalorder %v1031, 1
      %vm1040 = vcmp.eq.s32.totalorder %v1032, 1
      %vm1041 = vcmp.eq.s32.totalorder %v1033, 1
      %vm1042 = vcmp.eq.s32.totalorder %v1034, 1
      %vm1043 = vcmp.eq.s32.totalorder %v1035, 1
      %vm1044 = vcmp.eq.s32.totalorder %v1036, 1
      %vm1045 = vcmp.eq.s32.totalorder %v1037, 1
      %vm1046 = vcmp.eq.s32.totalorder %v1038, 1
      %v1047 = vsel %vm1039, 0.0, %v1008
      %v1048 = vsel %vm1040, 0.0, %v1010
      %v1049 = vsel %vm1041, 0.0, %v1012
      %v1050 = vsel %vm1042, 0.0, %v1014
      %v1051 = vsel %vm1043, 0.0, %v1016
      %v1052 = vsel %vm1044, 0.0, %v1018
      %v1053 = vsel %vm1045, 0.0, %v1020
      %v1054 = vsel %vm1046, 0.0, %v1030
      %v1055 = vpack.c.bf16 %v1048, %v1047
      %v1056 = vpack.c.bf16 %v1050, %v1049
      %v1057 = vpack.c.bf16 %v1052, %v1051
      %v1058 = vpack.c.bf16 %v1054, %v1053
      %v1059 = vld [vmem:[%s5 + $0x80] sm:$0xf]
      %v1060 = vld [vmem:[%s5 + $0x84] sm:$0xf]
      %v1061 = vld [vmem:[%s5 + $0x88] sm:$0xf]
      %v1062 = vld [vmem:[%s5 + $0x8c] sm:$0xf]
      %v1063 = vld [vmem:[%s5 + $0x90] sm:$0xf]
      %v1064 = vld [vmem:[%s5 + $0x94] sm:$0xf]
      %v1065 = vld [vmem:[%s5 + $0x98] sm:$0xf]
      %v1066 = vld [vmem:[%s5 + $0x9c] sm:$0xf]
      %v1067 = vld [vmem:[%s5 + $0xa0] sm:$0xf]
      %v1068 = vld [vmem:[%s5 + $0xa4] sm:$0xf]
      %v1069 = vld [vmem:[%s5 + $0xa8] sm:$0xf]
      %v1070 = vld [vmem:[%s5 + $0xac] sm:$0xf]
      %v1071 = vld [vmem:[%s5 + $0xb0] sm:$0xf]
      %v1072 = vld [vmem:[%s5 + $0xb4] sm:$0xf]
      %v1073 = vld [vmem:[%s5 + $0xb8] sm:$0xf]
      %v1074 = vld [vmem:[%s5 + $0xbc] sm:$0xf]
      %v1091 = vunpack.c.l.b16 %v1059
      %v1092 = vunpack.c.l.b16 %v1060
      %v1093 = vunpack.c.l.b16 %v1061
      %v1094 = vunpack.c.l.b16 %v1062
      %v1095 = vunpack.c.l.b16 %v1063
      %v1096 = vunpack.c.l.b16 %v1064
      %v1097 = vunpack.c.l.b16 %v1065
      %v1098 = vunpack.c.l.b16 %v1066
      %v1099 = vunpack.c.l.b16 %v1067
      %v1100 = vunpack.c.l.b16 %v1068
      %v1101 = vunpack.c.l.b16 %v1069
      %v1102 = vunpack.c.l.b16 %v1070
      %v1103 = vunpack.c.l.b16 %v1071
      %v1104 = vunpack.c.l.b16 %v1072
      %v1105 = vunpack.c.l.b16 %v1073
      %v1106 = vunpack.c.l.b16 %v1074
      %v1107 = vpack.c.b16 %v1092, %v1091
      %v1108 = vpack.c.b16 %v1094, %v1093
      %v1109 = vpack.c.b16 %v1096, %v1095
      %v1110 = vpack.c.b16 %v1098, %v1097
      %v1111 = vpack.c.b16 %v1100, %v1099
      %v1112 = vpack.c.b16 %v1102, %v1101
      %v1113 = vpack.c.b16 %v1104, %v1103
      %v1114 = vpack.c.b16 %v1106, %v1105
      %1123 = vmatprep.subr.bf16.mxu0 0
      %1124 = vmatpush1.bf16.msra.mxu0 %v1107
      %1125 = vmatprep.subr.bf16.mxu0 0
      %1126 = vmatpush1.bf16.msra.mxu0 %v1108
      %1127 = vmatprep.subr.bf16.mxu0 0
      %1128 = vmatpush1.bf16.msra.mxu0 %v1109
      %1129 = vmatprep.subr.bf16.mxu0 0
      %1130 = vmatpush1.bf16.msra.mxu0 %v1110
      %1131 = vmatprep.subr.bf16.mxu0 0
      %1132 = vmatpush1.bf16.msra.mxu0 %v1111
      %1133 = vmatprep.subr.bf16.mxu0 0
      %1134 = vmatpush1.bf16.msra.mxu0 %v1112
      %1135 = vmatprep.subr.bf16.mxu0 0
      %1136 = vmatpush1.bf16.msra.mxu0 %v1113
      %1137 = vmatprep.subr.bf16.mxu0 0
      %1138 = vmatpush1.bf16.msra.mxu0 %v1114
      %1139 = vmatprep.subr.bf16.mxu0 0
      %1140 = vmatpush1.bf16.msra.mxu0 0
      %1141 = vmatprep.subr.bf16.mxu0 0
      %1142 = vmatpush1.bf16.msra.mxu0 0
      %1143 = vmatprep.subr.bf16.mxu0 0
      %1144 = vmatpush1.bf16.msra.mxu0 0
      %1145 = vmatprep.subr.bf16.mxu0 0
      %1146 = vmatpush1.bf16.msra.mxu0 0
      %1147 = vmatprep.subr.bf16.mxu0 0
      %1148 = vmatpush1.bf16.msra.mxu0 0
      %1149 = vmatprep.subr.bf16.mxu0 0
      %1150 = vmatpush1.bf16.msra.mxu0 0
      %1151 = vmatprep.subr.bf16.mxu0 0
      %1152 = vmatpush1.bf16.msra.mxu0 0
      %1153 = vmatprep.subr.bf16.mxu0 0
      %1154 = vmatpush1.bf16.msra.mxu0 0
      %1155 = vmatprep.mubr.bf16.mxu0 0
      %1156 = vmatmul.mubr.bf16.gmra.mrb[0].mxu0 %v1055
      %v1157 = vpop.f32.mrb[0].mxu0
      %v1158 = vadd.f32 0.0, %v1157
      %v1159 = vpop.f32.mrb[0].mxu0
      %v1160 = vpop.f32.mrb[0].mxu0
      %v1161 = vadd.f32 0.0, %v1160
      %v1162 = vpop.f32.mrb[0].mxu0
      %1163 = vmatprep.mubr.bf16.mxu0 0
      %1164 = vmatmul.mubr.bf16.gmra.mrb[0].mxu0 %v1056
      %v1165 = vpop.f32.mrb[0].mxu0
      %v1166 = vadd.f32 0.0, %v1165
      %v1167 = vpop.f32.mrb[0].mxu0
      %v1168 = vpop.f32.mrb[0].mxu0
      %v1169 = vadd.f32 0.0, %v1168
      %v1170 = vpop.f32.mrb[0].mxu0
      %1171 = vmatprep.mubr.bf16.mxu0 0
      %1172 = vmatmul.mubr.bf16.gmra.mrb[0].mxu0 %v1057
      %v1173 = vpop.f32.mrb[0].mxu0
      %v1174 = vadd.f32 0.0, %v1173
      %v1175 = vpop.f32.mrb[0].mxu0
      %v1176 = vpop.f32.mrb[0].mxu0
      %v1177 = vadd.f32 0.0, %v1176
      %v1178 = vpop.f32.mrb[0].mxu0
      %1179 = vmatprep.mubr.bf16.mxu0 0
      %1180 = vmatmul.mubr.bf16.gmra.mrb[0].mxu0 %v1058
      %v1181 = vpop.f32.mrb[0].mxu0
      %v1182 = vadd.f32 0.0, %v1181
      %v1183 = vpop.f32.mrb[0].mxu0
      %v1184 = vpop.f32.mrb[0].mxu0
      %v1185 = vadd.f32 0.0, %v1184
      %v1186 = vpop.f32.mrb[0].mxu0
      %1187 = vdwg.mxu0
      %v1188 = vadd.f32 %v975, %v1158
      %v1189 = vadd.f32 %v978, %v1161
      %v1190 = vadd.f32 %v983, %v1166
      %v1191 = vadd.f32 %v986, %v1169
      %v1192 = vadd.f32 %v991, %v1174
      %v1193 = vadd.f32 %v994, %v1177
      %v1194 = vadd.f32 %v999, %v1182
      %v1195 = vadd.f32 %v1002, %v1185
      %v1196 = vld [vmem:[#allocation2 + $0x10] sm:$0xff]
      %v1197 = vld [vmem:[#allocation2 + $0x18] sm:$0xff]
      %v1198 = vld [vmem:[#allocation2 + $0x20] sm:$0xff]
      %v1199 = vld [vmem:[#allocation2 + $0x28] sm:$0xff]
      %v1200 = vld [vmem:[#allocation2 + $0x30] sm:$0xff]
      %v1201 = vld [vmem:[#allocation2 + $0x38] sm:$0xff]
      %v1202 = vld [vmem:[#allocation2 + $0x40] sm:$0xff]
      %v1203 = vld [vmem:[#allocation2 + $0x48] sm:$0xff]
      %v1205 = vrot.slane %v1203, 7
      %v1214 = vrot.slane %v1196, 7
      %v1215 = vrot.slane %v1197, 7
      %v1216 = vsel %vm691, %v1214, %v1215
      %v1217 = vrot.slane %v1198, 7
      %v1218 = vsel %vm691, %v1215, %v1217
      %v1219 = vrot.slane %v1199, 7
      %v1220 = vsel %vm691, %v1217, %v1219
      %v1221 = vrot.slane %v1200, 7
      %v1222 = vsel %vm691, %v1219, %v1221
      %v1223 = vrot.slane %v1201, 7
      %v1224 = vsel %vm691, %v1221, %v1223
      %v1225 = vrot.slane %v1202, 7
      %v1226 = vsel %vm691, %v1223, %v1225
      %v1227 = vsel %vm691, %v1225, %v1205
      %v1236 = vsel %vm691, %v1205, %v1214
      %v1237 = vsel %vm723, 0.0, %v1236
      %v1238 = vsel %vm724, 0.0, %v1216
      %v1239 = vsel %vm725, 0.0, %v1218
      %v1240 = vsel %vm726, 0.0, %v1220
      %v1241 = vsel %vm727, 0.0, %v1222
      %v1242 = vsel %vm728, 0.0, %v1224
      %v1243 = vsel %vm729, 0.0, %v1226
      %v1244 = vsel %vm730, 0.0, %v1227
      %v1245 = vpack.c.bf16 %v1238, %v1237
      %v1246 = vpack.c.bf16 %v1240, %v1239
      %v1247 = vpack.c.bf16 %v1242, %v1241
      %v1248 = vpack.c.bf16 %v1244, %v1243
      %v1249 = vld [vmem:[%s5 + $0xc0] sm:$0xf]
      %v1250 = vld [vmem:[%s5 + $0xc4] sm:$0xf]
      %v1251 = vld [vmem:[%s5 + $0xc8] sm:$0xf]
      %v1252 = vld [vmem:[%s5 + $0xcc] sm:$0xf]
      %v1253 = vld [vmem:[%s5 + $0xd0] sm:$0xf]
      %v1254 = vld [vmem:[%s5 + $0xd4] sm:$0xf]
      %v1255 = vld [vmem:[%s5 + $0xd8] sm:$0xf]
      %v1256 = vld [vmem:[%s5 + $0xdc] sm:$0xf]
      %v1257 = vld [vmem:[%s5 + $0xe0] sm:$0xf]
      %v1258 = vld [vmem:[%s5 + $0xe4] sm:$0xf]
      %v1259 = vld [vmem:[%s5 + $0xe8] sm:$0xf]
      %v1260 = vld [vmem:[%s5 + $0xec] sm:$0xf]
      %v1261 = vld [vmem:[%s5 + $0xf0] sm:$0xf]
      %v1262 = vld [vmem:[%s5 + $0xf4] sm:$0xf]
      %v1263 = vld [vmem:[%s5 + $0xf8] sm:$0xf]
      %v1264 = vld [vmem:[%s5 + $0xfc] sm:$0xf]
      %v1281 = vunpack.c.l.b16 %v1249
      %v1282 = vunpack.c.l.b16 %v1250
      %v1283 = vunpack.c.l.b16 %v1251
      %v1284 = vunpack.c.l.b16 %v1252
      %v1285 = vunpack.c.l.b16 %v1253
      %v1286 = vunpack.c.l.b16 %v1254
      %v1287 = vunpack.c.l.b16 %v1255
      %v1288 = vunpack.c.l.b16 %v1256
      %v1289 = vunpack.c.l.b16 %v1257
      %v1290 = vunpack.c.l.b16 %v1258
      %v1291 = vunpack.c.l.b16 %v1259
      %v1292 = vunpack.c.l.b16 %v1260
      %v1293 = vunpack.c.l.b16 %v1261
      %v1294 = vunpack.c.l.b16 %v1262
      %v1295 = vunpack.c.l.b16 %v1263
      %v1296 = vunpack.c.l.b16 %v1264
      %v1297 = vpack.c.b16 %v1282, %v1281
      %v1298 = vpack.c.b16 %v1284, %v1283
      %v1299 = vpack.c.b16 %v1286, %v1285
      %v1300 = vpack.c.b16 %v1288, %v1287
      %v1301 = vpack.c.b16 %v1290, %v1289
      %v1302 = vpack.c.b16 %v1292, %v1291
      %v1303 = vpack.c.b16 %v1294, %v1293
      %v1304 = vpack.c.b16 %v1296, %v1295
      %1313 = vmatprep.subr.bf16.mxu0 0
      %1314 = vmatpush1.bf16.msra.mxu0 %v1297
      %1315 = vmatprep.subr.bf16.mxu0 0
      %1316 = vmatpush1.bf16.msra.mxu0 %v1298
      %1317 = vmatprep.subr.bf16.mxu0 0
      %1318 = vmatpush1.bf16.msra.mxu0 %v1299
      %1319 = vmatprep.subr.bf16.mxu0 0
      %1320 = vmatpush1.bf16.msra.mxu0 %v1300
      %1321 = vmatprep.subr.bf16.mxu0 0
      %1322 = vmatpush1.bf16.msra.mxu0 %v1301
      %1323 = vmatprep.subr.bf16.mxu0 0
      %1324 = vmatpush1.bf16.msra.mxu0 %v1302
      %1325 = vmatprep.subr.bf16.mxu0 0
      %1326 = vmatpush1.bf16.msra.mxu0 %v1303
      %1327 = vmatprep.subr.bf16.mxu0 0
      %1328 = vmatpush1.bf16.msra.mxu0 %v1304
      %1329 = vmatprep.subr.bf16.mxu0 0
      %1330 = vmatpush1.bf16.msra.mxu0 0
      %1331 = vmatprep.subr.bf16.mxu0 0
      %1332 = vmatpush1.bf16.msra.mxu0 0
      %1333 = vmatprep.subr.bf16.mxu0 0
      %1334 = vmatpush1.bf16.msra.mxu0 0
      %1335 = vmatprep.subr.bf16.mxu0 0
      %1336 = vmatpush1.bf16.msra.mxu0 0
      %1337 = vmatprep.subr.bf16.mxu0 0
      %1338 = vmatpush1.bf16.msra.mxu0 0
      %1339 = vmatprep.subr.bf16.mxu0 0
      %1340 = vmatpush1.bf16.msra.mxu0 0
      %1341 = vmatprep.subr.bf16.mxu0 0
      %1342 = vmatpush1.bf16.msra.mxu0 0
      %1343 = vmatprep.subr.bf16.mxu0 0
      %1344 = vmatpush1.bf16.msra.mxu0 0
      %1345 = vmatprep.mubr.bf16.mxu0 0
      %1346 = vmatmul.mubr.bf16.gmra.mrb[0].mxu0 %v1245
      %v1347 = vpop.f32.mrb[0].mxu0
      %v1348 = vadd.f32 0.0, %v1347
      %v1349 = vpop.f32.mrb[0].mxu0
      %v1350 = vpop.f32.mrb[0].mxu0
      %v1351 = vadd.f32 0.0, %v1350
      %v1352 = vpop.f32.mrb[0].mxu0
      %1353 = vmatprep.mubr.bf16.mxu0 0
      %1354 = vmatmul.mubr.bf16.gmra.mrb[0].mxu0 %v1246
      %v1355 = vpop.f32.mrb[0].mxu0
      %v1356 = vadd.f32 0.0, %v1355
      %v1357 = vpop.f32.mrb[0].mxu0
      %v1358 = vpop.f32.mrb[0].mxu0
      %v1359 = vadd.f32 0.0, %v1358
      %v1360 = vpop.f32.mrb[0].mxu0
      %1361 = vmatprep.mubr.bf16.mxu0 0
      %1362 = vmatmul.mubr.bf16.gmra.mrb[0].mxu0 %v1247
      %v1363 = vpop.f32.mrb[0].mxu0
      %v1364 = vadd.f32 0.0, %v1363
      %v1365 = vpop.f32.mrb[0].mxu0
      %v1366 = vpop.f32.mrb[0].mxu0
      %v1367 = vadd.f32 0.0, %v1366
      %v1368 = vpop.f32.mrb[0].mxu0
      %1369 = vmatprep.mubr.bf16.mxu0 0
      %1370 = vmatmul.mubr.bf16.gmra.mrb[0].mxu0 %v1248
      %v1371 = vpop.f32.mrb[0].mxu0
      %v1372 = vadd.f32 0.0, %v1371
      %v1373 = vpop.f32.mrb[0].mxu0
      %v1374 = vpop.f32.mrb[0].mxu0
      %v1375 = vadd.f32 0.0, %v1374
      %v1376 = vpop.f32.mrb[0].mxu0
      %1377 = vdwg.mxu0
      %v1378 = vadd.f32 %v1188, %v1348
      %v1379 = vadd.f32 %v1189, %v1351
      %v1380 = vadd.f32 %v1190, %v1356
      %v1381 = vadd.f32 %v1191, %v1359
      %v1382 = vadd.f32 %v1192, %v1364
      %v1383 = vadd.f32 %v1193, %v1367
      %v1384 = vadd.f32 %v1194, %v1372
      %v1385 = vadd.f32 %v1195, %v1375
      %v1386 = vpack.c.bf16 %v1197, %v1196
      %v1387 = vpack.c.bf16 %v1199, %v1198
      %v1388 = vpack.c.bf16 %v1201, %v1200
      %v1389 = vpack.c.bf16 %v1203, %v1202
      %v1390 = vld [vmem:[%s5 + $0x100] sm:$0xf]
      %v1391 = vld [vmem:[%s5 + $0x104] sm:$0xf]
      %v1392 = vld [vmem:[%s5 + $0x108] sm:$0xf]
      %v1393 = vld [vmem:[%s5 + $0x10c] sm:$0xf]
      %v1394 = vld [vmem:[%s5 + $0x110] sm:$0xf]
      %v1395 = vld [vmem:[%s5 + $0x114] sm:$0xf]
      %v1396 = vld [vmem:[%s5 + $0x118] sm:$0xf]
      %v1397 = vld [vmem:[%s5 + $0x11c] sm:$0xf]
      %v1398 = vld [vmem:[%s5 + $0x120] sm:$0xf]
      %v1399 = vld [vmem:[%s5 + $0x124] sm:$0xf]
      %v1400 = vld [vmem:[%s5 + $0x128] sm:$0xf]
      %v1401 = vld [vmem:[%s5 + $0x12c] sm:$0xf]
      %v1402 = vld [vmem:[%s5 + $0x130] sm:$0xf]
      %v1403 = vld [vmem:[%s5 + $0x134] sm:$0xf]
      %v1404 = vld [vmem:[%s5 + $0x138] sm:$0xf]
      %v1405 = vld [vmem:[%s5 + $0x13c] sm:$0xf]
      %v1422 = vunpack.c.l.b16 %v1390
      %v1423 = vunpack.c.l.b16 %v1391
      %v1424 = vunpack.c.l.b16 %v1392
      %v1425 = vunpack.c.l.b16 %v1393
      %v1426 = vunpack.c.l.b16 %v1394
      %v1427 = vunpack.c.l.b16 %v1395
      %v1428 = vunpack.c.l.b16 %v1396
      %v1429 = vunpack.c.l.b16 %v1397
      %v1430 = vunpack.c.l.b16 %v1398
      %v1431 = vunpack.c.l.b16 %v1399
      %v1432 = vunpack.c.l.b16 %v1400
      %v1433 = vunpack.c.l.b16 %v1401
      %v1434 = vunpack.c.l.b16 %v1402
      %v1435 = vunpack.c.l.b16 %v1403
      %v1436 = vunpack.c.l.b16 %v1404
      %v1437 = vunpack.c.l.b16 %v1405
      %v1438 = vpack.c.b16 %v1423, %v1422
      %v1439 = vpack.c.b16 %v1425, %v1424
      %v1440 = vpack.c.b16 %v1427, %v1426
      %v1441 = vpack.c.b16 %v1429, %v1428
      %v1442 = vpack.c.b16 %v1431, %v1430
      %v1443 = vpack.c.b16 %v1433, %v1432
      %v1444 = vpack.c.b16 %v1435, %v1434
      %v1445 = vpack.c.b16 %v1437, %v1436
      %1454 = vmatprep.subr.bf16.mxu0 0
      %1455 = vmatpush1.bf16.msra.mxu0 %v1438
      %1456 = vmatprep.subr.bf16.mxu0 0
      %1457 = vmatpush1.bf16.msra.mxu0 %v1439
      %1458 = vmatprep.subr.bf16.mxu0 0
      %1459 = vmatpush1.bf16.msra.mxu0 %v1440
      %1460 = vmatprep.subr.bf16.mxu0 0
      %1461 = vmatpush1.bf16.msra.mxu0 %v1441
      %1462 = vmatprep.subr.bf16.mxu0 0
      %1463 = vmatpush1.bf16.msra.mxu0 %v1442
      %1464 = vmatprep.subr.bf16.mxu0 0
      %1465 = vmatpush1.bf16.msra.mxu0 %v1443
      %1466 = vmatprep.subr.bf16.mxu0 0
      %1467 = vmatpush1.bf16.msra.mxu0 %v1444
      %1468 = vmatprep.subr.bf16.mxu0 0
      %1469 = vmatpush1.bf16.msra.mxu0 %v1445
      %1470 = vmatprep.subr.bf16.mxu0 0
      %1471 = vmatpush1.bf16.msra.mxu0 0
      %1472 = vmatprep.subr.bf16.mxu0 0
      %1473 = vmatpush1.bf16.msra.mxu0 0
      %1474 = vmatprep.subr.bf16.mxu0 0
      %1475 = vmatpush1.bf16.msra.mxu0 0
      %1476 = vmatprep.subr.bf16.mxu0 0
      %1477 = vmatpush1.bf16.msra.mxu0 0
      %1478 = vmatprep.subr.bf16.mxu0 0
      %1479 = vmatpush1.bf16.msra.mxu0 0
      %1480 = vmatprep.subr.bf16.mxu0 0
      %1481 = vmatpush1.bf16.msra.mxu0 0
      %1482 = vmatprep.subr.bf16.mxu0 0
      %1483 = vmatpush1.bf16.msra.mxu0 0
      %1484 = vmatprep.subr.bf16.mxu0 0
      %1485 = vmatpush1.bf16.msra.mxu0 0
      %1486 = vmatprep.mubr.bf16.mxu0 0
      %1487 = vmatmul.mubr.bf16.gmra.mrb[0].mxu0 %v1386
      %v1488 = vpop.f32.mrb[0].mxu0
      %v1489 = vadd.f32 0.0, %v1488
      %v1490 = vpop.f32.mrb[0].mxu0
      %v1491 = vpop.f32.mrb[0].mxu0
      %v1492 = vadd.f32 0.0, %v1491
      %v1493 = vpop.f32.mrb[0].mxu0
      %1494 = vmatprep.mubr.bf16.mxu0 0
      %1495 = vmatmul.mubr.bf16.gmra.mrb[0].mxu0 %v1387
      %v1496 = vpop.f32.mrb[0].mxu0
      %v1497 = vadd.f32 0.0, %v1496
      %v1498 = vpop.f32.mrb[0].mxu0
      %v1499 = vpop.f32.mrb[0].mxu0
      %v1500 = vadd.f32 0.0, %v1499
      %v1501 = vpop.f32.mrb[0].mxu0
      %1502 = vmatprep.mubr.bf16.mxu0 0
      %1503 = vmatmul.mubr.bf16.gmra.mrb[0].mxu0 %v1388
      %v1504 = vpop.f32.mrb[0].mxu0
      %v1505 = vadd.f32 0.0, %v1504
      %v1506 = vpop.f32.mrb[0].mxu0
      %v1507 = vpop.f32.mrb[0].mxu0
      %v1508 = vadd.f32 0.0, %v1507
      %v1509 = vpop.f32.mrb[0].mxu0
      %1510 = vmatprep.mubr.bf16.mxu0 0
      %1511 = vmatmul.mubr.bf16.gmra.mrb[0].mxu0 %v1389
      %v1512 = vpop.f32.mrb[0].mxu0
      %v1513 = vadd.f32 0.0, %v1512
      %v1514 = vpop.f32.mrb[0].mxu0
      %v1515 = vpop.f32.mrb[0].mxu0
      %v1516 = vadd.f32 0.0, %v1515
      %v1517 = vpop.f32.mrb[0].mxu0
      %1518 = vdwg.mxu0
      %v1519 = vadd.f32 %v1378, %v1489
      %v1520 = vadd.f32 %v1379, %v1492
      %v1521 = vadd.f32 %v1380, %v1497
      %v1522 = vadd.f32 %v1381, %v1500
      %v1523 = vadd.f32 %v1382, %v1505
      %v1524 = vadd.f32 %v1383, %v1508
      %v1525 = vadd.f32 %v1384, %v1513
      %v1526 = vadd.f32 %v1385, %v1516
      %v1527 = vrot.slane %v1196, 1
      %v1528 = vrot.slane %v1197, 1
      %v1529 = vsel %vm1005, %v1527, %v1528
      %v1530 = vrot.slane %v1198, 1
      %v1531 = vsel %vm1005, %v1528, %v1530
      %v1532 = vrot.slane %v1199, 1
      %v1533 = vsel %vm1005, %v1530, %v1532
      %v1534 = vrot.slane %v1200, 1
      %v1535 = vsel %vm1005, %v1532, %v1534
      %v1536 = vrot.slane %v1201, 1
      %v1537 = vsel %vm1005, %v1534, %v1536
      %v1538 = vrot.slane %v1202, 1
      %v1539 = vsel %vm1005, %v1536, %v1538
      %v1540 = vrot.slane %v1203, 1
      %v1541 = vsel %vm1005, %v1538, %v1540
      %v1551 = vsel %vm1005, %v1540, %v1527
      %v1552 = vsel %vm1039, 0.0, %v1529
      %v1553 = vsel %vm1040, 0.0, %v1531
      %v1554 = vsel %vm1041, 0.0, %v1533
      %v1555 = vsel %vm1042, 0.0, %v1535
      %v1556 = vsel %vm1043, 0.0, %v1537
      %v1557 = vsel %vm1044, 0.0, %v1539
      %v1558 = vsel %vm1045, 0.0, %v1541
      %v1559 = vsel %vm1046, 0.0, %v1551
      %v1560 = vpack.c.bf16 %v1553, %v1552
      %v1561 = vpack.c.bf16 %v1555, %v1554
      %v1562 = vpack.c.bf16 %v1557, %v1556
      %v1563 = vpack.c.bf16 %v1559, %v1558
      %v1564 = vld [vmem:[%s5 + $0x140] sm:$0xf]
      %v1565 = vld [vmem:[%s5 + $0x144] sm:$0xf]
      %v1566 = vld [vmem:[%s5 + $0x148] sm:$0xf]
      %v1567 = vld [vmem:[%s5 + $0x14c] sm:$0xf]
      %v1568 = vld [vmem:[%s5 + $0x150] sm:$0xf]
      %v1569 = vld [vmem:[%s5 + $0x154] sm:$0xf]
      %v1570 = vld [vmem:[%s5 + $0x158] sm:$0xf]
      %v1571 = vld [vmem:[%s5 + $0x15c] sm:$0xf]
      %v1572 = vld [vmem:[%s5 + $0x160] sm:$0xf]
      %v1573 = vld [vmem:[%s5 + $0x164] sm:$0xf]
      %v1574 = vld [vmem:[%s5 + $0x168] sm:$0xf]
      %v1575 = vld [vmem:[%s5 + $0x16c] sm:$0xf]
      %v1576 = vld [vmem:[%s5 + $0x170] sm:$0xf]
      %v1577 = vld [vmem:[%s5 + $0x174] sm:$0xf]
      %v1578 = vld [vmem:[%s5 + $0x178] sm:$0xf]
      %v1579 = vld [vmem:[%s5 + $0x17c] sm:$0xf]
      %v1596 = vunpack.c.l.b16 %v1564
      %v1597 = vunpack.c.l.b16 %v1565
      %v1598 = vunpack.c.l.b16 %v1566
      %v1599 = vunpack.c.l.b16 %v1567
      %v1600 = vunpack.c.l.b16 %v1568
      %v1601 = vunpack.c.l.b16 %v1569
      %v1602 = vunpack.c.l.b16 %v1570
      %v1603 = vunpack.c.l.b16 %v1571
      %v1604 = vunpack.c.l.b16 %v1572
      %v1605 = vunpack.c.l.b16 %v1573
      %v1606 = vunpack.c.l.b16 %v1574
      %v1607 = vunpack.c.l.b16 %v1575
      %v1608 = vunpack.c.l.b16 %v1576
      %v1609 = vunpack.c.l.b16 %v1577
      %v1610 = vunpack.c.l.b16 %v1578
      %v1611 = vunpack.c.l.b16 %v1579
      %v1612 = vpack.c.b16 %v1597, %v1596
      %v1613 = vpack.c.b16 %v1599, %v1598
      %v1614 = vpack.c.b16 %v1601, %v1600
      %v1615 = vpack.c.b16 %v1603, %v1602
      %v1616 = vpack.c.b16 %v1605, %v1604
      %v1617 = vpack.c.b16 %v1607, %v1606
      %v1618 = vpack.c.b16 %v1609, %v1608
      %v1619 = vpack.c.b16 %v1611, %v1610
      %1628 = vmatprep.subr.bf16.mxu0 0
      %1629 = vmatpush1.bf16.msra.mxu0 %v1612
      %1630 = vmatprep.subr.bf16.mxu0 0
      %1631 = vmatpush1.bf16.msra.mxu0 %v1613
      %1632 = vmatprep.subr.bf16.mxu0 0
      %1633 = vmatpush1.bf16.msra.mxu0 %v1614
      %1634 = vmatprep.subr.bf16.mxu0 0
      %1635 = vmatpush1.bf16.msra.mxu0 %v1615
      %1636 = vmatprep.subr.bf16.mxu0 0
      %1637 = vmatpush1.bf16.msra.mxu0 %v1616
      %1638 = vmatprep.subr.bf16.mxu0 0
      %1639 = vmatpush1.bf16.msra.mxu0 %v1617
      %1640 = vmatprep.subr.bf16.mxu0 0
      %1641 = vmatpush1.bf16.msra.mxu0 %v1618
      %1642 = vmatprep.subr.bf16.mxu0 0
      %1643 = vmatpush1.bf16.msra.mxu0 %v1619
      %1644 = vmatprep.subr.bf16.mxu0 0
      %1645 = vmatpush1.bf16.msra.mxu0 0
      %1646 = vmatprep.subr.bf16.mxu0 0
      %1647 = vmatpush1.bf16.msra.mxu0 0
      %1648 = vmatprep.subr.bf16.mxu0 0
      %1649 = vmatpush1.bf16.msra.mxu0 0
      %1650 = vmatprep.subr.bf16.mxu0 0
      %1651 = vmatpush1.bf16.msra.mxu0 0
      %1652 = vmatprep.subr.bf16.mxu0 0
      %1653 = vmatpush1.bf16.msra.mxu0 0
      %1654 = vmatprep.subr.bf16.mxu0 0
      %1655 = vmatpush1.bf16.msra.mxu0 0
      %1656 = vmatprep.subr.bf16.mxu0 0
      %1657 = vmatpush1.bf16.msra.mxu0 0
      %1658 = vmatprep.subr.bf16.mxu0 0
      %1659 = vmatpush1.bf16.msra.mxu0 0
      %1660 = vmatprep.mubr.bf16.mxu0 0
      %1661 = vmatmul.mubr.bf16.gmra.mrb[0].mxu0 %v1560
      %v1662 = vpop.f32.mrb[0].mxu0
      %v1663 = vadd.f32 0.0, %v1662
      %v1664 = vpop.f32.mrb[0].mxu0
      %v1665 = vpop.f32.mrb[0].mxu0
      %v1666 = vadd.f32 0.0, %v1665
      %v1667 = vpop.f32.mrb[0].mxu0
      %1668 = vmatprep.mubr.bf16.mxu0 0
      %1669 = vmatmul.mubr.bf16.gmra.mrb[0].mxu0 %v1561
      %v1670 = vpop.f32.mrb[0].mxu0
      %v1671 = vadd.f32 0.0, %v1670
      %v1672 = vpop.f32.mrb[0].mxu0
      %v1673 = vpop.f32.mrb[0].mxu0
      %v1674 = vadd.f32 0.0, %v1673
      %v1675 = vpop.f32.mrb[0].mxu0
      %1676 = vmatprep.mubr.bf16.mxu0 0
      %1677 = vmatmul.mubr.bf16.gmra.mrb[0].mxu0 %v1562
      %v1678 = vpop.f32.mrb[0].mxu0
      %v1679 = vadd.f32 0.0, %v1678
      %v1680 = vpop.f32.mrb[0].mxu0
      %v1681 = vpop.f32.mrb[0].mxu0
      %v1682 = vadd.f32 0.0, %v1681
      %v1683 = vpop.f32.mrb[0].mxu0
      %1684 = vmatprep.mubr.bf16.mxu0 0
      %1685 = vmatmul.mubr.bf16.gmra.mrb[0].mxu0 %v1563
      %v1686 = vpop.f32.mrb[0].mxu0
      %v1687 = vadd.f32 0.0, %v1686
      %v1688 = vpop.f32.mrb[0].mxu0
      %v1689 = vpop.f32.mrb[0].mxu0
      %v1690 = vadd.f32 0.0, %v1689
      %v1691 = vpop.f32.mrb[0].mxu0
      %1692 = vdwg.mxu0
      %v1693 = vadd.f32 %v1519, %v1663
      %v1694 = vadd.f32 %v1520, %v1666
      %v1695 = vadd.f32 %v1521, %v1671
      %v1696 = vadd.f32 %v1522, %v1674
      %v1697 = vadd.f32 %v1523, %v1679
      %v1698 = vadd.f32 %v1524, %v1682
      %v1699 = vadd.f32 %v1525, %v1687
      %v1700 = vadd.f32 %v1526, %v1690
      %v1701 = vld [vmem:[#allocation2 + $0x20] sm:$0xff]
      %v1702 = vld [vmem:[#allocation2 + $0x28] sm:$0xff]
      %v1703 = vld [vmem:[#allocation2 + $0x30] sm:$0xff]
      %v1704 = vld [vmem:[#allocation2 + $0x38] sm:$0xff]
      %v1705 = vld [vmem:[#allocation2 + $0x40] sm:$0xff]
      %v1706 = vld [vmem:[#allocation2 + $0x48] sm:$0xff]
      %v1707 = vld [vmem:[#allocation2 + $0x50] sm:$0xff]
      %v1708 = vld [vmem:[#allocation2 + $0x58] sm:$0xff]
      %v1710 = vrot.slane %v1708, 7
      %v1719 = vrot.slane %v1701, 7
      %v1720 = vrot.slane %v1702, 7
      %v1721 = vsel %vm691, %v1719, %v1720
      %v1722 = vrot.slane %v1703, 7
      %v1723 = vsel %vm691, %v1720, %v1722
      %v1724 = vrot.slane %v1704, 7
      %v1725 = vsel %vm691, %v1722, %v1724
      %v1726 = vrot.slane %v1705, 7
      %v1727 = vsel %vm691, %v1724, %v1726
      %v1728 = vrot.slane %v1706, 7
      %v1729 = vsel %vm691, %v1726, %v1728
      %v1730 = vrot.slane %v1707, 7
      %v1731 = vsel %vm691, %v1728, %v1730
      %v1732 = vsel %vm691, %v1730, %v1710
      %v1741 = vsel %vm691, %v1710, %v1719
      %v1742 = vsel %vm723, 0.0, %v1741
      %v1743 = vsel %vm724, 0.0, %v1721
      %v1744 = vsel %vm725, 0.0, %v1723
      %v1745 = vsel %vm726, 0.0, %v1725
      %v1746 = vsel %vm727, 0.0, %v1727
      %v1747 = vsel %vm728, 0.0, %v1729
      %v1748 = vsel %vm729, 0.0, %v1731
      %v1749 = vsel %vm730, 0.0, %v1732
      %v1750 = vpack.c.bf16 %v1743, %v1742
      %v1751 = vpack.c.bf16 %v1745, %v1744
      %v1752 = vpack.c.bf16 %v1747, %v1746
      %v1753 = vpack.c.bf16 %v1749, %v1748
      %v1754 = vld [vmem:[%s5 + $0x180] sm:$0xf]
      %v1755 = vld [vmem:[%s5 + $0x184] sm:$0xf]
      %v1756 = vld [vmem:[%s5 + $0x188] sm:$0xf]
      %v1757 = vld [vmem:[%s5 + $0x18c] sm:$0xf]
      %v1758 = vld [vmem:[%s5 + $0x190] sm:$0xf]
      %v1759 = vld [vmem:[%s5 + $0x194] sm:$0xf]
      %v1760 = vld [vmem:[%s5 + $0x198] sm:$0xf]
      %v1761 = vld [vmem:[%s5 + $0x19c] sm:$0xf]
      %v1762 = vld [vmem:[%s5 + $0x1a0] sm:$0xf]
      %v1763 = vld [vmem:[%s5 + $0x1a4] sm:$0xf]
      %v1764 = vld [vmem:[%s5 + $0x1a8] sm:$0xf]
      %v1765 = vld [vmem:[%s5 + $0x1ac] sm:$0xf]
      %v1766 = vld [vmem:[%s5 + $0x1b0] sm:$0xf]
      %v1767 = vld [vmem:[%s5 + $0x1b4] sm:$0xf]
      %v1768 = vld [vmem:[%s5 + $0x1b8] sm:$0xf]
      %v1769 = vld [vmem:[%s5 + $0x1bc] sm:$0xf]
      %v1786 = vunpack.c.l.b16 %v1754
      %v1787 = vunpack.c.l.b16 %v1755
      %v1788 = vunpack.c.l.b16 %v1756
      %v1789 = vunpack.c.l.b16 %v1757
      %v1790 = vunpack.c.l.b16 %v1758
      %v1791 = vunpack.c.l.b16 %v1759
      %v1792 = vunpack.c.l.b16 %v1760
      %v1793 = vunpack.c.l.b16 %v1761
      %v1794 = vunpack.c.l.b16 %v1762
      %v1795 = vunpack.c.l.b16 %v1763
      %v1796 = vunpack.c.l.b16 %v1764
      %v1797 = vunpack.c.l.b16 %v1765
      %v1798 = vunpack.c.l.b16 %v1766
      %v1799 = vunpack.c.l.b16 %v1767
      %v1800 = vunpack.c.l.b16 %v1768
      %v1801 = vunpack.c.l.b16 %v1769
      %v1802 = vpack.c.b16 %v1787, %v1786
      %v1803 = vpack.c.b16 %v1789, %v1788
      %v1804 = vpack.c.b16 %v1791, %v1790
      %v1805 = vpack.c.b16 %v1793, %v1792
      %v1806 = vpack.c.b16 %v1795, %v1794
      %v1807 = vpack.c.b16 %v1797, %v1796
      %v1808 = vpack.c.b16 %v1799, %v1798
      %v1809 = vpack.c.b16 %v1801, %v1800
      %1818 = vmatprep.subr.bf16.mxu0 0
      %1819 = vmatpush1.bf16.msra.mxu0 %v1802
      %1820 = vmatprep.subr.bf16.mxu0 0
      %1821 = vmatpush1.bf16.msra.mxu0 %v1803
      %1822 = vmatprep.subr.bf16.mxu0 0
      %1823 = vmatpush1.bf16.msra.mxu0 %v1804
      %1824 = vmatprep.subr.bf16.mxu0 0
      %1825 = vmatpush1.bf16.msra.mxu0 %v1805
      %1826 = vmatprep.subr.bf16.mxu0 0
      %1827 = vmatpush1.bf16.msra.mxu0 %v1806
      %1828 = vmatprep.subr.bf16.mxu0 0
      %1829 = vmatpush1.bf16.msra.mxu0 %v1807
      %1830 = vmatprep.subr.bf16.mxu0 0
      %1831 = vmatpush1.bf16.msra.mxu0 %v1808
      %1832 = vmatprep.subr.bf16.mxu0 0
      %1833 = vmatpush1.bf16.msra.mxu0 %v1809
      %1834 = vmatprep.subr.bf16.mxu0 0
      %1835 = vmatpush1.bf16.msra.mxu0 0
      %1836 = vmatprep.subr.bf16.mxu0 0
      %1837 = vmatpush1.bf16.msra.mxu0 0
      %1838 = vmatprep.subr.bf16.mxu0 0
      %1839 = vmatpush1.bf16.msra.mxu0 0
      %1840 = vmatprep.subr.bf16.mxu0 0
      %1841 = vmatpush1.bf16.msra.mxu0 0
      %1842 = vmatprep.subr.bf16.mxu0 0
      %1843 = vmatpush1.bf16.msra.mxu0 0
      %1844 = vmatprep.subr.bf16.mxu0 0
      %1845 = vmatpush1.bf16.msra.mxu0 0
      %1846 = vmatprep.subr.bf16.mxu0 0
      %1847 = vmatpush1.bf16.msra.mxu0 0
      %1848 = vmatprep.subr.bf16.mxu0 0
      %1849 = vmatpush1.bf16.msra.mxu0 0
      %1850 = vmatprep.mubr.bf16.mxu0 0
      %1851 = vmatmul.mubr.bf16.gmra.mrb[0].mxu0 %v1750
      %v1852 = vpop.f32.mrb[0].mxu0
      %v1853 = vadd.f32 0.0, %v1852
      %v1854 = vpop.f32.mrb[0].mxu0
      %v1855 = vpop.f32.mrb[0].mxu0
      %v1856 = vadd.f32 0.0, %v1855
      %v1857 = vpop.f32.mrb[0].mxu0
      %1858 = vmatprep.mubr.bf16.mxu0 0
      %1859 = vmatmul.mubr.bf16.gmra.mrb[0].mxu0 %v1751
      %v1860 = vpop.f32.mrb[0].mxu0
      %v1861 = vadd.f32 0.0, %v1860
      %v1862 = vpop.f32.mrb[0].mxu0
      %v1863 = vpop.f32.mrb[0].mxu0
      %v1864 = vadd.f32 0.0, %v1863
      %v1865 = vpop.f32.mrb[0].mxu0
      %1866 = vmatprep.mubr.bf16.mxu0 0
      %1867 = vmatmul.mubr.bf16.gmra.mrb[0].mxu0 %v1752
      %v1868 = vpop.f32.mrb[0].mxu0
      %v1869 = vadd.f32 0.0, %v1868
      %v1870 = vpop.f32.mrb[0].mxu0
      %v1871 = vpop.f32.mrb[0].mxu0
      %v1872 = vadd.f32 0.0, %v1871
      %v1873 = vpop.f32.mrb[0].mxu0
      %1874 = vmatprep.mubr.bf16.mxu0 0
      %1875 = vmatmul.mubr.bf16.gmra.mrb[0].mxu0 %v1753
      %v1876 = vpop.f32.mrb[0].mxu0
      %v1877 = vadd.f32 0.0, %v1876
      %v1878 = vpop.f32.mrb[0].mxu0
      %v1879 = vpop.f32.mrb[0].mxu0
      %v1880 = vadd.f32 0.0, %v1879
      %v1881 = vpop.f32.mrb[0].mxu0
      %1882 = vdwg.mxu0
      %v1883 = vadd.f32 %v1693, %v1853
      %v1884 = vadd.f32 %v1694, %v1856
      %v1885 = vadd.f32 %v1695, %v1861
      %v1886 = vadd.f32 %v1696, %v1864
      %v1887 = vadd.f32 %v1697, %v1869
      %v1888 = vadd.f32 %v1698, %v1872
      %v1889 = vadd.f32 %v1699, %v1877
      %v1890 = vadd.f32 %v1700, %v1880
      %v1891 = vpack.c.bf16 %v1702, %v1701
      %v1892 = vpack.c.bf16 %v1704, %v1703
      %v1893 = vpack.c.bf16 %v1706, %v1705
      %v1894 = vpack.c.bf16 %v1708, %v1707
      %v1895 = vld [vmem:[%s5 + $0x1c0] sm:$0xf]
      %v1896 = vld [vmem:[%s5 + $0x1c4] sm:$0xf]
      %v1897 = vld [vmem:[%s5 + $0x1c8] sm:$0xf]
      %v1898 = vld [vmem:[%s5 + $0x1cc] sm:$0xf]
      %v1899 = vld [vmem:[%s5 + $0x1d0] sm:$0xf]
      %v1900 = vld [vmem:[%s5 + $0x1d4] sm:$0xf]
      %v1901 = vld [vmem:[%s5 + $0x1d8] sm:$0xf]
      %v1902 = vld [vmem:[%s5 + $0x1dc] sm:$0xf]
      %v1903 = vld [vmem:[%s5 + $0x1e0] sm:$0xf]
      %v1904 = vld [vmem:[%s5 + $0x1e4] sm:$0xf]
      %v1905 = vld [vmem:[%s5 + $0x1e8] sm:$0xf]
      %v1906 = vld [vmem:[%s5 + $0x1ec] sm:$0xf]
      %v1907 = vld [vmem:[%s5 + $0x1f0] sm:$0xf]
      %v1908 = vld [vmem:[%s5 + $0x1f4] sm:$0xf]
      %v1909 = vld [vmem:[%s5 + $0x1f8] sm:$0xf]
      %v1910 = vld [vmem:[%s5 + $0x1fc] sm:$0xf]
      %v1927 = vunpack.c.l.b16 %v1895
      %v1928 = vunpack.c.l.b16 %v1896
      %v1929 = vunpack.c.l.b16 %v1897
      %v1930 = vunpack.c.l.b16 %v1898
      %v1931 = vunpack.c.l.b16 %v1899
      %v1932 = vunpack.c.l.b16 %v1900
      %v1933 = vunpack.c.l.b16 %v1901
      %v1934 = vunpack.c.l.b16 %v1902
      %v1935 = vunpack.c.l.b16 %v1903
      %v1936 = vunpack.c.l.b16 %v1904
      %v1937 = vunpack.c.l.b16 %v1905
      %v1938 = vunpack.c.l.b16 %v1906
      %v1939 = vunpack.c.l.b16 %v1907
      %v1940 = vunpack.c.l.b16 %v1908
      %v1941 = vunpack.c.l.b16 %v1909
      %v1942 = vunpack.c.l.b16 %v1910
      %v1943 = vpack.c.b16 %v1928, %v1927
      %v1944 = vpack.c.b16 %v1930, %v1929
      %v1945 = vpack.c.b16 %v1932, %v1931
      %v1946 = vpack.c.b16 %v1934, %v1933
      %v1947 = vpack.c.b16 %v1936, %v1935
      %v1948 = vpack.c.b16 %v1938, %v1937
      %v1949 = vpack.c.b16 %v1940, %v1939
      %v1950 = vpack.c.b16 %v1942, %v1941
      %1959 = vmatprep.subr.bf16.mxu0 0
      %1960 = vmatpush1.bf16.msra.mxu0 %v1943
      %1961 = vmatprep.subr.bf16.mxu0 0
      %1962 = vmatpush1.bf16.msra.mxu0 %v1944
      %1963 = vmatprep.subr.bf16.mxu0 0
      %1964 = vmatpush1.bf16.msra.mxu0 %v1945
      %1965 = vmatprep.subr.bf16.mxu0 0
      %1966 = vmatpush1.bf16.msra.mxu0 %v1946
      %1967 = vmatprep.subr.bf16.mxu0 0
      %1968 = vmatpush1.bf16.msra.mxu0 %v1947
      %1969 = vmatprep.subr.bf16.mxu0 0
      %1970 = vmatpush1.bf16.msra.mxu0 %v1948
      %1971 = vmatprep.subr.bf16.mxu0 0
      %1972 = vmatpush1.bf16.msra.mxu0 %v1949
      %1973 = vmatprep.subr.bf16.mxu0 0
      %1974 = vmatpush1.bf16.msra.mxu0 %v1950
      %1975 = vmatprep.subr.bf16.mxu0 0
      %1976 = vmatpush1.bf16.msra.mxu0 0
      %1977 = vmatprep.subr.bf16.mxu0 0
      %1978 = vmatpush1.bf16.msra.mxu0 0
      %1979 = vmatprep.subr.bf16.mxu0 0
      %1980 = vmatpush1.bf16.msra.mxu0 0
      %1981 = vmatprep.subr.bf16.mxu0 0
      %1982 = vmatpush1.bf16.msra.mxu0 0
      %1983 = vmatprep.subr.bf16.mxu0 0
      %1984 = vmatpush1.bf16.msra.mxu0 0
      %1985 = vmatprep.subr.bf16.mxu0 0
      %1986 = vmatpush1.bf16.msra.mxu0 0
      %1987 = vmatprep.subr.bf16.mxu0 0
      %1988 = vmatpush1.bf16.msra.mxu0 0
      %1989 = vmatprep.subr.bf16.mxu0 0
      %1990 = vmatpush1.bf16.msra.mxu0 0
      %1991 = vmatprep.mubr.bf16.mxu0 0
      %1992 = vmatmul.mubr.bf16.gmra.mrb[0].mxu0 %v1891
      %v1993 = vpop.f32.mrb[0].mxu0
      %v1994 = vadd.f32 0.0, %v1993
      %v1995 = vpop.f32.mrb[0].mxu0
      %v1996 = vpop.f32.mrb[0].mxu0
      %v1997 = vadd.f32 0.0, %v1996
      %v1998 = vpop.f32.mrb[0].mxu0
      %1999 = vmatprep.mubr.bf16.mxu0 0
      %2000 = vmatmul.mubr.bf16.gmra.mrb[0].mxu0 %v1892
      %v2001 = vpop.f32.mrb[0].mxu0
      %v2002 = vadd.f32 0.0, %v2001
      %v2003 = vpop.f32.mrb[0].mxu0
      %v2004 = vpop.f32.mrb[0].mxu0
      %v2005 = vadd.f32 0.0, %v2004
      %v2006 = vpop.f32.mrb[0].mxu0
      %2007 = vmatprep.mubr.bf16.mxu0 0
      %2008 = vmatmul.mubr.bf16.gmra.mrb[0].mxu0 %v1893
      %v2009 = vpop.f32.mrb[0].mxu0
      %v2010 = vadd.f32 0.0, %v2009
      %v2011 = vpop.f32.mrb[0].mxu0
      %v2012 = vpop.f32.mrb[0].mxu0
      %v2013 = vadd.f32 0.0, %v2012
      %v2014 = vpop.f32.mrb[0].mxu0
      %2015 = vmatprep.mubr.bf16.mxu0 0
      %2016 = vmatmul.mubr.bf16.gmra.mrb[0].mxu0 %v1894
      %v2017 = vpop.f32.mrb[0].mxu0
      %v2018 = vadd.f32 0.0, %v2017
      %v2019 = vpop.f32.mrb[0].mxu0
      %v2020 = vpop.f32.mrb[0].mxu0
      %v2021 = vadd.f32 0.0, %v2020
      %v2022 = vpop.f32.mrb[0].mxu0
      %2023 = vdwg.mxu0
      %v2024 = vadd.f32 %v1883, %v1994
      %v2025 = vadd.f32 %v1884, %v1997
      %v2026 = vadd.f32 %v1885, %v2002
      %v2027 = vadd.f32 %v1886, %v2005
      %v2028 = vadd.f32 %v1887, %v2010
      %v2029 = vadd.f32 %v1888, %v2013
      %v2030 = vadd.f32 %v1889, %v2018
      %v2031 = vadd.f32 %v1890, %v2021
      %v2032 = vrot.slane %v1701, 1
      %v2033 = vrot.slane %v1702, 1
      %v2034 = vsel %vm1005, %v2032, %v2033
      %v2035 = vrot.slane %v1703, 1
      %v2036 = vsel %vm1005, %v2033, %v2035
      %v2037 = vrot.slane %v1704, 1
      %v2038 = vsel %vm1005, %v2035, %v2037
      %v2039 = vrot.slane %v1705, 1
      %v2040 = vsel %vm1005, %v2037, %v2039
      %v2041 = vrot.slane %v1706, 1
      %v2042 = vsel %vm1005, %v2039, %v2041
      %v2043 = vrot.slane %v1707, 1
      %v2044 = vsel %vm1005, %v2041, %v2043
      %v2045 = vrot.slane %v1708, 1
      %v2046 = vsel %vm1005, %v2043, %v2045
      %v2056 = vsel %vm1005, %v2045, %v2032
      %v2057 = vsel %vm1039, 0.0, %v2034
      %v2058 = vsel %vm1040, 0.0, %v2036
      %v2059 = vsel %vm1041, 0.0, %v2038
      %v2060 = vsel %vm1042, 0.0, %v2040
      %v2061 = vsel %vm1043, 0.0, %v2042
      %v2062 = vsel %vm1044, 0.0, %v2044
      %v2063 = vsel %vm1045, 0.0, %v2046
      %v2064 = vsel %vm1046, 0.0, %v2056
      %v2065 = vpack.c.bf16 %v2058, %v2057
      %v2066 = vpack.c.bf16 %v2060, %v2059
      %v2067 = vpack.c.bf16 %v2062, %v2061
      %v2068 = vpack.c.bf16 %v2064, %v2063
      %v2069 = vld [vmem:[%s5 + $0x200] sm:$0xf]
      %v2070 = vld [vmem:[%s5 + $0x204] sm:$0xf]
      %v2071 = vld [vmem:[%s5 + $0x208] sm:$0xf]
      %v2072 = vld [vmem:[%s5 + $0x20c] sm:$0xf]
      %v2073 = vld [vmem:[%s5 + $0x210] sm:$0xf]
      %v2074 = vld [vmem:[%s5 + $0x214] sm:$0xf]
      %v2075 = vld [vmem:[%s5 + $0x218] sm:$0xf]
      %v2076 = vld [vmem:[%s5 + $0x21c] sm:$0xf]
      %v2077 = vld [vmem:[%s5 + $0x220] sm:$0xf]
      %v2078 = vld [vmem:[%s5 + $0x224] sm:$0xf]
      %v2079 = vld [vmem:[%s5 + $0x228] sm:$0xf]
      %v2080 = vld [vmem:[%s5 + $0x22c] sm:$0xf]
      %v2081 = vld [vmem:[%s5 + $0x230] sm:$0xf]
      %v2082 = vld [vmem:[%s5 + $0x234] sm:$0xf]
      %v2083 = vld [vmem:[%s5 + $0x238] sm:$0xf]
      %v2084 = vld [vmem:[%s5 + $0x23c] sm:$0xf]
      %v2101 = vunpack.c.l.b16 %v2069
      %v2102 = vunpack.c.l.b16 %v2070
      %v2103 = vunpack.c.l.b16 %v2071
      %v2104 = vunpack.c.l.b16 %v2072
      %v2105 = vunpack.c.l.b16 %v2073
      %v2106 = vunpack.c.l.b16 %v2074
      %v2107 = vunpack.c.l.b16 %v2075
      %v2108 = vunpack.c.l.b16 %v2076
      %v2109 = vunpack.c.l.b16 %v2077
      %v2110 = vunpack.c.l.b16 %v2078
      %v2111 = vunpack.c.l.b16 %v2079
      %v2112 = vunpack.c.l.b16 %v2080
      %v2113 = vunpack.c.l.b16 %v2081
      %v2114 = vunpack.c.l.b16 %v2082
      %v2115 = vunpack.c.l.b16 %v2083
      %v2116 = vunpack.c.l.b16 %v2084
      %v2117 = vpack.c.b16 %v2102, %v2101
      %v2118 = vpack.c.b16 %v2104, %v2103
      %v2119 = vpack.c.b16 %v2106, %v2105
      %v2120 = vpack.c.b16 %v2108, %v2107
      %v2121 = vpack.c.b16 %v2110, %v2109
      %v2122 = vpack.c.b16 %v2112, %v2111
      %v2123 = vpack.c.b16 %v2114, %v2113
      %v2124 = vpack.c.b16 %v2116, %v2115
      %2133 = vmatprep.subr.bf16.mxu0 0
      %2134 = vmatpush1.bf16.msra.mxu0 %v2117
      %2135 = vmatprep.subr.bf16.mxu0 0
      %2136 = vmatpush1.bf16.msra.mxu0 %v2118
      %2137 = vmatprep.subr.bf16.mxu0 0
      %2138 = vmatpush1.bf16.msra.mxu0 %v2119
      %2139 = vmatprep.subr.bf16.mxu0 0
      %2140 = vmatpush1.bf16.msra.mxu0 %v2120
      %2141 = vmatprep.subr.bf16.mxu0 0
      %2142 = vmatpush1.bf16.msra.mxu0 %v2121
      %2143 = vmatprep.subr.bf16.mxu0 0
      %2144 = vmatpush1.bf16.msra.mxu0 %v2122
      %2145 = vmatprep.subr.bf16.mxu0 0
      %2146 = vmatpush1.bf16.msra.mxu0 %v2123
      %2147 = vmatprep.subr.bf16.mxu0 0
      %2148 = vmatpush1.bf16.msra.mxu0 %v2124
      %2149 = vmatprep.subr.bf16.mxu0 0
      %2150 = vmatpush1.bf16.msra.mxu0 0
      %2151 = vmatprep.subr.bf16.mxu0 0
      %2152 = vmatpush1.bf16.msra.mxu0 0
      %2153 = vmatprep.subr.bf16.mxu0 0
      %2154 = vmatpush1.bf16.msra.mxu0 0
      %2155 = vmatprep.subr.bf16.mxu0 0
      %2156 = vmatpush1.bf16.msra.mxu0 0
      %2157 = vmatprep.subr.bf16.mxu0 0
      %2158 = vmatpush1.bf16.msra.mxu0 0
      %2159 = vmatprep.subr.bf16.mxu0 0
      %2160 = vmatpush1.bf16.msra.mxu0 0
      %2161 = vmatprep.subr.bf16.mxu0 0
      %2162 = vmatpush1.bf16.msra.mxu0 0
      %2163 = vmatprep.subr.bf16.mxu0 0
      %2164 = vmatpush1.bf16.msra.mxu0 0
      %2165 = vmatprep.mubr.bf16.mxu0 0
      %2166 = vmatmul.mubr.bf16.gmra.mrb[0].mxu0 %v2065
      %v2167 = vpop.f32.mrb[0].mxu0
      %v2168 = vadd.f32 0.0, %v2167
      %v2169 = vpop.f32.mrb[0].mxu0
      %v2170 = vpop.f32.mrb[0].mxu0
      %v2171 = vadd.f32 0.0, %v2170
      %v2172 = vpop.f32.mrb[0].mxu0
      %2173 = vmatprep.mubr.bf16.mxu0 0
      %2174 = vmatmul.mubr.bf16.gmra.mrb[0].mxu0 %v2066
      %v2175 = vpop.f32.mrb[0].mxu0
      %v2176 = vadd.f32 0.0, %v2175
      %v2177 = vpop.f32.mrb[0].mxu0
      %v2178 = vpop.f32.mrb[0].mxu0
      %v2179 = vadd.f32 0.0, %v2178
      %v2180 = vpop.f32.mrb[0].mxu0
      %2181 = vmatprep.mubr.bf16.mxu0 0
      %2182 = vmatmul.mubr.bf16.gmra.mrb[0].mxu0 %v2067
      %v2183 = vpop.f32.mrb[0].mxu0
      %v2184 = vadd.f32 0.0, %v2183
      %v2185 = vpop.f32.mrb[0].mxu0
      %v2186 = vpop.f32.mrb[0].mxu0
      %v2187 = vadd.f32 0.0, %v2186
      %v2188 = vpop.f32.mrb[0].mxu0
      %2189 = vmatprep.mubr.bf16.mxu0 0
      %2190 = vmatmul.mubr.bf16.gmra.mrb[0].mxu0 %v2068
      %v2191 = vpop.f32.mrb[0].mxu0
      %v2192 = vadd.f32 0.0, %v2191
      %v2193 = vpop.f32.mrb[0].mxu0
      %v2194 = vpop.f32.mrb[0].mxu0
      %v2195 = vadd.f32 0.0, %v2194
      %v2196 = vpop.f32.mrb[0].mxu0
      %2197 = vdwg.mxu0
      %v2198 = vadd.f32 %v2024, %v2168
      %v2199 = vadd.f32 %v2025, %v2171
      %v2200 = vadd.f32 %v2026, %v2176
      %v2201 = vadd.f32 %v2027, %v2179
      %v2202 = vadd.f32 %v2028, %v2184
      %v2203 = vadd.f32 %v2029, %v2187
      %v2204 = vadd.f32 %v2030, %v2192
      %v2205 = vadd.f32 %v2031, %v2195
      %v2206 = vld [vmem:[%s6] sm:$0x1]
      %v2208 = vlaneseq
      %v2209 = vshrl.u32 %v2208, 7
      %v2210 = vsub.s32 0, %v2209
      %v2211 = vrot.slane %v2206, %v2210
      %v2213 = vadd.f32 %v2198, %v2211
      %v2214 = vadd.f32 %v2199, %v2211
      %v2215 = vadd.f32 %v2200, %v2211
      %v2216 = vadd.f32 %v2201, %v2211
      %v2217 = vadd.f32 %v2202, %v2211
      %v2218 = vadd.f32 %v2203, %v2211
      %v2219 = vadd.f32 %v2204, %v2211
      %v2220 = vadd.f32 %v2205, %v2211
      %2221 = vst [vmem:[%s379] sm:$0xff] %v2213
      %2222 = vst [vmem:[%s379 + $0x8] sm:$0xff] %v2214
      %2223 = vst [vmem:[%s379 + $0x10] sm:$0xff] %v2215
      %2224 = vst [vmem:[%s379 + $0x18] sm:$0xff] %v2216
      %2225 = vst [vmem:[%s379 + $0x20] sm:$0xff] %v2217
      %2226 = vst [vmem:[%s379 + $0x28] sm:$0xff] %v2218
      %2227 = vst [vmem:[%s379 + $0x30] sm:$0xff] %v2219
      %2228 = vst [vmem:[%s379 + $0x38] sm:$0xff] %v2220
      %v2229 = vadd.f32 %v2213, %v2214
      %v2230 = vadd.f32 %v2229, %v2215
      %v2231 = vadd.f32 %v2230, %v2216
      %v2232 = vadd.f32 %v2231, %v2217
      %v2233 = vadd.f32 %v2232, %v2218
      %v2234 = vadd.f32 %v2233, %v2219
      %v2235 = vadd.f32 %v2234, %v2220
      %v2236 = vrot.slane %v2235, 4
      %v2237 = vadd.f32 %v2235, %v2236
      %v2238 = vrot.slane %v2237, 2
      %v2239 = vadd.f32 %v2237, %v2238
      %v2240 = vrot.slane %v2239, 1
      %v2241 = vadd.f32 %v2239, %v2240
      %v2242 = vsel %vm691, %v2241, 0.0
      %2243 = vst [vmem:[%s388] sm:$0xff] %v2242
      %v2244 = vmul.f32 %v2213, %v2213
      %v2245 = vmul.f32 %v2214, %v2214
      %v2246 = vmul.f32 %v2215, %v2215
      %v2247 = vmul.f32 %v2216, %v2216
      %v2248 = vmul.f32 %v2217, %v2217
      %v2249 = vmul.f32 %v2218, %v2218
      %v2250 = vmul.f32 %v2219, %v2219
      %v2251 = vmul.f32 %v2220, %v2220
      %v2252 = vadd.f32 %v2244, %v2245
      %v2253 = vadd.f32 %v2252, %v2246
      %v2254 = vadd.f32 %v2253, %v2247
      %v2255 = vadd.f32 %v2254, %v2248
      %v2256 = vadd.f32 %v2255, %v2249
      %v2257 = vadd.f32 %v2256, %v2250
      %v2258 = vadd.f32 %v2257, %v2251
      %v2259 = vrot.slane %v2258, 4
      %v2260 = vadd.f32 %v2258, %v2259
      %v2261 = vrot.slane %v2260, 2
      %v2262 = vadd.f32 %v2260, %v2261
      %v2263 = vrot.slane %v2262, 1
      %v2264 = vadd.f32 %v2262, %v2263
      %v2265 = vsel %vm691, %v2264, 0.0
      %2266 = vst [vmem:[%s396] sm:$0xff] %v2265
      %s2267 = smul.u32 %s25, 4
      %s2268 = sadd.s32 %s2267, %s26
      %s2269 = smul.u32 8, %s2268
      %p2270 = scmp.lt.s32.totalorder %s2269, 63
      %s2271 = scalar_select %p2270, %s2269, 63
      %s2272 = smul.addr %s2271, 8
      %s2273 = scalar_lea.vmem %s7, %s2272
      %s2274 = smul.u32 %s25, 4
      %s2275 = sadd.s32 %s2274, %s26
      %p2276 = scmp.lt.s32.totalorder %s2275, 7
      %s2277 = scalar_select %p2276, %s2275, 7
      %s2278 = smul.addr %s2277, 8
      %s2279 = scalar_lea.vmem %s8, %s2278
      %s2280 = smul.u32 %s25, 4
      %s2281 = sadd.s32 %s2280, %s26
      %p2282 = scmp.lt.s32.totalorder %s2281, 7
      %s2283 = scalar_select %p2282, %s2281, 7
      %s2284 = smul.addr %s2283, 8
      %s2285 = scalar_lea.vmem %s9, %s2284
      // Predicated region
      $region65: #{bottleneck_forward.5} parent=47 // pred_check
        %p2286 = pneg %p207
      $region66: #{bottleneck_forward.5} parent=47 // pred_check_branch
        %2288 = sbr.rel (%p2286) target = $region68
      $region67: #{bottleneck_forward.5} parent=47 // pred_region
        %s2289 = smul.u32 %s25, 4
        %s2290 = sadd.s32 %s2289, %s26
        %s2291 = smul.u32 8, %s2290
      $region68: #{bottleneck_forward.5} parent=47 // pred_fallthru
        _
      // Predicated region
      $region69: #{bottleneck_forward.5} parent=47 // pred_check
        %p2292 = pneg %p237
      $region70: #{bottleneck_forward.5} parent=47 // pred_check_branch
        %2294 = sbr.rel (%p2292) target = $region72
      $region71: #{bottleneck_forward.5} parent=47 // pred_region
        %s2295 = smul.u32 %s25, 4
        %s2296 = sadd.s32 %s2295, %s26
      $region72: #{bottleneck_forward.5} parent=47 // pred_fallthru
        _
      // Predicated region
      $region73: #{bottleneck_forward.5} parent=47 // pred_check
        %p2297 = pneg %p267
      $region74: #{bottleneck_forward.5} parent=47 // pred_check_branch
        %2299 = sbr.rel (%p2297) target = $region76
      $region75: #{bottleneck_forward.5} parent=47 // pred_region
        %s2300 = smul.u32 %s25, 4
        %s2301 = sadd.s32 %s2300, %s26
      $region76: #{bottleneck_forward.5} parent=47 // pred_fallthru
        _
    $region48: #{bottleneck_forward.5} parent=5 // pred_fallthru
      _
    %p2302 = scmp.le.s32.totalorder 2, %s16
    // Predicated region
    $region77: #{bottleneck_forward.5} parent=5 // pred_check
      %p2303 = pneg %p2302
    $region78: #{bottleneck_forward.5} parent=5 // pred_check_branch
      %2305 = sbr.rel (%p2303) target = $region80
    $region79: #{bottleneck_forward.5} parent=5 // pred_region
      %s2306 = ssub.s32 %s16, 2
      // Predicated region
      $region81: #{bottleneck_forward.5} parent=79 // pred_check
        %p2307 = pneg %p213
      $region82: #{bottleneck_forward.5} parent=79 // pred_check_branch
        %2309 = sbr.rel (%p2307) target = $region84
      $region83: #{bottleneck_forward.5} parent=79 // pred_region
        %s2310 = smul.u32 %s27, 4
        %s2311 = sadd.s32 %s2310, %s28
        %s2312 = smul.u32 8, %s2311
        %p2313 = scmp.lt.s32.totalorder %s2312, 63
        %s2314 = scalar_select %p2313, %s2312, 63
        %s2315 = smul.addr %s2314, 8
        %s2316 = scalar_lea.vmem %s7, %s2315
      $region84: #{bottleneck_forward.5} parent=79 // pred_fallthru
        _
      // Predicated region
      $region85: #{bottleneck_forward.5} parent=79 // pred_check
        %p2317 = pneg %p243
      $region86: #{bottleneck_forward.5} parent=79 // pred_check_branch
        %2319 = sbr.rel (%p2317) target = $region88
      $region87: #{bottleneck_forward.5} parent=79 // pred_region
        %s2320 = smul.u32 %s27, 4
        %s2321 = sadd.s32 %s2320, %s28
        %p2322 = scmp.lt.s32.totalorder %s2321, 7
        %s2323 = scalar_select %p2322, %s2321, 7
        %s2324 = smul.addr %s2323, 8
        %s2325 = scalar_lea.vmem %s8, %s2324
      $region88: #{bottleneck_forward.5} parent=79 // pred_fallthru
        _
      // Predicated region
      $region89: #{bottleneck_forward.5} parent=79 // pred_check
        %p2326 = pneg %p273
      $region90: #{bottleneck_forward.5} parent=79 // pred_check_branch
        %2328 = sbr.rel (%p2326) target = $region92
      $region91: #{bottleneck_forward.5} parent=79 // pred_region
        %s2329 = smul.u32 %s27, 4
        %s2330 = sadd.s32 %s2329, %s28
        %p2331 = scmp.lt.s32.totalorder %s2330, 7
        %s2332 = scalar_select %p2331, %s2330, 7
        %s2333 = smul.addr %s2332, 8
        %s2334 = scalar_lea.vmem %s9, %s2333
      $region92: #{bottleneck_forward.5} parent=79 // pred_fallthru
        _
    $region80: #{bottleneck_forward.5} parent=5 // pred_fallthru
      _
  $region6: #{bottleneck_forward.5} parent=0 // loop_footer
    %s20 = sadd.s32 1, %s16
  $region7: #{bottleneck_forward.5} parent=0 // loop_footer_branch
    %15 = sbr.rel target = $region3
  $region8: #{bottleneck_forward.5} parent=0 // loop_exit
    _

</llo_original>
